<compile_context>
chip_gen: v6e
topology: v6e:2x2x1
jax: 0.10.0
libtpu: 0.0.40
codegen_flags: <defaults>
</compile_context>

<pallas_src>
import jax
import jax.numpy as jnp
from jax.experimental import pallas as pl
from jax.experimental.pallas import tpu as pltpu

NUM_RELS = 3
NUM_BASES = 2
NUM_LAYERS = 3
LANE = 128
BF16_SUBLANE = 16
F32_SUBLANE = 8


def _round_up(x, m):
    return ((x + m - 1) // m) * m


# ------------------------------- kernel -------------------------------------

def _fused_classifier_kernel(adjc_ref, feats_ref, seg_ref,
                             wf1_ref, b1_ref,
                             wf2_ref, b2_ref,
                             wf3_ref, b3_ref,
                             wc_ref, bc_ref, out_ref):
    """Fully fused forward pass (single TensorCore, all operands VMEM-resident).

    adjc_ref  : (L, 2*N, N)        bf16  per-layer stacked coef-folded adjacency
    feats_ref : (N, 128)           bf16  input node features (N padded to 16k)
    seg_ref   : (G, N)             f32   segment-mean matrix (rows sum to 1/graph)
    wfX_ref   : (3*Cin, Cout)      bf16  [W_self; basis0; basis1] of conv layer X
    bX_ref    : (1, Cout)          f32   bias of conv layer X
    wc_ref    : (256, 256)         bf16  classifier weight, padded 250 -> 256
    bc_ref    : (1, 256)           f32   classifier bias, padded 250 -> 256
    out_ref   : (G, 256)           f32   padded logits
    """
    n = feats_ref.shape[0]
    layers = ((wf1_ref, b1_ref), (wf2_ref, b2_ref), (wf3_ref, b3_ref))

    h = feats_ref[...]                                               # bf16 (N, Cin)
    act = None
    for li, (wf_ref, bias_ref) in enumerate(layers):
        # One stacked aggregation matmul: (2N, N) @ (N, Cin) -> (2N, Cin).
        agg = jnp.dot(adjc_ref[li], h,
                      preferred_element_type=jnp.float32).astype(jnp.bfloat16)
        # One fused weight matmul with K = 3*Cin:
        #   [h | A'_{l,0} h | A'_{l,1} h] @ [W_self; basis0; basis1]
        lhs = jnp.concatenate([h, agg[:n, :], agg[n:, :]], axis=1)   # bf16 (N, 3*Cin)
        acc = jnp.dot(lhs, wf_ref[...],
                      preferred_element_type=jnp.float32) + bias_ref[...]
        act = jnp.maximum(acc, 0.0)                                  # f32 (N, Cout)
        h = act.astype(jnp.bfloat16)
        # Dropout(0.2): identity in eval mode.

    # dgl.mean_nodes readout in f32 (seg and last activation kept f32 for accuracy),
    # fused with the final Linear (bf16 MXU, f32 accumulation).
    pooled = jnp.dot(seg_ref[...], act, preferred_element_type=jnp.float32)   # (G, 256)
    out_ref[...] = (jnp.dot(pooled.astype(jnp.bfloat16), wc_ref[...],
                            preferred_element_type=jnp.float32)
                    + bc_ref[...])


# ------------------------------- wrapper -------------------------------------

_VMEM = pl.BlockSpec(memory_space=pltpu.MemorySpace.VMEM)


def _nbytes(shape, dtype):
    n = 1
    for s in shape:
        n *= int(s)
    return n * jnp.dtype(dtype).itemsize


def classifier_forward(adj, seg, feats, params):
    """adj: (R, N, N) f32 dense per-relation adjacency (adj[r, dst, src]).
    seg: (G, N) f32 segment-mean matrix.  feats: (N, 128) f32 node features."""
    n_nodes = feats.shape[0]
    num_graphs = seg.shape[0]

    # Pad nodes to a bf16-sublane multiple and graphs to an f32-sublane multiple.
    # Padded nodes have zero adjacency columns and zero seg weight -> inert.
    n_pad = _round_up(n_nodes, BF16_SUBLANE)
    g_pad = _round_up(num_graphs, F32_SUBLANE)
    adj_p = jnp.pad(adj, ((0, 0), (0, n_pad - n_nodes), (0, n_pad - n_nodes)))
    feats_p = jnp.pad(feats, ((0, n_pad - n_nodes), (0, 0)))
    seg_p = jnp.pad(seg, ((0, g_pad - num_graphs), (0, n_pad - n_nodes)))

    # Fold basis coefficients into the adjacency in one einsum and stack the two
    # folded matrices of each layer along rows:  adjc[l] = [A'_{l,0}; A'_{l,1}].
    coefs = jnp.stack([params[f'conv{l}']['coef']
                       for l in range(1, NUM_LAYERS + 1)], axis=0)     # (L, R, B)
    adjc = (jnp.einsum('lrb,rnm->lbnm', coefs, adj_p)
            .reshape(NUM_LAYERS, NUM_BASES * n_pad, n_pad)
            .astype(jnp.bfloat16))                                     # (L, 2N, N)

    # Lane-dense classifier output: pad 250 -> 256, slice after the kernel.
    wc = params['classify']['w']
    bc = params['classify']['b']
    n_cls = wc.shape[1]
    pad = (-n_cls) % LANE
    wc_p = jnp.pad(wc, ((0, 0), (0, pad))).astype(jnp.bfloat16)        # (256, 256)
    bc_p = jnp.pad(bc, ((0, 0), (0, pad)))                             # (1, 256) f32

    args = [adjc, feats_p.astype(jnp.bfloat16), seg_p]                 # seg stays f32
    for l in range(1, NUM_LAYERS + 1):
        p = params[f'conv{l}']
        # Fused weight [W_self; basis0; basis1] -> single K=3*Cin matmul in-kernel.
        wfused = jnp.concatenate([p['wself'], p['basis'][0], p['basis'][1]],
                                 axis=0).astype(jnp.bfloat16)          # (3*Cin, Cout)
        args += [wfused, p['bias']]                                    # bias stays f32
    args += [wc_p, bc_p]

    out_shape = jax.ShapeDtypeStruct((g_pad, n_cls + pad), jnp.float32)

    # Explicit VMEM budget (everything is resident; no grid at these sizes).
    total_bytes = sum(_nbytes(a.shape, a.dtype) for a in args)
    total_bytes += _nbytes(out_shape.shape, out_shape.dtype)
    vmem_limit = int(min(max(2 * total_bytes + (4 << 20), 16 << 20), 64 << 20))

    out_padded = pl.pallas_call(
        _fused_classifier_kernel,
        out_shape=out_shape,
        in_specs=[_VMEM] * len(args),
        out_specs=_VMEM,
        compiler_params=pltpu.CompilerParams(vmem_limit_bytes=vmem_limit),
    )(*args)
    return out_padded[:num_graphs, :n_cls]


# --------------------------- parameter construction --------------------------

def init_params(key):
    """Deterministic parameter init matching the module's shapes."""
    dims = [(128, 256), (256, 512), (512, 256)]
    params = {}
    for li, (cin, cout) in enumerate(dims, start=1):
        key, k1, k2, k3, k4 = jax.random.split(key, 5)
        scale = 1.0 / jnp.sqrt(jnp.float32(cin))
        params[f"conv{li}"] = dict(
            basis=jax.random.normal(k1, (NUM_BASES, cin, cout), jnp.float32) * scale,
            coef=jax.random.normal(k2, (NUM_RELS, NUM_BASES), jnp.float32),
            wself=jax.random.normal(k3, (cin, cout), jnp.float32) * scale,
            bias=jax.random.normal(k4, (1, cout), jnp.float32) * 0.01,
        )
    key, k1, k2 = jax.random.split(key, 3)
    params["classify"] = dict(
        w=jax.random.normal(k1, (256, 250), jnp.float32) / jnp.sqrt(256.0),
        b=jax.random.normal(k2, (1, 250), jnp.float32) * 0.01,
    )
    return params


# ----------------------------- f32 reference ---------------------------------

def reference_forward(adj, seg, feats, params):
    """Pure-JAX f32 reference with the original per-relation formulation."""
    h = feats
    for l in range(1, NUM_LAYERS + 1):
        p = params[f'conv{l}']
        w_r = jnp.einsum('rb,bio->rio', p['coef'], p['basis'])    # (R, Cin, Cout)
        msg = jnp.einsum('rnm,mi,rio->no', adj, h, w_r)
        h = jax.nn.relu(msg + h @ p['wself'] + p['bias'])
    pooled = seg @ h
    return pooled @ params['classify']['w'] + params['classify']['b']


# --------------------------------- main ---------------------------------------

if __name__ == "__main__":
    key = jax.random.PRNGKey(0)

    # Small batched graph: 2 graphs x 4 nodes = 8 nodes, in_feat = 128.
    num_graphs, nodes_per_graph = 2, 4
    n_nodes = num_graphs * nodes_per_graph
    edges_per_graph = 8
    in_feat = 128

    key, kf, ks, kd, ke = jax.random.split(key, 5)
    feats = jax.random.normal(kf, (n_nodes, in_feat), jnp.float32)

    # Random edges kept inside each graph (as a DGL batched graph would be).
    src_local = jax.random.randint(ks, (num_graphs, edges_per_graph), 0, nodes_per_graph)
    dst_local = jax.random.randint(kd, (num_graphs, edges_per_graph), 0, nodes_per_graph)
    offsets = (jnp.arange(num_graphs) * nodes_per_graph)[:, None]
    src = (src_local + offsets).reshape(-1)
    dst = (dst_local + offsets).reshape(-1)
    etype = jax.random.randint(ke, (num_graphs * edges_per_graph,), 0, NUM_RELS)

    # Dense per-relation adjacency: adj[r, dst, src] counts edges (multigraph-safe).
    adj = jnp.zeros((NUM_RELS, n_nodes, n_nodes), jnp.float32)
    adj = adj.at[etype, dst, src].add(1.0)

    # Segment-mean matrix for dgl.mean_nodes over the batched graph.
    graph_id = jnp.repeat(jnp.arange(num_graphs), nodes_per_graph)       # (N,)
    seg = (jnp.arange(num_graphs)[:, None] == graph_id[None, :]).astype(jnp.float32)
    seg = seg / jnp.float32(nodes_per_graph)                             # (G, N)

    params = init_params(jax.random.PRNGKey(0))

    logits = classifier_forward(adj, seg, feats, params)
    logits = jax.block_until_ready(logits)

    assert logits.shape == (num_graphs, 250), logits.shape
    assert jnp.all(jnp.isfinite(logits))

    # Validate bf16 kernel against the f32 per-relation reference.
    ref = reference_forward(adj, seg, feats, params)
    rel_err = jnp.linalg.norm(logits - ref) / jnp.linalg.norm(ref)
    assert rel_err < 0.08, f"relative error too high: {rel_err}"

    print("KERNEL_OK")
</pallas_src>

<mosaic_0001>
module attributes {stable_mosaic.version = 11 : i64} {
  func.func @_fused_classifier_kernel(%arg0: memref<3x32x16xbf16, #tpu.memory_space<vmem>>, %arg1: memref<16x128xbf16, #tpu.memory_space<vmem>>, %arg2: memref<8x16xf32, #tpu.memory_space<vmem>>, %arg3: memref<384x256xbf16, #tpu.memory_space<vmem>>, %arg4: memref<1x256xf32, #tpu.memory_space<vmem>>, %arg5: memref<768x512xbf16, #tpu.memory_space<vmem>>, %arg6: memref<1x512xf32, #tpu.memory_space<vmem>>, %arg7: memref<1536x256xbf16, #tpu.memory_space<vmem>>, %arg8: memref<1x256xf32, #tpu.memory_space<vmem>>, %arg9: memref<256x256xbf16, #tpu.memory_space<vmem>>, %arg10: memref<1x256xf32, #tpu.memory_space<vmem>>, %arg11: memref<8x256xf32, #tpu.memory_space<vmem>>) attributes {dimension_semantics = [], scalar_prefetch = 0 : i64, scratch_operands = 0 : i64, tpu.core_type = #tpu.core_type<tc>} {
    %c0 = arith.constant 0 : index
    %c0_0 = arith.constant 0 : index
    %0 = vector.load %arg1[%c0, %c0_0] : memref<16x128xbf16, #tpu.memory_space<vmem>>, vector<16x128xbf16>
    %c0_1 = arith.constant 0 : index
    %c0_2 = arith.constant 0 : index
    %c0_3 = arith.constant 0 : index
    %1 = vector.load %arg0[%c0_1, %c0_2, %c0_3] : memref<3x32x16xbf16, #tpu.memory_space<vmem>>, vector<1x32x16xbf16>
    %2 = vector.shape_cast %1 : vector<1x32x16xbf16> to vector<32x16xbf16>
    %cst = arith.constant dense<0.000000e+00> : vector<32x128xf32>
    %3 = tpu.matmul %2, %0, %cst {dimension_numbers = #tpu.dot_dimension_numbers<[1], [0], [0], [1], [0, 0, 1, 1], [], []>} : vector<32x16xbf16>, vector<16x128xbf16>, vector<32x128xf32> -> vector<32x128xf32>
    %4 = arith.truncf %3 : vector<32x128xf32> to vector<32x128xbf16>
    %5 = vector.extract_strided_slice %4 {offsets = [0, 0], sizes = [16, 128], strides = [1, 1]} : vector<32x128xbf16> to vector<16x128xbf16>
    %6 = vector.extract_strided_slice %4 {offsets = [16, 0], sizes = [16, 128], strides = [1, 1]} : vector<32x128xbf16> to vector<16x128xbf16>
    %7 = tpu.concatenate %0, %5, %6 in 1 : vector<16x128xbf16>, vector<16x128xbf16>, vector<16x128xbf16> -> vector<16x384xbf16>
    %c0_4 = arith.constant 0 : index
    %c0_5 = arith.constant 0 : index
    %8 = vector.load %arg3[%c0_4, %c0_5] : memref<384x256xbf16, #tpu.memory_space<vmem>>, vector<384x256xbf16>
    %cst_6 = arith.constant dense<0.000000e+00> : vector<16x256xf32>
    %9 = tpu.matmul %7, %8, %cst_6 {dimension_numbers = #tpu.dot_dimension_numbers<[1], [0], [0], [1], [0, 0, 1, 1], [], []>} : vector<16x384xbf16>, vector<384x256xbf16>, vector<16x256xf32> -> vector<16x256xf32>
    %c0_7 = arith.constant 0 : index
    %c0_8 = arith.constant 0 : index
    %10 = vector.load %arg4[%c0_7, %c0_8] : memref<1x256xf32, #tpu.memory_space<vmem>>, vector<1x256xf32>
    %11 = vector.broadcast %10 : vector<1x256xf32> to vector<16x256xf32>
    %12 = arith.addf %9, %11 : vector<16x256xf32>
    %cst_9 = arith.constant 0.000000e+00 : f32
    %13 = vector.broadcast %cst_9 : f32 to vector<16x256xf32>
    %14 = arith.maximumf %12, %13 : vector<16x256xf32>
    %15 = arith.truncf %14 : vector<16x256xf32> to vector<16x256xbf16>
    %c1 = arith.constant 1 : index
    %c0_10 = arith.constant 0 : index
    %c0_11 = arith.constant 0 : index
    %16 = vector.load %arg0[%c1, %c0_10, %c0_11] : memref<3x32x16xbf16, #tpu.memory_space<vmem>>, vector<1x32x16xbf16>
    %17 = vector.shape_cast %16 : vector<1x32x16xbf16> to vector<32x16xbf16>
    %cst_12 = arith.constant dense<0.000000e+00> : vector<32x256xf32>
    %18 = tpu.matmul %17, %15, %cst_12 {dimension_numbers = #tpu.dot_dimension_numbers<[1], [0], [0], [1], [0, 0, 1, 1], [], []>} : vector<32x16xbf16>, vector<16x256xbf16>, vector<32x256xf32> -> vector<32x256xf32>
    %19 = arith.truncf %18 : vector<32x256xf32> to vector<32x256xbf16>
    %20 = vector.extract_strided_slice %19 {offsets = [0, 0], sizes = [16, 256], strides = [1, 1]} : vector<32x256xbf16> to vector<16x256xbf16>
    %21 = vector.extract_strided_slice %19 {offsets = [16, 0], sizes = [16, 256], strides = [1, 1]} : vector<32x256xbf16> to vector<16x256xbf16>
    %22 = tpu.concatenate %15, %20, %21 in 1 : vector<16x256xbf16>, vector<16x256xbf16>, vector<16x256xbf16> -> vector<16x768xbf16>
    %c0_13 = arith.constant 0 : index
    %c0_14 = arith.constant 0 : index
    %23 = vector.load %arg5[%c0_13, %c0_14] : memref<768x512xbf16, #tpu.memory_space<vmem>>, vector<768x512xbf16>
    %cst_15 = arith.constant dense<0.000000e+00> : vector<16x512xf32>
    %24 = tpu.matmul %22, %23, %cst_15 {dimension_numbers = #tpu.dot_dimension_numbers<[1], [0], [0], [1], [0, 0, 1, 1], [], []>} : vector<16x768xbf16>, vector<768x512xbf16>, vector<16x512xf32> -> vector<16x512xf32>
    %c0_16 = arith.constant 0 : index
    %c0_17 = arith.constant 0 : index
    %25 = vector.load %arg6[%c0_16, %c0_17] : memref<1x512xf32, #tpu.memory_space<vmem>>, vector<1x512xf32>
    %26 = vector.broadcast %25 : vector<1x512xf32> to vector<16x512xf32>
    %27 = arith.addf %24, %26 : vector<16x512xf32>
    %cst_18 = arith.constant 0.000000e+00 : f32
    %28 = vector.broadcast %cst_18 : f32 to vector<16x512xf32>
    %29 = arith.maximumf %27, %28 : vector<16x512xf32>
    %30 = arith.truncf %29 : vector<16x512xf32> to vector<16x512xbf16>
    %c2 = arith.constant 2 : index
    %c0_19 = arith.constant 0 : index
    %c0_20 = arith.constant 0 : index
    %31 = vector.load %arg0[%c2, %c0_19, %c0_20] : memref<3x32x16xbf16, #tpu.memory_space<vmem>>, vector<1x32x16xbf16>
    %32 = vector.shape_cast %31 : vector<1x32x16xbf16> to vector<32x16xbf16>
    %cst_21 = arith.constant dense<0.000000e+00> : vector<32x512xf32>
    %33 = tpu.matmul %32, %30, %cst_21 {dimension_numbers = #tpu.dot_dimension_numbers<[1], [0], [0], [1], [0, 0, 1, 1], [], []>} : vector<32x16xbf16>, vector<16x512xbf16>, vector<32x512xf32> -> vector<32x512xf32>
    %34 = arith.truncf %33 : vector<32x512xf32> to vector<32x512xbf16>
    %35 = vector.extract_strided_slice %34 {offsets = [0, 0], sizes = [16, 512], strides = [1, 1]} : vector<32x512xbf16> to vector<16x512xbf16>
    %36 = vector.extract_strided_slice %34 {offsets = [16, 0], sizes = [16, 512], strides = [1, 1]} : vector<32x512xbf16> to vector<16x512xbf16>
    %37 = tpu.concatenate %30, %35, %36 in 1 : vector<16x512xbf16>, vector<16x512xbf16>, vector<16x512xbf16> -> vector<16x1536xbf16>
    %c0_22 = arith.constant 0 : index
    %c0_23 = arith.constant 0 : index
    %38 = vector.load %arg7[%c0_22, %c0_23] : memref<1536x256xbf16, #tpu.memory_space<vmem>>, vector<1536x256xbf16>
    %cst_24 = arith.constant dense<0.000000e+00> : vector<16x256xf32>
    %39 = tpu.matmul %37, %38, %cst_24 {dimension_numbers = #tpu.dot_dimension_numbers<[1], [0], [0], [1], [0, 0, 1, 1], [], []>} : vector<16x1536xbf16>, vector<1536x256xbf16>, vector<16x256xf32> -> vector<16x256xf32>
    %c0_25 = arith.constant 0 : index
    %c0_26 = arith.constant 0 : index
    %40 = vector.load %arg8[%c0_25, %c0_26] : memref<1x256xf32, #tpu.memory_space<vmem>>, vector<1x256xf32>
    %41 = vector.broadcast %40 : vector<1x256xf32> to vector<16x256xf32>
    %42 = arith.addf %39, %41 : vector<16x256xf32>
    %cst_27 = arith.constant 0.000000e+00 : f32
    %43 = vector.broadcast %cst_27 : f32 to vector<16x256xf32>
    %44 = arith.maximumf %42, %43 : vector<16x256xf32>
    %c0_28 = arith.constant 0 : index
    %c0_29 = arith.constant 0 : index
    %45 = vector.load %arg2[%c0_28, %c0_29] : memref<8x16xf32, #tpu.memory_space<vmem>>, vector<8x16xf32>
    %cst_30 = arith.constant dense<0.000000e+00> : vector<8x256xf32>
    %46 = tpu.matmul %45, %44, %cst_30 {dimension_numbers = #tpu.dot_dimension_numbers<[1], [0], [0], [1], [0, 0, 1, 1], [], []>} : vector<8x16xf32>, vector<16x256xf32>, vector<8x256xf32> -> vector<8x256xf32>
    %47 = arith.truncf %46 : vector<8x256xf32> to vector<8x256xbf16>
    %c0_31 = arith.constant 0 : index
    %c0_32 = arith.constant 0 : index
    %48 = vector.load %arg9[%c0_31, %c0_32] : memref<256x256xbf16, #tpu.memory_space<vmem>>, vector<256x256xbf16>
    %cst_33 = arith.constant dense<0.000000e+00> : vector<8x256xf32>
    %49 = tpu.matmul %47, %48, %cst_33 {dimension_numbers = #tpu.dot_dimension_numbers<[1], [0], [0], [1], [0, 0, 1, 1], [], []>} : vector<8x256xbf16>, vector<256x256xbf16>, vector<8x256xf32> -> vector<8x256xf32>
    %c0_34 = arith.constant 0 : index
    %c0_35 = arith.constant 0 : index
    %50 = vector.load %arg10[%c0_34, %c0_35] : memref<1x256xf32, #tpu.memory_space<vmem>>, vector<1x256xf32>
    %51 = vector.broadcast %50 : vector<1x256xf32> to vector<8x256xf32>
    %52 = arith.addf %49, %51 : vector<8x256xf32>
    %c0_36 = arith.constant 0 : index
    %c0_37 = arith.constant 0 : index
    %53 = vector.load %arg11[%c0_36, %c0_37] : memref<8x256xf32, #tpu.memory_space<vmem>>, vector<8x256xf32>
    tpu.vector_store %arg11[%c0_36, %c0_37], %52 {strides = array<i32>} : memref<8x256xf32, #tpu.memory_space<vmem>>, vector<8x256xf32>,
    return
  }
}

</mosaic_0001>

<llo_original>
// kernel: tpu_custom_call.1
$region0: #{tpu_custom_call.1}
  #allocation0 [shape = 'u32[]', space=smem, size = 0x4, offset = 0x4, fixed_abs, tag = 'smem constant byte address 0x4 - core index']
  #allocation1 [shape = 'u32[144,128]{1,0:T(1,128)}', space=vmem, size = 0x12000, scoped, tag = 'internal scratch']
  %s0 = inlined_call_operand.vmem [shape: bf16[3,32,16], index: 0, kind: input, shape index: {}]
  %s1 = inlined_call_operand.vmem [shape: bf16[16,128], index: 1, kind: input, shape index: {}]
  %s2 = inlined_call_operand.vmem [shape: f32[8,16], index: 2, kind: input, shape index: {}]
  %s3 = inlined_call_operand.hbm [shape: bf16[384,256], index: 3, kind: input, shape index: {}]
  %s4 = inlined_call_operand.vmem [shape: f32[1,256], index: 4, kind: input, shape index: {}]
  %s5 = inlined_call_operand.hbm [shape: bf16[768,512], index: 5, kind: input, shape index: {}]
  %s6 = inlined_call_operand.vmem [shape: f32[1,512], index: 6, kind: input, shape index: {}]
  %s7 = inlined_call_operand.hbm [shape: bf16[1536,256], index: 7, kind: input, shape index: {}]
  %s8 = inlined_call_operand.vmem [shape: f32[1,256], index: 8, kind: input, shape index: {}]
  %s9 = inlined_call_operand.hbm [shape: bf16[256,256], index: 9, kind: input, shape index: {}]
  %s10 = inlined_call_operand.vmem [shape: f32[1,256], index: 10, kind: input, shape index: {}]
  %s11 = inlined_call_operand.hbm [shape: f32[8,256], index: 11, kind: output, shape index: {}]
  %s12 = sld [smem:[#allocation0]]
  $region70: #{tpu_custom_call.1} parent=0
    _
  %s14 = ssub.s32 1, %s12
  %s15 = scalar_select 0, %s14, %s12
  $region1: #{tpu_custom_call.1} parent=0
    #allocation2 [shape = 'u8[196608]{0}', space=vmem, size = 0x30000, scoped, tag = 'input window, operand 3, single buffered']
    #allocation3 [shape = 's32[1]{0}', space=sflag, size = 0x4, scoped, tag = 'scoped memory for tpu_custom_call.1']
    #allocation4 [shape = 's32[1]{0}', space=sflag, size = 0x4, scoped, tag = 'scoped memory for tpu_custom_call.1']
    #allocation5 [shape = 'u8[786432]{0}', space=vmem, size = 0xc0000, scoped, tag = 'input window, operand 5, single buffered']
    #allocation6 [shape = 's32[1]{0}', space=sflag, size = 0x4, scoped, tag = 'scoped memory for tpu_custom_call.1']
    #allocation7 [shape = 'u8[786432]{0}', space=vmem, size = 0xc0000, scoped, tag = 'input window, operand 7, single buffered']
    #allocation8 [shape = 'u8[131072]{0}', space=vmem, size = 0x20000, scoped, tag = 'input window, operand 9, single buffered']
    #allocation9 [shape = 's32[1]{0}', space=sflag, size = 0x4, scoped, tag = 'scoped memory for tpu_custom_call.1']
    #allocation10 [shape = 'u8[8192]{0}', space=vmem, size = 0x2000, scoped, tag = 'output window, operand 0, single buffered']
    %16 = vsyncpa [#allocation3], 0
    %17 = vsyncpa [#allocation6], 0
    %18 = vsyncpa [#allocation9], 0
    %19 = vsyncpa [#allocation4], 0
    // Predicated region
    $region2: #{tpu_custom_call.1} parent=1 // pred_check
      _
    $region3: #{tpu_custom_call.1} parent=1 // pred_check_branch
      %21 = sbr.rel (0) target = $region5
    $region4: #{tpu_custom_call.1} parent=1 // pred_region
      _
    $region5: #{tpu_custom_call.1} parent=1 // pred_fallthru
      _
    // Predicated region
    $region6: #{tpu_custom_call.1} parent=1 // pred_check
      _
    $region7: #{tpu_custom_call.1} parent=1 // pred_check_branch
      %23 = sbr.rel (0) target = $region9
    $region8: #{tpu_custom_call.1} parent=1 // pred_region
      _
    $region9: #{tpu_custom_call.1} parent=1 // pred_fallthru
      _
    // Predicated region
    $region10: #{tpu_custom_call.1} parent=1 // pred_check
      _
    $region11: #{tpu_custom_call.1} parent=1 // pred_check_branch
      %25 = sbr.rel (0) target = $region13
    $region12: #{tpu_custom_call.1} parent=1 // pred_region
      _
    $region13: #{tpu_custom_call.1} parent=1 // pred_fallthru
      _
    // Predicated region
    $region14: #{tpu_custom_call.1} parent=1 // pred_check
      _
    $region15: #{tpu_custom_call.1} parent=1 // pred_check_branch
      %27 = sbr.rel (0) target = $region17
    $region16: #{tpu_custom_call.1} parent=1 // pred_region
      %s29 = ssub.s32 6144, 6144
      %30 = vsyncadd [#allocation3], %s29
      %s31 = sshll.u32 [#allocation2], 4
      %s32 = int_to_ptr.vmem [resolvable:$true] %s31
      %37 = dma.hbm_to_vmem [thread:$0]  %s3, 6144, %s32, [#allocation3], 128, 128, 8
    $region17: #{tpu_custom_call.1} parent=1 // pred_fallthru
      _
    // Predicated region
    $region18: #{tpu_custom_call.1} parent=1 // pred_check
      _
    $region19: #{tpu_custom_call.1} parent=1 // pred_check_branch
      %39 = sbr.rel (0) target = $region21
    $region20: #{tpu_custom_call.1} parent=1 // pred_region
      _
    $region21: #{tpu_custom_call.1} parent=1 // pred_fallthru
      _
    // Predicated region
    $region22: #{tpu_custom_call.1} parent=1 // pred_check
      _
    $region23: #{tpu_custom_call.1} parent=1 // pred_check_branch
      %41 = sbr.rel (0) target = $region25
    $region24: #{tpu_custom_call.1} parent=1 // pred_region
      %s43 = ssub.s32 24576, 24576
      %44 = vsyncadd [#allocation6], %s43
      %s45 = sshll.u32 [#allocation5], 4
      %s46 = int_to_ptr.vmem [resolvable:$true] %s45
      %51 = dma.hbm_to_vmem [thread:$0]  %s5, 24576, %s46, [#allocation6], 256, 256, 16
    $region25: #{tpu_custom_call.1} parent=1 // pred_fallthru
      _
    // Predicated region
    $region26: #{tpu_custom_call.1} parent=1 // pred_check
      _
    $region27: #{tpu_custom_call.1} parent=1 // pred_check_branch
      %53 = sbr.rel (0) target = $region29
    $region28: #{tpu_custom_call.1} parent=1 // pred_region
      _
    $region29: #{tpu_custom_call.1} parent=1 // pred_fallthru
      _
    // Predicated region
    $region30: #{tpu_custom_call.1} parent=1 // pred_check
      _
    $region31: #{tpu_custom_call.1} parent=1 // pred_check_branch
      %55 = sbr.rel (0) target = $region33
    $region32: #{tpu_custom_call.1} parent=1 // pred_region
      %s57 = ssub.s32 24576, 24576
      %58 = vsyncadd [#allocation6], %s57
      %s59 = sshll.u32 [#allocation7], 4
      %s60 = int_to_ptr.vmem [resolvable:$true] %s59
      %65 = dma.hbm_to_vmem [thread:$0]  %s7, 24576, %s60, [#allocation6], 128, 128, 8
    $region33: #{tpu_custom_call.1} parent=1 // pred_fallthru
      _
    // Predicated region
    $region34: #{tpu_custom_call.1} parent=1 // pred_check
      _
    $region35: #{tpu_custom_call.1} parent=1 // pred_check_branch
      %67 = sbr.rel (0) target = $region37
    $region36: #{tpu_custom_call.1} parent=1 // pred_region
      _
    $region37: #{tpu_custom_call.1} parent=1 // pred_fallthru
      _
    // Predicated region
    $region38: #{tpu_custom_call.1} parent=1 // pred_check
      _
    $region39: #{tpu_custom_call.1} parent=1 // pred_check_branch
      %69 = sbr.rel (0) target = $region41
    $region40: #{tpu_custom_call.1} parent=1 // pred_region
      %s71 = ssub.s32 4096, 4096
      %72 = vsyncadd [#allocation9], %s71
      %s73 = sshll.u32 [#allocation8], 4
      %s74 = int_to_ptr.vmem [resolvable:$true] %s73
      %79 = dma.hbm_to_vmem [thread:$0]  %s9, 4096, %s74, [#allocation9], 128, 128, 8
    $region41: #{tpu_custom_call.1} parent=1 // pred_fallthru
      _
    // Predicated region
    $region42: #{tpu_custom_call.1} parent=1 // pred_check
      _
    $region43: #{tpu_custom_call.1} parent=1 // pred_check_branch
      %81 = sbr.rel (0) target = $region45
    $region44: #{tpu_custom_call.1} parent=1 // pred_region
      _
    $region45: #{tpu_custom_call.1} parent=1 // pred_fallthru
      _
    // Predicated region
    $region46: #{tpu_custom_call.1} parent=1 // pred_check
      _
    $region47: #{tpu_custom_call.1} parent=1 // pred_check_branch
      %83 = sbr.rel (0) target = $region49
    $region48: #{tpu_custom_call.1} parent=1 // pred_region
      %84 = dma.done [#allocation3], 6144
    $region49: #{tpu_custom_call.1} parent=1 // pred_fallthru
      _
    // Predicated region
    $region50: #{tpu_custom_call.1} parent=1 // pred_check
      _
    $region51: #{tpu_custom_call.1} parent=1 // pred_check_branch
      %86 = sbr.rel (0) target = $region53
    $region52: #{tpu_custom_call.1} parent=1 // pred_region
      %87 = dma.done [#allocation6], 24576
    $region53: #{tpu_custom_call.1} parent=1 // pred_fallthru
      _
    // Predicated region
    $region54: #{tpu_custom_call.1} parent=1 // pred_check
      _
    $region55: #{tpu_custom_call.1} parent=1 // pred_check_branch
      %89 = sbr.rel (0) target = $region57
    $region56: #{tpu_custom_call.1} parent=1 // pred_region
      %90 = dma.done [#allocation6], 24576
    $region57: #{tpu_custom_call.1} parent=1 // pred_fallthru
      _
    // Predicated region
    $region58: #{tpu_custom_call.1} parent=1 // pred_check
      _
    $region59: #{tpu_custom_call.1} parent=1 // pred_check_branch
      %92 = sbr.rel (0) target = $region61
    $region60: #{tpu_custom_call.1} parent=1 // pred_region
      %93 = dma.done [#allocation9], 4096
    $region61: #{tpu_custom_call.1} parent=1 // pred_fallthru
      _
    %v95 = vld [vmem:[%s1] sm:$0xf]
    %v96 = vld [vmem:[%s1 + $0x4] sm:$0xf]
    %v97 = vld [vmem:[%s0] sm:$0xf]
    %v98 = vld [vmem:[%s0 + $0x4] sm:$0xf]
    %v99 = vld [vmem:[%s0 + $0x8] sm:$0xf]
    %v100 = vld [vmem:[%s0 + $0xc] sm:$0xf]
    %v105 = vunpack.c.l.b16 %v97
    %v106 = vunpack.c.l.b16 %v98
    %v107 = vunpack.c.l.b16 %v99
    %v108 = vunpack.c.l.b16 %v100
    %v109 = vpack.c.b16 %v106, %v105
    %v110 = vpack.c.b16 %v108, %v107
    %v113 = vunpack.c.l.b16 %v95
    %v114 = vunpack.c.l.b16 %v96
    %v115 = vpack.c.b16 %v114, %v113
    %vm117 = vcmask 130048
    %v119 = vsel %vm117, %v109, 0
    %v122 = vsel %vm117, %v110, 0
    %124 = vmatprep.subr.bf16.mxu0 0
    %125 = vmatpush1.bf16.msra.mxu0 0
    %126 = vmatprep.subr.bf16.mxu0 0
    %127 = vmatpush1.bf16.msra.mxu0 0
    %128 = vmatprep.subr.bf16.mxu0 0
    %129 = vmatpush1.bf16.msra.mxu0 0
    %130 = vmatprep.subr.bf16.mxu0 0
    %131 = vmatpush1.bf16.msra.mxu0 0
    %132 = vmatprep.subr.bf16.mxu0 0
    %133 = vmatpush1.bf16.msra.mxu0 0
    %134 = vmatprep.subr.bf16.mxu0 0
    %135 = vmatpush1.bf16.msra.mxu0 0
    %136 = vmatprep.subr.bf16.mxu0 0
    %137 = vmatpush1.bf16.msra.mxu0 0
    %138 = vmatprep.subr.bf16.mxu0 0
    %139 = vmatpush1.bf16.msra.mxu0 %v115
    %140 = vmatprep.subr.bf16.mxu0 0
    %141 = vmatpush2.bf16.msra.mxu0 0
    %142 = vmatprep.subr.bf16.mxu0 0
    %143 = vmatpush2.bf16.msra.mxu0 0
    %144 = vmatprep.subr.bf16.mxu0 0
    %145 = vmatpush2.bf16.msra.mxu0 0
    %146 = vmatprep.subr.bf16.mxu0 0
    %147 = vmatpush2.bf16.msra.mxu0 0
    %148 = vmatprep.subr.bf16.mxu0 0
    %149 = vmatpush2.bf16.msra.mxu0 0
    %150 = vmatprep.subr.bf16.mxu0 0
    %151 = vmatpush2.bf16.msra.mxu0 0
    %152 = vmatprep.subr.bf16.mxu0 0
    %153 = vmatpush2.bf16.msra.mxu0 0
    %154 = vmatprep.subr.bf16.mxu0 0
    %155 = vmatpush2.bf16.msra.mxu0 0
    %156 = vmatprep.mubr.bf16.mxu0 0
    %157 = vmatmul.mubr.bf16.gmra.mxu0 %v119
    %v158 = vpop.f32.mrf.mxu0
    %v159 = vadd.f32 0.0, %v158
    %v160 = vpop.f32.mrf.mxu0
    %v161 = vpop.f32.mrf.mxu0
    %v162 = vadd.f32 0.0, %v161
    %v163 = vpop.f32.mrf.mxu0
    %164 = vmatprep.mubr.bf16.mxu0 0
    %165 = vmatmul.mubr.bf16.gmra.mxu0 %v122
    %v166 = vpop.f32.mrf.mxu0
    %v167 = vadd.f32 0.0, %v166
    %v168 = vpop.f32.mrf.mxu0
    %v169 = vpop.f32.mrf.mxu0
    %v170 = vadd.f32 0.0, %v169
    %v171 = vpop.f32.mrf.mxu0
    %172 = vdwg.mxu0
    %v173 = vpack.c.bf16 %v162, %v159
    %v174 = vpack.c.bf16 %v170, %v167
    %v175 = vld [vmem:[#allocation2] sm:$0xff]
    %v176 = vld [vmem:[#allocation2 + $0x8] sm:$0xff]
    %v177 = vld [vmem:[#allocation2 + $0x10] sm:$0xff]
    %v178 = vld [vmem:[#allocation2 + $0x18] sm:$0xff]
    %v179 = vld [vmem:[#allocation2 + $0x20] sm:$0xff]
    %v180 = vld [vmem:[#allocation2 + $0x28] sm:$0xff]
    %v181 = vld [vmem:[#allocation2 + $0x30] sm:$0xff]
    %v182 = vld [vmem:[#allocation2 + $0x38] sm:$0xff]
    %v183 = vld [vmem:[#allocation2 + $0x40] sm:$0xff]
    %v184 = vld [vmem:[#allocation2 + $0x48] sm:$0xff]
    %v185 = vld [vmem:[#allocation2 + $0x50] sm:$0xff]
    %v186 = vld [vmem:[#allocation2 + $0x58] sm:$0xff]
    %v187 = vld [vmem:[#allocation2 + $0x60] sm:$0xff]
    %v188 = vld [vmem:[#allocation2 + $0x68] sm:$0xff]
    %v189 = vld [vmem:[#allocation2 + $0x70] sm:$0xff]
    %v190 = vld [vmem:[#allocation2 + $0x78] sm:$0xff]
    %v191 = vld [vmem:[#allocation2 + $0x80] sm:$0xff]
    %v192 = vld [vmem:[#allocation2 + $0x88] sm:$0xff]
    %v193 = vld [vmem:[#allocation2 + $0x90] sm:$0xff]
    %v194 = vld [vmem:[#allocation2 + $0x98] sm:$0xff]
    %v195 = vld [vmem:[#allocation2 + $0xa0] sm:$0xff]
    %v196 = vld [vmem:[#allocation2 + $0xa8] sm:$0xff]
    %v197 = vld [vmem:[#allocation2 + $0xb0] sm:$0xff]
    %v198 = vld [vmem:[#allocation2 + $0xb8] sm:$0xff]
    %v199 = vld [vmem:[#allocation2 + $0xc0] sm:$0xff]
    %v200 = vld [vmem:[#allocation2 + $0xc8] sm:$0xff]
    %v201 = vld [vmem:[#allocation2 + $0xd0] sm:$0xff]
    %v202 = vld [vmem:[#allocation2 + $0xd8] sm:$0xff]
    %v203 = vld [vmem:[#allocation2 + $0xe0] sm:$0xff]
    %v204 = vld [vmem:[#allocation2 + $0xe8] sm:$0xff]
    %v205 = vld [vmem:[#allocation2 + $0xf0] sm:$0xff]
    %v206 = vld [vmem:[#allocation2 + $0xf8] sm:$0xff]
    %v207 = vld [vmem:[#allocation2 + $0x100] sm:$0xff]
    %v208 = vld [vmem:[#allocation2 + $0x108] sm:$0xff]
    %v209 = vld [vmem:[#allocation2 + $0x110] sm:$0xff]
    %v210 = vld [vmem:[#allocation2 + $0x118] sm:$0xff]
    %v211 = vld [vmem:[#allocation2 + $0x120] sm:$0xff]
    %v212 = vld [vmem:[#allocation2 + $0x128] sm:$0xff]
    %v213 = vld [vmem:[#allocation2 + $0x130] sm:$0xff]
    %v214 = vld [vmem:[#allocation2 + $0x138] sm:$0xff]
    %v215 = vld [vmem:[#allocation2 + $0x140] sm:$0xff]
    %v216 = vld [vmem:[#allocation2 + $0x148] sm:$0xff]
    %v217 = vld [vmem:[#allocation2 + $0x150] sm:$0xff]
    %v218 = vld [vmem:[#allocation2 + $0x158] sm:$0xff]
    %v219 = vld [vmem:[#allocation2 + $0x160] sm:$0xff]
    %v220 = vld [vmem:[#allocation2 + $0x168] sm:$0xff]
    %v221 = vld [vmem:[#allocation2 + $0x170] sm:$0xff]
    %v222 = vld [vmem:[#allocation2 + $0x178] sm:$0xff]
    %v223 = vld [vmem:[%s4] sm:$0x3]
    %v225 = vlaneseq
    %v226 = vshrl.u32 %v225, 7
    %v227 = vsub.s32 0, %v226
    %v228 = vrot.slane %v223, %v227
    %v229 = vlaneseq
    %v230 = vshrl.u32 %v229, 7
    %v231 = vsub.s32 1, %v230
    %v232 = vrot.slane %v223, %v231
    %v283 = vunpack.c.l.b16 %v175
    %v284 = vunpack.c.h.b16 %v175
    %v285 = vunpack.c.l.b16 %v176
    %v286 = vunpack.c.h.b16 %v176
    %v287 = vunpack.c.l.b16 %v177
    %v288 = vunpack.c.h.b16 %v177
    %v289 = vunpack.c.l.b16 %v178
    %v290 = vunpack.c.h.b16 %v178
    %v291 = vunpack.c.l.b16 %v179
    %v292 = vunpack.c.h.b16 %v179
    %v293 = vunpack.c.l.b16 %v180
    %v294 = vunpack.c.h.b16 %v180
    %v295 = vunpack.c.l.b16 %v181
    %v296 = vunpack.c.h.b16 %v181
    %v297 = vunpack.c.l.b16 %v182
    %v298 = vunpack.c.h.b16 %v182
    %v299 = vunpack.c.l.b16 %v183
    %v300 = vunpack.c.h.b16 %v183
    %v301 = vunpack.c.l.b16 %v184
    %v302 = vunpack.c.h.b16 %v184
    %v303 = vunpack.c.l.b16 %v185
    %v304 = vunpack.c.h.b16 %v185
    %v305 = vunpack.c.l.b16 %v186
    %v306 = vunpack.c.h.b16 %v186
    %v307 = vunpack.c.l.b16 %v187
    %v308 = vunpack.c.h.b16 %v187
    %v309 = vunpack.c.l.b16 %v188
    %v310 = vunpack.c.h.b16 %v188
    %v311 = vunpack.c.l.b16 %v189
    %v312 = vunpack.c.h.b16 %v189
    %v313 = vunpack.c.l.b16 %v190
    %v314 = vunpack.c.h.b16 %v190
    %v315 = vunpack.c.l.b16 %v191
    %v316 = vunpack.c.h.b16 %v191
    %v317 = vunpack.c.l.b16 %v192
    %v318 = vunpack.c.h.b16 %v192
    %v319 = vunpack.c.l.b16 %v193
    %v320 = vunpack.c.h.b16 %v193
    %v321 = vunpack.c.l.b16 %v194
    %v322 = vunpack.c.h.b16 %v194
    %v323 = vunpack.c.l.b16 %v195
    %v324 = vunpack.c.h.b16 %v195
    %v325 = vunpack.c.l.b16 %v196
    %v326 = vunpack.c.h.b16 %v196
    %v327 = vunpack.c.l.b16 %v197
    %v328 = vunpack.c.h.b16 %v197
    %v329 = vunpack.c.l.b16 %v198
    %v330 = vunpack.c.h.b16 %v198
    %v331 = vunpack.c.l.b16 %v199
    %v332 = vunpack.c.h.b16 %v199
    %v333 = vunpack.c.l.b16 %v200
    %v334 = vunpack.c.h.b16 %v200
    %v335 = vunpack.c.l.b16 %v201
    %v336 = vunpack.c.h.b16 %v201
    %v337 = vunpack.c.l.b16 %v202
    %v338 = vunpack.c.h.b16 %v202
    %v339 = vunpack.c.l.b16 %v203
    %v340 = vunpack.c.h.b16 %v203
    %v341 = vunpack.c.l.b16 %v204
    %v342 = vunpack.c.h.b16 %v204
    %v343 = vunpack.c.l.b16 %v205
    %v344 = vunpack.c.h.b16 %v205
    %v345 = vunpack.c.l.b16 %v206
    %v346 = vunpack.c.h.b16 %v206
    %v347 = vunpack.c.l.b16 %v207
    %v348 = vunpack.c.h.b16 %v207
    %v349 = vunpack.c.l.b16 %v208
    %v350 = vunpack.c.h.b16 %v208
    %v351 = vunpack.c.l.b16 %v209
    %v352 = vunpack.c.h.b16 %v209
    %v353 = vunpack.c.l.b16 %v210
    %v354 = vunpack.c.h.b16 %v210
    %v355 = vunpack.c.l.b16 %v211
    %v356 = vunpack.c.h.b16 %v211
    %v357 = vunpack.c.l.b16 %v212
    %v358 = vunpack.c.h.b16 %v212
    %v359 = vunpack.c.l.b16 %v213
    %v360 = vunpack.c.h.b16 %v213
    %v361 = vunpack.c.l.b16 %v214
    %v362 = vunpack.c.h.b16 %v214
    %v363 = vunpack.c.l.b16 %v215
    %v364 = vunpack.c.h.b16 %v215
    %v365 = vunpack.c.l.b16 %v216
    %v366 = vunpack.c.h.b16 %v216
    %v367 = vunpack.c.l.b16 %v217
    %v368 = vunpack.c.h.b16 %v217
    %v369 = vunpack.c.l.b16 %v218
    %v370 = vunpack.c.h.b16 %v218
    %v371 = vunpack.c.l.b16 %v219
    %v372 = vunpack.c.h.b16 %v219
    %v373 = vunpack.c.l.b16 %v220
    %v374 = vunpack.c.h.b16 %v220
    %v375 = vunpack.c.l.b16 %v221
    %v376 = vunpack.c.h.b16 %v221
    %v377 = vunpack.c.l.b16 %v222
    %v378 = vunpack.c.h.b16 %v222
    %v379 = vpack.c.b16 %v285, %v283
    %v380 = vpack.c.b16 %v286, %v284
    %v381 = vpack.c.b16 %v289, %v287
    %v382 = vpack.c.b16 %v290, %v288
    %v383 = vpack.c.b16 %v293, %v291
    %v384 = vpack.c.b16 %v294, %v292
    %v385 = vpack.c.b16 %v297, %v295
    %v386 = vpack.c.b16 %v298, %v296
    %v387 = vpack.c.b16 %v301, %v299
    %v388 = vpack.c.b16 %v302, %v300
    %v389 = vpack.c.b16 %v305, %v303
    %v390 = vpack.c.b16 %v306, %v304
    %v391 = vpack.c.b16 %v309, %v307
    %v392 = vpack.c.b16 %v310, %v308
    %v393 = vpack.c.b16 %v313, %v311
    %v394 = vpack.c.b16 %v314, %v312
    %v395 = vpack.c.b16 %v317, %v315
    %v396 = vpack.c.b16 %v318, %v316
    %v397 = vpack.c.b16 %v321, %v319
    %v398 = vpack.c.b16 %v322, %v320
    %v399 = vpack.c.b16 %v325, %v323
    %v400 = vpack.c.b16 %v326, %v324
    %v401 = vpack.c.b16 %v329, %v327
    %v402 = vpack.c.b16 %v330, %v328
    %v403 = vpack.c.b16 %v333, %v331
    %v404 = vpack.c.b16 %v334, %v332
    %v405 = vpack.c.b16 %v337, %v335
    %v406 = vpack.c.b16 %v338, %v336
    %v407 = vpack.c.b16 %v341, %v339
    %v408 = vpack.c.b16 %v342, %v340
    %v409 = vpack.c.b16 %v345, %v343
    %v410 = vpack.c.b16 %v346, %v344
    %v411 = vpack.c.b16 %v349, %v347
    %v412 = vpack.c.b16 %v350, %v348
    %v413 = vpack.c.b16 %v353, %v351
    %v414 = vpack.c.b16 %v354, %v352
    %v415 = vpack.c.b16 %v357, %v355
    %v416 = vpack.c.b16 %v358, %v356
    %v417 = vpack.c.b16 %v361, %v359
    %v418 = vpack.c.b16 %v362, %v360
    %v419 = vpack.c.b16 %v365, %v363
    %v420 = vpack.c.b16 %v366, %v364
    %v421 = vpack.c.b16 %v369, %v367
    %v422 = vpack.c.b16 %v370, %v368
    %v423 = vpack.c.b16 %v373, %v371
    %v424 = vpack.c.b16 %v374, %v372
    %v425 = vpack.c.b16 %v377, %v375
    %v426 = vpack.c.b16 %v378, %v376
    %475 = vmatprep.subr.bf16.mxu0 %v394
    %476 = vmatpush1.bf16.msra.mxu0 %v393
    %477 = vmatprep.subr.bf16.mxu0 %v392
    %478 = vmatpush1.bf16.msra.mxu0 %v391
    %479 = vmatprep.subr.bf16.mxu0 %v390
    %480 = vmatpush1.bf16.msra.mxu0 %v389
    %481 = vmatprep.subr.bf16.mxu0 %v388
    %482 = vmatpush1.bf16.msra.mxu0 %v387
    %483 = vmatprep.subr.bf16.mxu0 %v386
    %484 = vmatpush1.bf16.msra.mxu0 %v385
    %485 = vmatprep.subr.bf16.mxu0 %v384
    %486 = vmatpush1.bf16.msra.mxu0 %v383
    %487 = vmatprep.subr.bf16.mxu0 %v382
    %488 = vmatpush1.bf16.msra.mxu0 %v381
    %489 = vmatprep.subr.bf16.mxu0 %v380
    %490 = vmatpush1.bf16.msra.mxu0 %v379
    %491 = vmatprep.subr.bf16.mxu0 %v410
    %492 = vmatpush2.bf16.msra.mxu0 %v409
    %493 = vmatprep.subr.bf16.mxu0 %v408
    %494 = vmatpush2.bf16.msra.mxu0 %v407
    %495 = vmatprep.subr.bf16.mxu0 %v406
    %496 = vmatpush2.bf16.msra.mxu0 %v405
    %497 = vmatprep.subr.bf16.mxu0 %v404
    %498 = vmatpush2.bf16.msra.mxu0 %v403
    %499 = vmatprep.subr.bf16.mxu0 %v402
    %500 = vmatpush2.bf16.msra.mxu0 %v401
    %501 = vmatprep.subr.bf16.mxu0 %v400
    %502 = vmatpush2.bf16.msra.mxu0 %v399
    %503 = vmatprep.subr.bf16.mxu0 %v398
    %504 = vmatpush2.bf16.msra.mxu0 %v397
    %505 = vmatprep.subr.bf16.mxu0 %v396
    %506 = vmatpush2.bf16.msra.mxu0 %v395
    %507 = vmatprep.mubr.bf16.mxu0 %v173
    %508 = vmatmul.mubr.bf16.gmra.mxu0 %v115
    %v509 = vpop.f32.mrf.mxu0
    %v510 = vadd.f32 %v228, %v509
    %v511 = vpop.f32.mrf.mxu0
    %v512 = vadd.f32 %v232, %v511
    %v513 = vpop.f32.mrf.mxu0
    %v514 = vadd.f32 %v228, %v513
    %v515 = vpop.f32.mrf.mxu0
    %v516 = vadd.f32 %v232, %v515
    %517 = vdwg.mxu0
    %518 = vmatprep.subr.bf16.mxu0 %v426
    %519 = vmatpush1.bf16.msra.mxu0 %v425
    %520 = vmatprep.subr.bf16.mxu0 %v424
    %521 = vmatpush1.bf16.msra.mxu0 %v423
    %522 = vmatprep.subr.bf16.mxu0 %v422
    %523 = vmatpush1.bf16.msra.mxu0 %v421
    %524 = vmatprep.subr.bf16.mxu0 %v420
    %525 = vmatpush1.bf16.msra.mxu0 %v419
    %526 = vmatprep.subr.bf16.mxu0 %v418
    %527 = vmatpush1.bf16.msra.mxu0 %v417
    %528 = vmatprep.subr.bf16.mxu0 %v416
    %529 = vmatpush1.bf16.msra.mxu0 %v415
    %530 = vmatprep.subr.bf16.mxu0 %v414
    %531 = vmatpush1.bf16.msra.mxu0 %v413
    %532 = vmatprep.subr.bf16.mxu0 %v412
    %533 = vmatpush1.bf16.msra.mxu0 %v411
    %534 = vmatprep.subr.bf16.mxu0 0
    %535 = vmatpush2.bf16.msra.mxu0 0
    %536 = vmatprep.subr.bf16.mxu0 0
    %537 = vmatpush2.bf16.msra.mxu0 0
    %538 = vmatprep.subr.bf16.mxu0 0
    %539 = vmatpush2.bf16.msra.mxu0 0
    %540 = vmatprep.subr.bf16.mxu0 0
    %541 = vmatpush2.bf16.msra.mxu0 0
    %542 = vmatprep.subr.bf16.mxu0 0
    %543 = vmatpush2.bf16.msra.mxu0 0
    %544 = vmatprep.subr.bf16.mxu0 0
    %545 = vmatpush2.bf16.msra.mxu0 0
    %546 = vmatprep.subr.bf16.mxu0 0
    %547 = vmatpush2.bf16.msra.mxu0 0
    %548 = vmatprep.subr.bf16.mxu0 0
    %549 = vmatpush2.bf16.msra.mxu0 0
    %550 = vmatprep.mubr.bf16.mxu0 0
    %551 = vmatmul.mubr.bf16.gmra.mxu0 %v174
    %v552 = vpop.f32.mrf.mxu0
    %v553 = vadd.f32 %v510, %v552
    %v554 = vpop.f32.mrf.mxu0
    %v555 = vadd.f32 %v512, %v554
    %v556 = vpop.f32.mrf.mxu0
    %v557 = vadd.f32 %v514, %v556
    %v558 = vpop.f32.mrf.mxu0
    %v559 = vadd.f32 %v516, %v558
    %560 = vdwg.mxu0
    %v561 = vmax.f32 %v553, 0.0
    %v562 = vmax.f32 %v555, 0.0
    %v563 = vmax.f32 %v557, 0.0
    %v564 = vmax.f32 %v559, 0.0
    %v565 = vpack.c.bf16 %v563, %v561
    %v566 = vpack.c.bf16 %v564, %v562
    %s567 = scalar_lea.vmem %s0, 16
    %v568 = vld [vmem:[%s567] sm:$0xf]
    %v569 = vld [vmem:[%s567 + $0x4] sm:$0xf]
    %v570 = vld [vmem:[%s567 + $0x8] sm:$0xf]
    %v571 = vld [vmem:[%s567 + $0xc] sm:$0xf]
    %v576 = vunpack.c.l.b16 %v568
    %v577 = vunpack.c.l.b16 %v569
    %v578 = vunpack.c.l.b16 %v570
    %v579 = vunpack.c.l.b16 %v571
    %v580 = vpack.c.b16 %v577, %v576
    %v581 = vpack.c.b16 %v579, %v578
    %v583 = vsel %vm117, %v580, 0
    %v586 = vsel %vm117, %v581, 0
    %588 = vmatprep.subr.bf16.mxu0 0
    %589 = vmatpush1.bf16.msra.mxu0 0
    %590 = vmatprep.subr.bf16.mxu0 0
    %591 = vmatpush1.bf16.msra.mxu0 0
    %592 = vmatprep.subr.bf16.mxu0 0
    %593 = vmatpush1.bf16.msra.mxu0 0
    %594 = vmatprep.subr.bf16.mxu0 0
    %595 = vmatpush1.bf16.msra.mxu0 0
    %596 = vmatprep.subr.bf16.mxu0 0
    %597 = vmatpush1.bf16.msra.mxu0 0
    %598 = vmatprep.subr.bf16.mxu0 0
    %599 = vmatpush1.bf16.msra.mxu0 0
    %600 = vmatprep.subr.bf16.mxu0 0
    %601 = vmatpush1.bf16.msra.mxu0 0
    %602 = vmatprep.subr.bf16.mxu0 %v566
    %603 = vmatpush1.bf16.msra.mxu0 %v565
    %604 = vmatprep.subr.bf16.mxu0 0
    %605 = vmatpush2.bf16.msra.mxu0 0
    %606 = vmatprep.subr.bf16.mxu0 0
    %607 = vmatpush2.bf16.msra.mxu0 0
    %608 = vmatprep.subr.bf16.mxu0 0
    %609 = vmatpush2.bf16.msra.mxu0 0
    %610 = vmatprep.subr.bf16.mxu0 0
    %611 = vmatpush2.bf16.msra.mxu0 0
    %612 = vmatprep.subr.bf16.mxu0 0
    %613 = vmatpush2.bf16.msra.mxu0 0
    %614 = vmatprep.subr.bf16.mxu0 0
    %615 = vmatpush2.bf16.msra.mxu0 0
    %616 = vmatprep.subr.bf16.mxu0 0
    %617 = vmatpush2.bf16.msra.mxu0 0
    %618 = vmatprep.subr.bf16.mxu0 0
    %619 = vmatpush2.bf16.msra.mxu0 0
    %620 = vmatprep.mubr.bf16.mxu0 0
    %621 = vmatmul.mubr.bf16.gmra.mxu0 %v583
    %v622 = vpop.f32.mrf.mxu0
    %v623 = vadd.f32 0.0, %v622
    %v624 = vpop.f32.mrf.mxu0
    %v625 = vadd.f32 0.0, %v624
    %v626 = vpop.f32.mrf.mxu0
    %v627 = vadd.f32 0.0, %v626
    %v628 = vpop.f32.mrf.mxu0
    %v629 = vadd.f32 0.0, %v628
    %630 = vmatprep.mubr.bf16.mxu0 0
    %631 = vmatmul.mubr.bf16.gmra.mxu0 %v586
    %v632 = vpop.f32.mrf.mxu0
    %v633 = vadd.f32 0.0, %v632
    %v634 = vpop.f32.mrf.mxu0
    %v635 = vadd.f32 0.0, %v634
    %v636 = vpop.f32.mrf.mxu0
    %v637 = vadd.f32 0.0, %v636
    %v638 = vpop.f32.mrf.mxu0
    %v639 = vadd.f32 0.0, %v638
    %640 = vdwg.mxu0
    %v641 = vpack.c.bf16 %v627, %v623
    %v642 = vpack.c.bf16 %v629, %v625
    %v643 = vpack.c.bf16 %v637, %v633
    %v644 = vpack.c.bf16 %v639, %v635
    %v645 = vld [vmem:[#allocation5] sm:$0xff]
    %v646 = vld [vmem:[#allocation5 + $0x8] sm:$0xff]
    %v647 = vld [vmem:[#allocation5 + $0x10] sm:$0xff]
    %v648 = vld [vmem:[#allocation5 + $0x18] sm:$0xff]
    %v649 = vld [vmem:[#allocation5 + $0x20] sm:$0xff]
    %v650 = vld [vmem:[#allocation5 + $0x28] sm:$0xff]
    %v651 = vld [vmem:[#allocation5 + $0x30] sm:$0xff]
    %v652 = vld [vmem:[#allocation5 + $0x38] sm:$0xff]
    %v653 = vld [vmem:[#allocation5 + $0x40] sm:$0xff]
    %v654 = vld [vmem:[#allocation5 + $0x48] sm:$0xff]
    %v655 = vld [vmem:[#allocation5 + $0x50] sm:$0xff]
    %v656 = vld [vmem:[#allocation5 + $0x58] sm:$0xff]
    %v657 = vld [vmem:[#allocation5 + $0x60] sm:$0xff]
    %v658 = vld [vmem:[#allocation5 + $0x68] sm:$0xff]
    %v659 = vld [vmem:[#allocation5 + $0x70] sm:$0xff]
    %v660 = vld [vmem:[#allocation5 + $0x78] sm:$0xff]
    %v661 = vld [vmem:[#allocation5 + $0x80] sm:$0xff]
    %v662 = vld [vmem:[#allocation5 + $0x88] sm:$0xff]
    %v663 = vld [vmem:[#allocation5 + $0x90] sm:$0xff]
    %v664 = vld [vmem:[#allocation5 + $0x98] sm:$0xff]
    %v665 = vld [vmem:[#allocation5 + $0xa0] sm:$0xff]
    %v666 = vld [vmem:[#allocation5 + $0xa8] sm:$0xff]
    %v667 = vld [vmem:[#allocation5 + $0xb0] sm:$0xff]
    %v668 = vld [vmem:[#allocation5 + $0xb8] sm:$0xff]
    %v669 = vld [vmem:[#allocation5 + $0xc0] sm:$0xff]
    %v670 = vld [vmem:[#allocation5 + $0xc8] sm:$0xff]
    %v671 = vld [vmem:[#allocation5 + $0xd0] sm:$0xff]
    %v672 = vld [vmem:[#allocation5 + $0xd8] sm:$0xff]
    %v673 = vld [vmem:[#allocation5 + $0xe0] sm:$0xff]
    %v674 = vld [vmem:[#allocation5 + $0xe8] sm:$0xff]
    %v675 = vld [vmem:[#allocation5 + $0xf0] sm:$0xff]
    %v676 = vld [vmem:[#allocation5 + $0xf8] sm:$0xff]
    %v677 = vld [vmem:[#allocation5 + $0x100] sm:$0xff]
    %v678 = vld [vmem:[#allocation5 + $0x108] sm:$0xff]
    %v679 = vld [vmem:[#allocation5 + $0x110] sm:$0xff]
    %v680 = vld [vmem:[#allocation5 + $0x118] sm:$0xff]
    %v681 = vld [vmem:[#allocation5 + $0x120] sm:$0xff]
    %v682 = vld [vmem:[#allocation5 + $0x128] sm:$0xff]
    %v683 = vld [vmem:[#allocation5 + $0x130] sm:$0xff]
    %v684 = vld [vmem:[#allocation5 + $0x138] sm:$0xff]
    %v685 = vld [vmem:[#allocation5 + $0x140] sm:$0xff]
    %v686 = vld [vmem:[#allocation5 + $0x148] sm:$0xff]
    %v687 = vld [vmem:[#allocation5 + $0x150] sm:$0xff]
    %v688 = vld [vmem:[#allocation5 + $0x158] sm:$0xff]
    %v689 = vld [vmem:[#allocation5 + $0x160] sm:$0xff]
    %v690 = vld [vmem:[#allocation5 + $0x168] sm:$0xff]
    %v691 = vld [vmem:[#allocation5 + $0x170] sm:$0xff]
    %v692 = vld [vmem:[#allocation5 + $0x178] sm:$0xff]
    %v693 = vld [vmem:[#allocation5 + $0x180] sm:$0xff]
    %v694 = vld [vmem:[#allocation5 + $0x188] sm:$0xff]
    %v695 = vld [vmem:[#allocation5 + $0x190] sm:$0xff]
    %v696 = vld [vmem:[#allocation5 + $0x198] sm:$0xff]
    %v697 = vld [vmem:[#allocation5 + $0x1a0] sm:$0xff]
    %v698 = vld [vmem:[#allocation5 + $0x1a8] sm:$0xff]
    %v699 = vld [vmem:[#allocation5 + $0x1b0] sm:$0xff]
    %v700 = vld [vmem:[#allocation5 + $0x1b8] sm:$0xff]
    %v701 = vld [vmem:[#allocation5 + $0x1c0] sm:$0xff]
    %v702 = vld [vmem:[#allocation5 + $0x1c8] sm:$0xff]
    %v703 = vld [vmem:[#allocation5 + $0x1d0] sm:$0xff]
    %v704 = vld [vmem:[#allocation5 + $0x1d8] sm:$0xff]
    %v705 = vld [vmem:[#allocation5 + $0x1e0] sm:$0xff]
    %v706 = vld [vmem:[#allocation5 + $0x1e8] sm:$0xff]
    %v707 = vld [vmem:[#allocation5 + $0x1f0] sm:$0xff]
    %v708 = vld [vmem:[#allocation5 + $0x1f8] sm:$0xff]
    %v709 = vld [vmem:[#allocation5 + $0x200] sm:$0xff]
    %v710 = vld [vmem:[#allocation5 + $0x208] sm:$0xff]
    %v711 = vld [vmem:[#allocation5 + $0x210] sm:$0xff]
    %v712 = vld [vmem:[#allocation5 + $0x218] sm:$0xff]
    %v713 = vld [vmem:[#allocation5 + $0x220] sm:$0xff]
    %v714 = vld [vmem:[#allocation5 + $0x228] sm:$0xff]
    %v715 = vld [vmem:[#allocation5 + $0x230] sm:$0xff]
    %v716 = vld [vmem:[#allocation5 + $0x238] sm:$0xff]
    %v717 = vld [vmem:[#allocation5 + $0x240] sm:$0xff]
    %v718 = vld [vmem:[#allocation5 + $0x248] sm:$0xff]
    %v719 = vld [vmem:[#allocation5 + $0x250] sm:$0xff]
    %v720 = vld [vmem:[#allocation5 + $0x258] sm:$0xff]
    %v721 = vld [vmem:[#allocation5 + $0x260] sm:$0xff]
    %v722 = vld [vmem:[#allocation5 + $0x268] sm:$0xff]
    %v723 = vld [vmem:[#allocation5 + $0x270] sm:$0xff]
    %v724 = vld [vmem:[#allocation5 + $0x278] sm:$0xff]
    %v725 = vld [vmem:[#allocation5 + $0x280] sm:$0xff]
    %v726 = vld [vmem:[#allocation5 + $0x288] sm:$0xff]
    %v727 = vld [vmem:[#allocation5 + $0x290] sm:$0xff]
    %v728 = vld [vmem:[#allocation5 + $0x298] sm:$0xff]
    %v729 = vld [vmem:[#allocation5 + $0x2a0] sm:$0xff]
    %v730 = vld [vmem:[#allocation5 + $0x2a8] sm:$0xff]
    %v731 = vld [vmem:[#allocation5 + $0x2b0] sm:$0xff]
    %v732 = vld [vmem:[#allocation5 + $0x2b8] sm:$0xff]
    %v733 = vld [vmem:[#allocation5 + $0x2c0] sm:$0xff]
    %v734 = vld [vmem:[#allocation5 + $0x2c8] sm:$0xff]
    %v735 = vld [vmem:[#allocation5 + $0x2d0] sm:$0xff]
    %v736 = vld [vmem:[#allocation5 + $0x2d8] sm:$0xff]
    %v737 = vld [vmem:[#allocation5 + $0x2e0] sm:$0xff]
    %v738 = vld [vmem:[#allocation5 + $0x2e8] sm:$0xff]
    %v739 = vld [vmem:[#allocation5 + $0x2f0] sm:$0xff]
    %v740 = vld [vmem:[#allocation5 + $0x2f8] sm:$0xff]
    %v741 = vld [vmem:[#allocation5 + $0x300] sm:$0xff]
    %v742 = vld [vmem:[#allocation5 + $0x308] sm:$0xff]
    %v743 = vld [vmem:[#allocation5 + $0x310] sm:$0xff]
    %v744 = vld [vmem:[#allocation5 + $0x318] sm:$0xff]
    %v745 = vld [vmem:[#allocation5 + $0x320] sm:$0xff]
    %v746 = vld [vmem:[#allocation5 + $0x328] sm:$0xff]
    %v747 = vld [vmem:[#allocation5 + $0x330] sm:$0xff]
    %v748 = vld [vmem:[#allocation5 + $0x338] sm:$0xff]
    %v749 = vld [vmem:[#allocation5 + $0x340] sm:$0xff]
    %v750 = vld [vmem:[#allocation5 + $0x348] sm:$0xff]
    %v751 = vld [vmem:[#allocation5 + $0x350] sm:$0xff]
    %v752 = vld [vmem:[#allocation5 + $0x358] sm:$0xff]
    %v753 = vld [vmem:[#allocation5 + $0x360] sm:$0xff]
    %v754 = vld [vmem:[#allocation5 + $0x368] sm:$0xff]
    %v755 = vld [vmem:[#allocation5 + $0x370] sm:$0xff]
    %v756 = vld [vmem:[#allocation5 + $0x378] sm:$0xff]
    %v757 = vld [vmem:[#allocation5 + $0x380] sm:$0xff]
    %v758 = vld [vmem:[#allocation5 + $0x388] sm:$0xff]
    %v759 = vld [vmem:[#allocation5 + $0x390] sm:$0xff]
    %v760 = vld [vmem:[#allocation5 + $0x398] sm:$0xff]
    %v761 = vld [vmem:[#allocation5 + $0x3a0] sm:$0xff]
    %v762 = vld [vmem:[#allocation5 + $0x3a8] sm:$0xff]
    %v763 = vld [vmem:[#allocation5 + $0x3b0] sm:$0xff]
    %v764 = vld [vmem:[#allocation5 + $0x3b8] sm:$0xff]
    %v765 = vld [vmem:[#allocation5 + $0x3c0] sm:$0xff]
    %v766 = vld [vmem:[#allocation5 + $0x3c8] sm:$0xff]
    %v767 = vld [vmem:[#allocation5 + $0x3d0] sm:$0xff]
    %v768 = vld [vmem:[#allocation5 + $0x3d8] sm:$0xff]
    %v769 = vld [vmem:[#allocation5 + $0x3e0] sm:$0xff]
    %v770 = vld [vmem:[#allocation5 + $0x3e8] sm:$0xff]
    %v771 = vld [vmem:[#allocation5 + $0x3f0] sm:$0xff]
    %v772 = vld [vmem:[#allocation5 + $0x3f8] sm:$0xff]
    %v773 = vld [vmem:[#allocation5 + $0x400] sm:$0xff]
    %v774 = vld [vmem:[#allocation5 + $0x408] sm:$0xff]
    %v775 = vld [vmem:[#allocation5 + $0x410] sm:$0xff]
    %v776 = vld [vmem:[#allocation5 + $0x418] sm:$0xff]
    %v777 = vld [vmem:[#allocation5 + $0x420] sm:$0xff]
    %v778 = vld [vmem:[#allocation5 + $0x428] sm:$0xff]
    %v779 = vld [vmem:[#allocation5 + $0x430] sm:$0xff]
    %v780 = vld [vmem:[#allocation5 + $0x438] sm:$0xff]
    %v781 = vld [vmem:[#allocation5 + $0x440] sm:$0xff]
    %v782 = vld [vmem:[#allocation5 + $0x448] sm:$0xff]
    %v783 = vld [vmem:[#allocation5 + $0x450] sm:$0xff]
    %v784 = vld [vmem:[#allocation5 + $0x458] sm:$0xff]
    %v785 = vld [vmem:[#allocation5 + $0x460] sm:$0xff]
    %v786 = vld [vmem:[#allocation5 + $0x468] sm:$0xff]
    %v787 = vld [vmem:[#allocation5 + $0x470] sm:$0xff]
    %v788 = vld [vmem:[#allocation5 + $0x478] sm:$0xff]
    %v789 = vld [vmem:[#allocation5 + $0x480] sm:$0xff]
    %v790 = vld [vmem:[#allocation5 + $0x488] sm:$0xff]
    %v791 = vld [vmem:[#allocation5 + $0x490] sm:$0xff]
    %v792 = vld [vmem:[#allocation5 + $0x498] sm:$0xff]
    %v793 = vld [vmem:[#allocation5 + $0x4a0] sm:$0xff]
    %v794 = vld [vmem:[#allocation5 + $0x4a8] sm:$0xff]
    %v795 = vld [vmem:[#allocation5 + $0x4b0] sm:$0xff]
    %v796 = vld [vmem:[#allocation5 + $0x4b8] sm:$0xff]
    %v797 = vld [vmem:[#allocation5 + $0x4c0] sm:$0xff]
    %v798 = vld [vmem:[#allocation5 + $0x4c8] sm:$0xff]
    %v799 = vld [vmem:[#allocation5 + $0x4d0] sm:$0xff]
    %v800 = vld [vmem:[#allocation5 + $0x4d8] sm:$0xff]
    %v801 = vld [vmem:[#allocation5 + $0x4e0] sm:$0xff]
    %v802 = vld [vmem:[#allocation5 + $0x4e8] sm:$0xff]
    %v803 = vld [vmem:[#allocation5 + $0x4f0] sm:$0xff]
    %v804 = vld [vmem:[#allocation5 + $0x4f8] sm:$0xff]
    %v805 = vld [vmem:[#allocation5 + $0x500] sm:$0xff]
    %v806 = vld [vmem:[#allocation5 + $0x508] sm:$0xff]
    %v807 = vld [vmem:[#allocation5 + $0x510] sm:$0xff]
    %v808 = vld [vmem:[#allocation5 + $0x518] sm:$0xff]
    %v809 = vld [vmem:[#allocation5 + $0x520] sm:$0xff]
    %v810 = vld [vmem:[#allocation5 + $0x528] sm:$0xff]
    %v811 = vld [vmem:[#allocation5 + $0x530] sm:$0xff]
    %v812 = vld [vmem:[#allocation5 + $0x538] sm:$0xff]
    %v813 = vld [vmem:[#allocation5 + $0x540] sm:$0xff]
    %v814 = vld [vmem:[#allocation5 + $0x548] sm:$0xff]
    %v815 = vld [vmem:[#allocation5 + $0x550] sm:$0xff]
    %v816 = vld [vmem:[#allocation5 + $0x558] sm:$0xff]
    %v817 = vld [vmem:[#allocation5 + $0x560] sm:$0xff]
    %v818 = vld [vmem:[#allocation5 + $0x568] sm:$0xff]
    %v819 = vld [vmem:[#allocation5 + $0x570] sm:$0xff]
    %v820 = vld [vmem:[#allocation5 + $0x578] sm:$0xff]
    %v821 = vld [vmem:[#allocation5 + $0x580] sm:$0xff]
    %v822 = vld [vmem:[#allocation5 + $0x588] sm:$0xff]
    %v823 = vld [vmem:[#allocation5 + $0x590] sm:$0xff]
    %v824 = vld [vmem:[#allocation5 + $0x598] sm:$0xff]
    %v825 = vld [vmem:[#allocation5 + $0x5a0] sm:$0xff]
    %v826 = vld [vmem:[#allocation5 + $0x5a8] sm:$0xff]
    %v827 = vld [vmem:[#allocation5 + $0x5b0] sm:$0xff]
    %v828 = vld [vmem:[#allocation5 + $0x5b8] sm:$0xff]
    %v829 = vld [vmem:[#allocation5 + $0x5c0] sm:$0xff]
    %v830 = vld [vmem:[#allocation5 + $0x5c8] sm:$0xff]
    %v831 = vld [vmem:[#allocation5 + $0x5d0] sm:$0xff]
    %v832 = vld [vmem:[#allocation5 + $0x5d8] sm:$0xff]
    %v833 = vld [vmem:[#allocation5 + $0x5e0] sm:$0xff]
    %v834 = vld [vmem:[#allocation5 + $0x5e8] sm:$0xff]
    %v835 = vld [vmem:[#allocation5 + $0x5f0] sm:$0xff]
    %v836 = vld [vmem:[#allocation5 + $0x5f8] sm:$0xff]
    %v837 = vld [vmem:[%s6] sm:$0xf]
    %v839 = vlaneseq
    %v840 = vshrl.u32 %v839, 7
    %v841 = vsub.s32 0, %v840
    %v842 = vrot.slane %v837, %v841
    %v843 = vlaneseq
    %v844 = vshrl.u32 %v843, 7
    %v845 = vsub.s32 1, %v844
    %v846 = vrot.slane %v837, %v845
    %v847 = vlaneseq
    %v848 = vshrl.u32 %v847, 7
    %v849 = vsub.s32 2, %v848
    %v850 = vrot.slane %v837, %v849
    %v851 = vlaneseq
    %v852 = vshrl.u32 %v851, 7
    %v853 = vsub.s32 3, %v852
    %v854 = vrot.slane %v837, %v853
    %v1051 = vunpack.c.l.b16 %v645
    %v1052 = vunpack.c.h.b16 %v645
    %v1053 = vunpack.c.l.b16 %v646
    %v1054 = vunpack.c.h.b16 %v646
    %v1055 = vunpack.c.l.b16 %v647
    %v1056 = vunpack.c.h.b16 %v647
    %v1057 = vunpack.c.l.b16 %v648
    %v1058 = vunpack.c.h.b16 %v648
    %v1059 = vunpack.c.l.b16 %v649
    %v1060 = vunpack.c.h.b16 %v649
    %v1061 = vunpack.c.l.b16 %v650
    %v1062 = vunpack.c.h.b16 %v650
    %v1063 = vunpack.c.l.b16 %v651
    %v1064 = vunpack.c.h.b16 %v651
    %v1065 = vunpack.c.l.b16 %v652
    %v1066 = vunpack.c.h.b16 %v652
    %v1067 = vunpack.c.l.b16 %v653
    %v1068 = vunpack.c.h.b16 %v653
    %v1069 = vunpack.c.l.b16 %v654
    %v1070 = vunpack.c.h.b16 %v654
    %v1071 = vunpack.c.l.b16 %v655
    %v1072 = vunpack.c.h.b16 %v655
    %v1073 = vunpack.c.l.b16 %v656
    %v1074 = vunpack.c.h.b16 %v656
    %v1075 = vunpack.c.l.b16 %v657
    %v1076 = vunpack.c.h.b16 %v657
    %v1077 = vunpack.c.l.b16 %v658
    %v1078 = vunpack.c.h.b16 %v658
    %v1079 = vunpack.c.l.b16 %v659
    %v1080 = vunpack.c.h.b16 %v659
    %v1081 = vunpack.c.l.b16 %v660
    %v1082 = vunpack.c.h.b16 %v660
    %v1083 = vunpack.c.l.b16 %v661
    %v1084 = vunpack.c.h.b16 %v661
    %v1085 = vunpack.c.l.b16 %v662
    %v1086 = vunpack.c.h.b16 %v662
    %v1087 = vunpack.c.l.b16 %v663
    %v1088 = vunpack.c.h.b16 %v663
    %v1089 = vunpack.c.l.b16 %v664
    %v1090 = vunpack.c.h.b16 %v664
    %v1091 = vunpack.c.l.b16 %v665
    %v1092 = vunpack.c.h.b16 %v665
    %v1093 = vunpack.c.l.b16 %v666
    %v1094 = vunpack.c.h.b16 %v666
    %v1095 = vunpack.c.l.b16 %v667
    %v1096 = vunpack.c.h.b16 %v667
    %v1097 = vunpack.c.l.b16 %v668
    %v1098 = vunpack.c.h.b16 %v668
    %v1099 = vunpack.c.l.b16 %v669
    %v1100 = vunpack.c.h.b16 %v669
    %v1101 = vunpack.c.l.b16 %v670
    %v1102 = vunpack.c.h.b16 %v670
    %v1103 = vunpack.c.l.b16 %v671
    %v1104 = vunpack.c.h.b16 %v671
    %v1105 = vunpack.c.l.b16 %v672
    %v1106 = vunpack.c.h.b16 %v672
    %v1107 = vunpack.c.l.b16 %v673
    %v1108 = vunpack.c.h.b16 %v673
    %v1109 = vunpack.c.l.b16 %v674
    %v1110 = vunpack.c.h.b16 %v674
    %v1111 = vunpack.c.l.b16 %v675
    %v1112 = vunpack.c.h.b16 %v675
    %v1113 = vunpack.c.l.b16 %v676
    %v1114 = vunpack.c.h.b16 %v676
    %v1115 = vunpack.c.l.b16 %v677
    %v1116 = vunpack.c.h.b16 %v677
    %v1117 = vunpack.c.l.b16 %v678
    %v1118 = vunpack.c.h.b16 %v678
    %v1119 = vunpack.c.l.b16 %v679
    %v1120 = vunpack.c.h.b16 %v679
    %v1121 = vunpack.c.l.b16 %v680
    %v1122 = vunpack.c.h.b16 %v680
    %v1123 = vunpack.c.l.b16 %v681
    %v1124 = vunpack.c.h.b16 %v681
    %v1125 = vunpack.c.l.b16 %v682
    %v1126 = vunpack.c.h.b16 %v682
    %v1127 = vunpack.c.l.b16 %v683
    %v1128 = vunpack.c.h.b16 %v683
    %v1129 = vunpack.c.l.b16 %v684
    %v1130 = vunpack.c.h.b16 %v684
    %v1131 = vunpack.c.l.b16 %v685
    %v1132 = vunpack.c.h.b16 %v685
    %v1133 = vunpack.c.l.b16 %v686
    %v1134 = vunpack.c.h.b16 %v686
    %v1135 = vunpack.c.l.b16 %v687
    %v1136 = vunpack.c.h.b16 %v687
    %v1137 = vunpack.c.l.b16 %v688
    %v1138 = vunpack.c.h.b16 %v688
    %v1139 = vunpack.c.l.b16 %v689
    %v1140 = vunpack.c.h.b16 %v689
    %v1141 = vunpack.c.l.b16 %v690
    %v1142 = vunpack.c.h.b16 %v690
    %v1143 = vunpack.c.l.b16 %v691
    %v1144 = vunpack.c.h.b16 %v691
    %v1145 = vunpack.c.l.b16 %v692
    %v1146 = vunpack.c.h.b16 %v692
    %v1147 = vunpack.c.l.b16 %v693
    %v1148 = vunpack.c.h.b16 %v693
    %v1149 = vunpack.c.l.b16 %v694
    %v1150 = vunpack.c.h.b16 %v694
    %v1151 = vunpack.c.l.b16 %v695
    %v1152 = vunpack.c.h.b16 %v695
    %v1153 = vunpack.c.l.b16 %v696
    %v1154 = vunpack.c.h.b16 %v696
    %v1155 = vunpack.c.l.b16 %v697
    %v1156 = vunpack.c.h.b16 %v697
    %v1157 = vunpack.c.l.b16 %v698
    %v1158 = vunpack.c.h.b16 %v698
    %v1159 = vunpack.c.l.b16 %v699
    %v1160 = vunpack.c.h.b16 %v699
    %v1161 = vunpack.c.l.b16 %v700
    %v1162 = vunpack.c.h.b16 %v700
    %v1163 = vunpack.c.l.b16 %v701
    %v1164 = vunpack.c.h.b16 %v701
    %v1165 = vunpack.c.l.b16 %v702
    %v1166 = vunpack.c.h.b16 %v702
    %v1167 = vunpack.c.l.b16 %v703
    %v1168 = vunpack.c.h.b16 %v703
    %v1169 = vunpack.c.l.b16 %v704
    %v1170 = vunpack.c.h.b16 %v704
    %v1171 = vunpack.c.l.b16 %v705
    %v1172 = vunpack.c.h.b16 %v705
    %v1173 = vunpack.c.l.b16 %v706
    %v1174 = vunpack.c.h.b16 %v706
    %v1175 = vunpack.c.l.b16 %v707
    %v1176 = vunpack.c.h.b16 %v707
    %v1177 = vunpack.c.l.b16 %v708
    %v1178 = vunpack.c.h.b16 %v708
    %v1179 = vunpack.c.l.b16 %v709
    %v1180 = vunpack.c.h.b16 %v709
    %v1181 = vunpack.c.l.b16 %v710
    %v1182 = vunpack.c.h.b16 %v710
    %v1183 = vunpack.c.l.b16 %v711
    %v1184 = vunpack.c.h.b16 %v711
    %v1185 = vunpack.c.l.b16 %v712
    %v1186 = vunpack.c.h.b16 %v712
    %v1187 = vunpack.c.l.b16 %v713
    %v1188 = vunpack.c.h.b16 %v713
    %v1189 = vunpack.c.l.b16 %v714
    %v1190 = vunpack.c.h.b16 %v714
    %v1191 = vunpack.c.l.b16 %v715
    %v1192 = vunpack.c.h.b16 %v715
    %v1193 = vunpack.c.l.b16 %v716
    %v1194 = vunpack.c.h.b16 %v716
    %v1195 = vunpack.c.l.b16 %v717
    %v1196 = vunpack.c.h.b16 %v717
    %v1197 = vunpack.c.l.b16 %v718
    %v1198 = vunpack.c.h.b16 %v718
    %v1199 = vunpack.c.l.b16 %v719
    %v1200 = vunpack.c.h.b16 %v719
    %v1201 = vunpack.c.l.b16 %v720
    %v1202 = vunpack.c.h.b16 %v720
    %v1203 = vunpack.c.l.b16 %v721
    %v1204 = vunpack.c.h.b16 %v721
    %v1205 = vunpack.c.l.b16 %v722
    %v1206 = vunpack.c.h.b16 %v722
    %v1207 = vunpack.c.l.b16 %v723
    %v1208 = vunpack.c.h.b16 %v723
    %v1209 = vunpack.c.l.b16 %v724
    %v1210 = vunpack.c.h.b16 %v724
    %v1211 = vunpack.c.l.b16 %v725
    %v1212 = vunpack.c.h.b16 %v725
    %v1213 = vunpack.c.l.b16 %v726
    %v1214 = vunpack.c.h.b16 %v726
    %v1215 = vunpack.c.l.b16 %v727
    %v1216 = vunpack.c.h.b16 %v727
    %v1217 = vunpack.c.l.b16 %v728
    %v1218 = vunpack.c.h.b16 %v728
    %v1219 = vunpack.c.l.b16 %v729
    %v1220 = vunpack.c.h.b16 %v729
    %v1221 = vunpack.c.l.b16 %v730
    %v1222 = vunpack.c.h.b16 %v730
    %v1223 = vunpack.c.l.b16 %v731
    %v1224 = vunpack.c.h.b16 %v731
    %v1225 = vunpack.c.l.b16 %v732
    %v1226 = vunpack.c.h.b16 %v732
    %v1227 = vunpack.c.l.b16 %v733
    %v1228 = vunpack.c.h.b16 %v733
    %v1229 = vunpack.c.l.b16 %v734
    %v1230 = vunpack.c.h.b16 %v734
    %v1231 = vunpack.c.l.b16 %v735
    %v1232 = vunpack.c.h.b16 %v735
    %v1233 = vunpack.c.l.b16 %v736
    %v1234 = vunpack.c.h.b16 %v736
    %v1235 = vunpack.c.l.b16 %v737
    %v1236 = vunpack.c.h.b16 %v737
    %v1237 = vunpack.c.l.b16 %v738
    %v1238 = vunpack.c.h.b16 %v738
    %v1239 = vunpack.c.l.b16 %v739
    %v1240 = vunpack.c.h.b16 %v739
    %v1241 = vunpack.c.l.b16 %v740
    %v1242 = vunpack.c.h.b16 %v740
    %v1243 = vunpack.c.l.b16 %v741
    %v1244 = vunpack.c.h.b16 %v741
    %v1245 = vunpack.c.l.b16 %v742
    %v1246 = vunpack.c.h.b16 %v742
    %v1247 = vunpack.c.l.b16 %v743
    %v1248 = vunpack.c.h.b16 %v743
    %v1249 = vunpack.c.l.b16 %v744
    %v1250 = vunpack.c.h.b16 %v744
    %v1251 = vunpack.c.l.b16 %v745
    %v1252 = vunpack.c.h.b16 %v745
    %v1253 = vunpack.c.l.b16 %v746
    %v1254 = vunpack.c.h.b16 %v746
    %v1255 = vunpack.c.l.b16 %v747
    %v1256 = vunpack.c.h.b16 %v747
    %v1257 = vunpack.c.l.b16 %v748
    %v1258 = vunpack.c.h.b16 %v748
    %v1259 = vunpack.c.l.b16 %v749
    %v1260 = vunpack.c.h.b16 %v749
    %v1261 = vunpack.c.l.b16 %v750
    %v1262 = vunpack.c.h.b16 %v750
    %v1263 = vunpack.c.l.b16 %v751
    %v1264 = vunpack.c.h.b16 %v751
    %v1265 = vunpack.c.l.b16 %v752
    %v1266 = vunpack.c.h.b16 %v752
    %v1267 = vunpack.c.l.b16 %v753
    %v1268 = vunpack.c.h.b16 %v753
    %v1269 = vunpack.c.l.b16 %v754
    %v1270 = vunpack.c.h.b16 %v754
    %v1271 = vunpack.c.l.b16 %v755
    %v1272 = vunpack.c.h.b16 %v755
    %v1273 = vunpack.c.l.b16 %v756
    %v1274 = vunpack.c.h.b16 %v756
    %v1275 = vunpack.c.l.b16 %v757
    %v1276 = vunpack.c.h.b16 %v757
    %v1277 = vunpack.c.l.b16 %v758
    %v1278 = vunpack.c.h.b16 %v758
    %v1279 = vunpack.c.l.b16 %v759
    %v1280 = vunpack.c.h.b16 %v759
    %v1281 = vunpack.c.l.b16 %v760
    %v1282 = vunpack.c.h.b16 %v760
    %v1283 = vunpack.c.l.b16 %v761
    %v1284 = vunpack.c.h.b16 %v761
    %v1285 = vunpack.c.l.b16 %v762
    %v1286 = vunpack.c.h.b16 %v762
    %v1287 = vunpack.c.l.b16 %v763
    %v1288 = vunpack.c.h.b16 %v763
    %v1289 = vunpack.c.l.b16 %v764
    %v1290 = vunpack.c.h.b16 %v764
    %v1291 = vunpack.c.l.b16 %v765
    %v1292 = vunpack.c.h.b16 %v765
    %v1293 = vunpack.c.l.b16 %v766
    %v1294 = vunpack.c.h.b16 %v766
    %v1295 = vunpack.c.l.b16 %v767
    %v1296 = vunpack.c.h.b16 %v767
    %v1297 = vunpack.c.l.b16 %v768
    %v1298 = vunpack.c.h.b16 %v768
    %v1299 = vunpack.c.l.b16 %v769
    %v1300 = vunpack.c.h.b16 %v769
    %v1301 = vunpack.c.l.b16 %v770
    %v1302 = vunpack.c.h.b16 %v770
    %v1303 = vunpack.c.l.b16 %v771
    %v1304 = vunpack.c.h.b16 %v771
    %v1305 = vunpack.c.l.b16 %v772
    %v1306 = vunpack.c.h.b16 %v772
    %v1307 = vunpack.c.l.b16 %v773
    %v1308 = vunpack.c.h.b16 %v773
    %v1309 = vunpack.c.l.b16 %v774
    %v1310 = vunpack.c.h.b16 %v774
    %v1311 = vunpack.c.l.b16 %v775
    %v1312 = vunpack.c.h.b16 %v775
    %v1313 = vunpack.c.l.b16 %v776
    %v1314 = vunpack.c.h.b16 %v776
    %v1315 = vunpack.c.l.b16 %v777
    %v1316 = vunpack.c.h.b16 %v777
    %v1317 = vunpack.c.l.b16 %v778
    %v1318 = vunpack.c.h.b16 %v778
    %v1319 = vunpack.c.l.b16 %v779
    %v1320 = vunpack.c.h.b16 %v779
    %v1321 = vunpack.c.l.b16 %v780
    %v1322 = vunpack.c.h.b16 %v780
    %v1323 = vunpack.c.l.b16 %v781
    %v1324 = vunpack.c.h.b16 %v781
    %v1325 = vunpack.c.l.b16 %v782
    %v1326 = vunpack.c.h.b16 %v782
    %v1327 = vunpack.c.l.b16 %v783
    %v1328 = vunpack.c.h.b16 %v783
    %v1329 = vunpack.c.l.b16 %v784
    %v1330 = vunpack.c.h.b16 %v784
    %v1331 = vunpack.c.l.b16 %v785
    %v1332 = vunpack.c.h.b16 %v785
    %v1333 = vunpack.c.l.b16 %v786
    %v1334 = vunpack.c.h.b16 %v786
    %v1335 = vunpack.c.l.b16 %v787
    %v1336 = vunpack.c.h.b16 %v787
    %v1337 = vunpack.c.l.b16 %v788
    %v1338 = vunpack.c.h.b16 %v788
    %v1339 = vunpack.c.l.b16 %v789
    %v1340 = vunpack.c.h.b16 %v789
    %v1341 = vunpack.c.l.b16 %v790
    %v1342 = vunpack.c.h.b16 %v790
    %v1343 = vunpack.c.l.b16 %v791
    %v1344 = vunpack.c.h.b16 %v791
    %v1345 = vunpack.c.l.b16 %v792
    %v1346 = vunpack.c.h.b16 %v792
    %v1347 = vunpack.c.l.b16 %v793
    %v1348 = vunpack.c.h.b16 %v793
    %v1349 = vunpack.c.l.b16 %v794
    %v1350 = vunpack.c.h.b16 %v794
    %v1351 = vunpack.c.l.b16 %v795
    %v1352 = vunpack.c.h.b16 %v795
    %v1353 = vunpack.c.l.b16 %v796
    %v1354 = vunpack.c.h.b16 %v796
    %v1355 = vunpack.c.l.b16 %v797
    %v1356 = vunpack.c.h.b16 %v797
    %v1357 = vunpack.c.l.b16 %v798
    %v1358 = vunpack.c.h.b16 %v798
    %v1359 = vunpack.c.l.b16 %v799
    %v1360 = vunpack.c.h.b16 %v799
    %v1361 = vunpack.c.l.b16 %v800
    %v1362 = vunpack.c.h.b16 %v800
    %v1363 = vunpack.c.l.b16 %v801
    %v1364 = vunpack.c.h.b16 %v801
    %v1365 = vunpack.c.l.b16 %v802
    %v1366 = vunpack.c.h.b16 %v802
    %v1367 = vunpack.c.l.b16 %v803
    %v1368 = vunpack.c.h.b16 %v803
    %v1369 = vunpack.c.l.b16 %v804
    %v1370 = vunpack.c.h.b16 %v804
    %v1371 = vunpack.c.l.b16 %v805
    %v1372 = vunpack.c.h.b16 %v805
    %v1373 = vunpack.c.l.b16 %v806
    %v1374 = vunpack.c.h.b16 %v806
    %v1375 = vunpack.c.l.b16 %v807
    %v1376 = vunpack.c.h.b16 %v807
    %v1377 = vunpack.c.l.b16 %v808
    %v1378 = vunpack.c.h.b16 %v808
    %v1379 = vunpack.c.l.b16 %v809
    %v1380 = vunpack.c.h.b16 %v809
    %v1381 = vunpack.c.l.b16 %v810
    %v1382 = vunpack.c.h.b16 %v810
    %v1383 = vunpack.c.l.b16 %v811
    %v1384 = vunpack.c.h.b16 %v811
    %v1385 = vunpack.c.l.b16 %v812
    %v1386 = vunpack.c.h.b16 %v812
    %v1387 = vunpack.c.l.b16 %v813
    %v1388 = vunpack.c.h.b16 %v813
    %v1389 = vunpack.c.l.b16 %v814
    %v1390 = vunpack.c.h.b16 %v814
    %v1391 = vunpack.c.l.b16 %v815
    %v1392 = vunpack.c.h.b16 %v815
    %v1393 = vunpack.c.l.b16 %v816
    %v1394 = vunpack.c.h.b16 %v816
    %v1395 = vunpack.c.l.b16 %v817
    %v1396 = vunpack.c.h.b16 %v817
    %v1397 = vunpack.c.l.b16 %v818
    %v1398 = vunpack.c.h.b16 %v818
    %v1399 = vunpack.c.l.b16 %v819
    %v1400 = vunpack.c.h.b16 %v819
    %v1401 = vunpack.c.l.b16 %v820
    %v1402 = vunpack.c.h.b16 %v820
    %v1403 = vunpack.c.l.b16 %v821
    %v1404 = vunpack.c.h.b16 %v821
    %v1405 = vunpack.c.l.b16 %v822
    %v1406 = vunpack.c.h.b16 %v822
    %v1407 = vunpack.c.l.b16 %v823
    %v1408 = vunpack.c.h.b16 %v823
    %v1409 = vunpack.c.l.b16 %v824
    %v1410 = vunpack.c.h.b16 %v824
    %v1411 = vunpack.c.l.b16 %v825
    %v1412 = vunpack.c.h.b16 %v825
    %v1413 = vunpack.c.l.b16 %v826
    %v1414 = vunpack.c.h.b16 %v826
    %v1415 = vunpack.c.l.b16 %v827
    %v1416 = vunpack.c.h.b16 %v827
    %v1417 = vunpack.c.l.b16 %v828
    %v1418 = vunpack.c.h.b16 %v828
    %v1419 = vunpack.c.l.b16 %v829
    %v1420 = vunpack.c.h.b16 %v829
    %v1421 = vunpack.c.l.b16 %v830
    %v1422 = vunpack.c.h.b16 %v830
    %v1423 = vunpack.c.l.b16 %v831
    %v1424 = vunpack.c.h.b16 %v831
    %v1425 = vunpack.c.l.b16 %v832
    %v1426 = vunpack.c.h.b16 %v832
    %v1427 = vunpack.c.l.b16 %v833
    %v1428 = vunpack.c.h.b16 %v833
    %v1429 = vunpack.c.l.b16 %v834
    %v1430 = vunpack.c.h.b16 %v834
    %v1431 = vunpack.c.l.b16 %v835
    %v1432 = vunpack.c.h.b16 %v835
    %v1433 = vunpack.c.l.b16 %v836
    %v1434 = vunpack.c.h.b16 %v836
    %v1435 = vpack.c.b16 %v1055, %v1051
    %v1436 = vpack.c.b16 %v1056, %v1052
    %v1437 = vpack.c.b16 %v1057, %v1053
    %v1438 = vpack.c.b16 %v1058, %v1054
    %v1439 = vpack.c.b16 %v1063, %v1059
    %v1440 = vpack.c.b16 %v1064, %v1060
    %v1441 = vpack.c.b16 %v1065, %v1061
    %v1442 = vpack.c.b16 %v1066, %v1062
    %v1443 = vpack.c.b16 %v1071, %v1067
    %v1444 = vpack.c.b16 %v1072, %v1068
    %v1445 = vpack.c.b16 %v1073, %v1069
    %v1446 = vpack.c.b16 %v1074, %v1070
    %v1447 = vpack.c.b16 %v1079, %v1075
    %v1448 = vpack.c.b16 %v1080, %v1076
    %v1449 = vpack.c.b16 %v1081, %v1077
    %v1450 = vpack.c.b16 %v1082, %v1078
    %v1451 = vpack.c.b16 %v1087, %v1083
    %v1452 = vpack.c.b16 %v1088, %v1084
    %v1453 = vpack.c.b16 %v1089, %v1085
    %v1454 = vpack.c.b16 %v1090, %v1086
    %v1455 = vpack.c.b16 %v1095, %v1091
    %v1456 = vpack.c.b16 %v1096, %v1092
    %v1457 = vpack.c.b16 %v1097, %v1093
    %v1458 = vpack.c.b16 %v1098, %v1094
    %v1459 = vpack.c.b16 %v1103, %v1099
    %v1460 = vpack.c.b16 %v1104, %v1100
    %v1461 = vpack.c.b16 %v1105, %v1101
    %v1462 = vpack.c.b16 %v1106, %v1102
    %v1463 = vpack.c.b16 %v1111, %v1107
    %v1464 = vpack.c.b16 %v1112, %v1108
    %v1465 = vpack.c.b16 %v1113, %v1109
    %v1466 = vpack.c.b16 %v1114, %v1110
    %v1467 = vpack.c.b16 %v1119, %v1115
    %v1468 = vpack.c.b16 %v1120, %v1116
    %v1469 = vpack.c.b16 %v1121, %v1117
    %v1470 = vpack.c.b16 %v1122, %v1118
    %v1471 = vpack.c.b16 %v1127, %v1123
    %v1472 = vpack.c.b16 %v1128, %v1124
    %v1473 = vpack.c.b16 %v1129, %v1125
    %v1474 = vpack.c.b16 %v1130, %v1126
    %v1475 = vpack.c.b16 %v1135, %v1131
    %v1476 = vpack.c.b16 %v1136, %v1132
    %v1477 = vpack.c.b16 %v1137, %v1133
    %v1478 = vpack.c.b16 %v1138, %v1134
    %v1479 = vpack.c.b16 %v1143, %v1139
    %v1480 = vpack.c.b16 %v1144, %v1140
    %v1481 = vpack.c.b16 %v1145, %v1141
    %v1482 = vpack.c.b16 %v1146, %v1142
    %v1483 = vpack.c.b16 %v1151, %v1147
    %v1484 = vpack.c.b16 %v1152, %v1148
    %v1485 = vpack.c.b16 %v1153, %v1149
    %v1486 = vpack.c.b16 %v1154, %v1150
    %v1487 = vpack.c.b16 %v1159, %v1155
    %v1488 = vpack.c.b16 %v1160, %v1156
    %v1489 = vpack.c.b16 %v1161, %v1157
    %v1490 = vpack.c.b16 %v1162, %v1158
    %v1491 = vpack.c.b16 %v1167, %v1163
    %v1492 = vpack.c.b16 %v1168, %v1164
    %v1493 = vpack.c.b16 %v1169, %v1165
    %v1494 = vpack.c.b16 %v1170, %v1166
    %v1495 = vpack.c.b16 %v1175, %v1171
    %v1496 = vpack.c.b16 %v1176, %v1172
    %v1497 = vpack.c.b16 %v1177, %v1173
    %v1498 = vpack.c.b16 %v1178, %v1174
    %v1499 = vpack.c.b16 %v1183, %v1179
    %v1500 = vpack.c.b16 %v1184, %v1180
    %v1501 = vpack.c.b16 %v1185, %v1181
    %v1502 = vpack.c.b16 %v1186, %v1182
    %v1503 = vpack.c.b16 %v1191, %v1187
    %v1504 = vpack.c.b16 %v1192, %v1188
    %v1505 = vpack.c.b16 %v1193, %v1189
    %v1506 = vpack.c.b16 %v1194, %v1190
    %v1507 = vpack.c.b16 %v1199, %v1195
    %v1508 = vpack.c.b16 %v1200, %v1196
    %v1509 = vpack.c.b16 %v1201, %v1197
    %v1510 = vpack.c.b16 %v1202, %v1198
    %v1511 = vpack.c.b16 %v1207, %v1203
    %v1512 = vpack.c.b16 %v1208, %v1204
    %v1513 = vpack.c.b16 %v1209, %v1205
    %v1514 = vpack.c.b16 %v1210, %v1206
    %v1515 = vpack.c.b16 %v1215, %v1211
    %v1516 = vpack.c.b16 %v1216, %v1212
    %v1517 = vpack.c.b16 %v1217, %v1213
    %v1518 = vpack.c.b16 %v1218, %v1214
    %v1519 = vpack.c.b16 %v1223, %v1219
    %v1520 = vpack.c.b16 %v1224, %v1220
    %v1521 = vpack.c.b16 %v1225, %v1221
    %v1522 = vpack.c.b16 %v1226, %v1222
    %v1523 = vpack.c.b16 %v1231, %v1227
    %v1524 = vpack.c.b16 %v1232, %v1228
    %v1525 = vpack.c.b16 %v1233, %v1229
    %v1526 = vpack.c.b16 %v1234, %v1230
    %v1527 = vpack.c.b16 %v1239, %v1235
    %v1528 = vpack.c.b16 %v1240, %v1236
    %v1529 = vpack.c.b16 %v1241, %v1237
    %v1530 = vpack.c.b16 %v1242, %v1238
    %v1531 = vpack.c.b16 %v1247, %v1243
    %v1532 = vpack.c.b16 %v1248, %v1244
    %v1533 = vpack.c.b16 %v1249, %v1245
    %v1534 = vpack.c.b16 %v1250, %v1246
    %v1535 = vpack.c.b16 %v1255, %v1251
    %v1536 = vpack.c.b16 %v1256, %v1252
    %v1537 = vpack.c.b16 %v1257, %v1253
    %v1538 = vpack.c.b16 %v1258, %v1254
    %v1539 = vpack.c.b16 %v1263, %v1259
    %v1540 = vpack.c.b16 %v1264, %v1260
    %v1541 = vpack.c.b16 %v1265, %v1261
    %v1542 = vpack.c.b16 %v1266, %v1262
    %v1543 = vpack.c.b16 %v1271, %v1267
    %v1544 = vpack.c.b16 %v1272, %v1268
    %v1545 = vpack.c.b16 %v1273, %v1269
    %v1546 = vpack.c.b16 %v1274, %v1270
    %v1547 = vpack.c.b16 %v1279, %v1275
    %v1548 = vpack.c.b16 %v1280, %v1276
    %v1549 = vpack.c.b16 %v1281, %v1277
    %v1550 = vpack.c.b16 %v1282, %v1278
    %v1551 = vpack.c.b16 %v1287, %v1283
    %v1552 = vpack.c.b16 %v1288, %v1284
    %v1553 = vpack.c.b16 %v1289, %v1285
    %v1554 = vpack.c.b16 %v1290, %v1286
    %v1555 = vpack.c.b16 %v1295, %v1291
    %v1556 = vpack.c.b16 %v1296, %v1292
    %v1557 = vpack.c.b16 %v1297, %v1293
    %v1558 = vpack.c.b16 %v1298, %v1294
    %v1559 = vpack.c.b16 %v1303, %v1299
    %v1560 = vpack.c.b16 %v1304, %v1300
    %v1561 = vpack.c.b16 %v1305, %v1301
    %v1562 = vpack.c.b16 %v1306, %v1302
    %v1563 = vpack.c.b16 %v1311, %v1307
    %v1564 = vpack.c.b16 %v1312, %v1308
    %v1565 = vpack.c.b16 %v1313, %v1309
    %v1566 = vpack.c.b16 %v1314, %v1310
    %v1567 = vpack.c.b16 %v1319, %v1315
    %v1568 = vpack.c.b16 %v1320, %v1316
    %v1569 = vpack.c.b16 %v1321, %v1317
    %v1570 = vpack.c.b16 %v1322, %v1318
    %v1571 = vpack.c.b16 %v1327, %v1323
    %v1572 = vpack.c.b16 %v1328, %v1324
    %v1573 = vpack.c.b16 %v1329, %v1325
    %v1574 = vpack.c.b16 %v1330, %v1326
    %v1575 = vpack.c.b16 %v1335, %v1331
    %v1576 = vpack.c.b16 %v1336, %v1332
    %v1577 = vpack.c.b16 %v1337, %v1333
    %v1578 = vpack.c.b16 %v1338, %v1334
    %v1579 = vpack.c.b16 %v1343, %v1339
    %v1580 = vpack.c.b16 %v1344, %v1340
    %v1581 = vpack.c.b16 %v1345, %v1341
    %v1582 = vpack.c.b16 %v1346, %v1342
    %v1583 = vpack.c.b16 %v1351, %v1347
    %v1584 = vpack.c.b16 %v1352, %v1348
    %v1585 = vpack.c.b16 %v1353, %v1349
    %v1586 = vpack.c.b16 %v1354, %v1350
    %v1587 = vpack.c.b16 %v1359, %v1355
    %v1588 = vpack.c.b16 %v1360, %v1356
    %v1589 = vpack.c.b16 %v1361, %v1357
    %v1590 = vpack.c.b16 %v1362, %v1358
    %v1591 = vpack.c.b16 %v1367, %v1363
    %v1592 = vpack.c.b16 %v1368, %v1364
    %v1593 = vpack.c.b16 %v1369, %v1365
    %v1594 = vpack.c.b16 %v1370, %v1366
    %v1595 = vpack.c.b16 %v1375, %v1371
    %v1596 = vpack.c.b16 %v1376, %v1372
    %v1597 = vpack.c.b16 %v1377, %v1373
    %v1598 = vpack.c.b16 %v1378, %v1374
    %v1599 = vpack.c.b16 %v1383, %v1379
    %v1600 = vpack.c.b16 %v1384, %v1380
    %v1601 = vpack.c.b16 %v1385, %v1381
    %v1602 = vpack.c.b16 %v1386, %v1382
    %v1603 = vpack.c.b16 %v1391, %v1387
    %v1604 = vpack.c.b16 %v1392, %v1388
    %v1605 = vpack.c.b16 %v1393, %v1389
    %v1606 = vpack.c.b16 %v1394, %v1390
    %v1607 = vpack.c.b16 %v1399, %v1395
    %v1608 = vpack.c.b16 %v1400, %v1396
    %v1609 = vpack.c.b16 %v1401, %v1397
    %v1610 = vpack.c.b16 %v1402, %v1398
    %v1611 = vpack.c.b16 %v1407, %v1403
    %v1612 = vpack.c.b16 %v1408, %v1404
    %v1613 = vpack.c.b16 %v1409, %v1405
    %v1614 = vpack.c.b16 %v1410, %v1406
    %v1615 = vpack.c.b16 %v1415, %v1411
    %v1616 = vpack.c.b16 %v1416, %v1412
    %v1617 = vpack.c.b16 %v1417, %v1413
    %v1618 = vpack.c.b16 %v1418, %v1414
    %v1619 = vpack.c.b16 %v1423, %v1419
    %v1620 = vpack.c.b16 %v1424, %v1420
    %v1621 = vpack.c.b16 %v1425, %v1421
    %v1622 = vpack.c.b16 %v1426, %v1422
    %v1623 = vpack.c.b16 %v1431, %v1427
    %v1624 = vpack.c.b16 %v1432, %v1428
    %v1625 = vpack.c.b16 %v1433, %v1429
    %v1626 = vpack.c.b16 %v1434, %v1430
    %1819 = vmatprep.subr.bf16.mxu0 %v1464
    %1820 = vmatpush1.bf16.msra.mxu0 %v1463
    %1821 = vmatprep.subr.bf16.mxu0 %v1460
    %1822 = vmatpush1.bf16.msra.mxu0 %v1459
    %1823 = vmatprep.subr.bf16.mxu0 %v1456
    %1824 = vmatpush1.bf16.msra.mxu0 %v1455
    %1825 = vmatprep.subr.bf16.mxu0 %v1452
    %1826 = vmatpush1.bf16.msra.mxu0 %v1451
    %1827 = vmatprep.subr.bf16.mxu0 %v1448
    %1828 = vmatpush1.bf16.msra.mxu0 %v1447
    %1829 = vmatprep.subr.bf16.mxu0 %v1444
    %1830 = vmatpush1.bf16.msra.mxu0 %v1443
    %1831 = vmatprep.subr.bf16.mxu0 %v1440
    %1832 = vmatpush1.bf16.msra.mxu0 %v1439
    %1833 = vmatprep.subr.bf16.mxu0 %v1436
    %1834 = vmatpush1.bf16.msra.mxu0 %v1435
    %1835 = vmatprep.subr.bf16.mxu0 %v1496
    %1836 = vmatpush2.bf16.msra.mxu0 %v1495
    %1837 = vmatprep.subr.bf16.mxu0 %v1492
    %1838 = vmatpush2.bf16.msra.mxu0 %v1491
    %1839 = vmatprep.subr.bf16.mxu0 %v1488
    %1840 = vmatpush2.bf16.msra.mxu0 %v1487
    %1841 = vmatprep.subr.bf16.mxu0 %v1484
    %1842 = vmatpush2.bf16.msra.mxu0 %v1483
    %1843 = vmatprep.subr.bf16.mxu0 %v1480
    %1844 = vmatpush2.bf16.msra.mxu0 %v1479
    %1845 = vmatprep.subr.bf16.mxu0 %v1476
    %1846 = vmatpush2.bf16.msra.mxu0 %v1475
    %1847 = vmatprep.subr.bf16.mxu0 %v1472
    %1848 = vmatpush2.bf16.msra.mxu0 %v1471
    %1849 = vmatprep.subr.bf16.mxu0 %v1468
    %1850 = vmatpush2.bf16.msra.mxu0 %v1467
    %1851 = vmatprep.mubr.bf16.mxu0 %v566
    %1852 = vmatmul.mubr.bf16.gmra.mxu0 %v565
    %v1853 = vpop.f32.mrf.mxu0
    %v1854 = vadd.f32 %v842, %v1853
    %v1855 = vpop.f32.mrf.mxu0
    %v1856 = vadd.f32 %v846, %v1855
    %v1857 = vpop.f32.mrf.mxu0
    %v1858 = vadd.f32 %v842, %v1857
    %v1859 = vpop.f32.mrf.mxu0
    %v1860 = vadd.f32 %v846, %v1859
    %1861 = vdwg.mxu0
    %1862 = vmatprep.subr.bf16.mxu0 %v1528
    %1863 = vmatpush1.bf16.msra.mxu0 %v1527
    %1864 = vmatprep.subr.bf16.mxu0 %v1524
    %1865 = vmatpush1.bf16.msra.mxu0 %v1523
    %1866 = vmatprep.subr.bf16.mxu0 %v1520
    %1867 = vmatpush1.bf16.msra.mxu0 %v1519
    %1868 = vmatprep.subr.bf16.mxu0 %v1516
    %1869 = vmatpush1.bf16.msra.mxu0 %v1515
    %1870 = vmatprep.subr.bf16.mxu0 %v1512
    %1871 = vmatpush1.bf16.msra.mxu0 %v1511
    %1872 = vmatprep.subr.bf16.mxu0 %v1508
    %1873 = vmatpush1.bf16.msra.mxu0 %v1507
    %1874 = vmatprep.subr.bf16.mxu0 %v1504
    %1875 = vmatpush1.bf16.msra.mxu0 %v1503
    %1876 = vmatprep.subr.bf16.mxu0 %v1500
    %1877 = vmatpush1.bf16.msra.mxu0 %v1499
    %1878 = vmatprep.subr.bf16.mxu0 %v1560
    %1879 = vmatpush2.bf16.msra.mxu0 %v1559
    %1880 = vmatprep.subr.bf16.mxu0 %v1556
    %1881 = vmatpush2.bf16.msra.mxu0 %v1555
    %1882 = vmatprep.subr.bf16.mxu0 %v1552
    %1883 = vmatpush2.bf16.msra.mxu0 %v1551
    %1884 = vmatprep.subr.bf16.mxu0 %v1548
    %1885 = vmatpush2.bf16.msra.mxu0 %v1547
    %1886 = vmatprep.subr.bf16.mxu0 %v1544
    %1887 = vmatpush2.bf16.msra.mxu0 %v1543
    %1888 = vmatprep.subr.bf16.mxu0 %v1540
    %1889 = vmatpush2.bf16.msra.mxu0 %v1539
    %1890 = vmatprep.subr.bf16.mxu0 %v1536
    %1891 = vmatpush2.bf16.msra.mxu0 %v1535
    %1892 = vmatprep.subr.bf16.mxu0 %v1532
    %1893 = vmatpush2.bf16.msra.mxu0 %v1531
    %1894 = vmatprep.mubr.bf16.mxu0 %v642
    %1895 = vmatmul.mubr.bf16.gmra.mxu0 %v641
    %v1896 = vpop.f32.mrf.mxu0
    %v1897 = vadd.f32 %v1854, %v1896
    %v1898 = vpop.f32.mrf.mxu0
    %v1899 = vadd.f32 %v1856, %v1898
    %v1900 = vpop.f32.mrf.mxu0
    %v1901 = vadd.f32 %v1858, %v1900
    %v1902 = vpop.f32.mrf.mxu0
    %v1903 = vadd.f32 %v1860, %v1902
    %1904 = vdwg.mxu0
    %1905 = vmatprep.subr.bf16.mxu0 %v1592
    %1906 = vmatpush1.bf16.msra.mxu0 %v1591
    %1907 = vmatprep.subr.bf16.mxu0 %v1588
    %1908 = vmatpush1.bf16.msra.mxu0 %v1587
    %1909 = vmatprep.subr.bf16.mxu0 %v1584
    %1910 = vmatpush1.bf16.msra.mxu0 %v1583
    %1911 = vmatprep.subr.bf16.mxu0 %v1580
    %1912 = vmatpush1.bf16.msra.mxu0 %v1579
    %1913 = vmatprep.subr.bf16.mxu0 %v1576
    %1914 = vmatpush1.bf16.msra.mxu0 %v1575
    %1915 = vmatprep.subr.bf16.mxu0 %v1572
    %1916 = vmatpush1.bf16.msra.mxu0 %v1571
    %1917 = vmatprep.subr.bf16.mxu0 %v1568
    %1918 = vmatpush1.bf16.msra.mxu0 %v1567
    %1919 = vmatprep.subr.bf16.mxu0 %v1564
    %1920 = vmatpush1.bf16.msra.mxu0 %v1563
    %1921 = vmatprep.subr.bf16.mxu0 %v1624
    %1922 = vmatpush2.bf16.msra.mxu0 %v1623
    %1923 = vmatprep.subr.bf16.mxu0 %v1620
    %1924 = vmatpush2.bf16.msra.mxu0 %v1619
    %1925 = vmatprep.subr.bf16.mxu0 %v1616
    %1926 = vmatpush2.bf16.msra.mxu0 %v1615
    %1927 = vmatprep.subr.bf16.mxu0 %v1612
    %1928 = vmatpush2.bf16.msra.mxu0 %v1611
    %1929 = vmatprep.subr.bf16.mxu0 %v1608
    %1930 = vmatpush2.bf16.msra.mxu0 %v1607
    %1931 = vmatprep.subr.bf16.mxu0 %v1604
    %1932 = vmatpush2.bf16.msra.mxu0 %v1603
    %1933 = vmatprep.subr.bf16.mxu0 %v1600
    %1934 = vmatpush2.bf16.msra.mxu0 %v1599
    %1935 = vmatprep.subr.bf16.mxu0 %v1596
    %1936 = vmatpush2.bf16.msra.mxu0 %v1595
    %1937 = vmatprep.mubr.bf16.mxu0 %v644
    %1938 = vmatmul.mubr.bf16.gmra.mxu0 %v643
    %v1939 = vpop.f32.mrf.mxu0
    %v1940 = vadd.f32 %v1897, %v1939
    %v1941 = vpop.f32.mrf.mxu0
    %v1942 = vadd.f32 %v1899, %v1941
    %v1943 = vpop.f32.mrf.mxu0
    %v1944 = vadd.f32 %v1901, %v1943
    %v1945 = vpop.f32.mrf.mxu0
    %v1946 = vadd.f32 %v1903, %v1945
    %1947 = vdwg.mxu0
    %1948 = vmatprep.subr.bf16.mxu0 %v1466
    %1949 = vmatpush1.bf16.msra.mxu0 %v1465
    %1950 = vmatprep.subr.bf16.mxu0 %v1462
    %1951 = vmatpush1.bf16.msra.mxu0 %v1461
    %1952 = vmatprep.subr.bf16.mxu0 %v1458
    %1953 = vmatpush1.bf16.msra.mxu0 %v1457
    %1954 = vmatprep.subr.bf16.mxu0 %v1454
    %1955 = vmatpush1.bf16.msra.mxu0 %v1453
    %1956 = vmatprep.subr.bf16.mxu0 %v1450
    %1957 = vmatpush1.bf16.msra.mxu0 %v1449
    %1958 = vmatprep.subr.bf16.mxu0 %v1446
    %1959 = vmatpush1.bf16.msra.mxu0 %v1445
    %1960 = vmatprep.subr.bf16.mxu0 %v1442
    %1961 = vmatpush1.bf16.msra.mxu0 %v1441
    %1962 = vmatprep.subr.bf16.mxu0 %v1438
    %1963 = vmatpush1.bf16.msra.mxu0 %v1437
    %1964 = vmatprep.subr.bf16.mxu0 %v1498
    %1965 = vmatpush2.bf16.msra.mxu0 %v1497
    %1966 = vmatprep.subr.bf16.mxu0 %v1494
    %1967 = vmatpush2.bf16.msra.mxu0 %v1493
    %1968 = vmatprep.subr.bf16.mxu0 %v1490
    %1969 = vmatpush2.bf16.msra.mxu0 %v1489
    %1970 = vmatprep.subr.bf16.mxu0 %v1486
    %1971 = vmatpush2.bf16.msra.mxu0 %v1485
    %1972 = vmatprep.subr.bf16.mxu0 %v1482
    %1973 = vmatpush2.bf16.msra.mxu0 %v1481
    %1974 = vmatprep.subr.bf16.mxu0 %v1478
    %1975 = vmatpush2.bf16.msra.mxu0 %v1477
    %1976 = vmatprep.subr.bf16.mxu0 %v1474
    %1977 = vmatpush2.bf16.msra.mxu0 %v1473
    %1978 = vmatprep.subr.bf16.mxu0 %v1470
    %1979 = vmatpush2.bf16.msra.mxu0 %v1469
    %1980 = vmatprep.mubr.bf16.mxu0 %v566
    %1981 = vmatmul.mubr.bf16.gmra.mxu0 %v565
    %v1982 = vpop.f32.mrf.mxu0
    %v1983 = vadd.f32 %v850, %v1982
    %v1984 = vpop.f32.mrf.mxu0
    %v1985 = vadd.f32 %v854, %v1984
    %v1986 = vpop.f32.mrf.mxu0
    %v1987 = vadd.f32 %v850, %v1986
    %v1988 = vpop.f32.mrf.mxu0
    %v1989 = vadd.f32 %v854, %v1988
    %1990 = vdwg.mxu0
    %1991 = vmatprep.subr.bf16.mxu0 %v1530
    %1992 = vmatpush1.bf16.msra.mxu0 %v1529
    %1993 = vmatprep.subr.bf16.mxu0 %v1526
    %1994 = vmatpush1.bf16.msra.mxu0 %v1525
    %1995 = vmatprep.subr.bf16.mxu0 %v1522
    %1996 = vmatpush1.bf16.msra.mxu0 %v1521
    %1997 = vmatprep.subr.bf16.mxu0 %v1518
    %1998 = vmatpush1.bf16.msra.mxu0 %v1517
    %1999 = vmatprep.subr.bf16.mxu0 %v1514
    %2000 = vmatpush1.bf16.msra.mxu0 %v1513
    %2001 = vmatprep.subr.bf16.mxu0 %v1510
    %2002 = vmatpush1.bf16.msra.mxu0 %v1509
    %2003 = vmatprep.subr.bf16.mxu0 %v1506
    %2004 = vmatpush1.bf16.msra.mxu0 %v1505
    %2005 = vmatprep.subr.bf16.mxu0 %v1502
    %2006 = vmatpush1.bf16.msra.mxu0 %v1501
    %2007 = vmatprep.subr.bf16.mxu0 %v1562
    %2008 = vmatpush2.bf16.msra.mxu0 %v1561
    %2009 = vmatprep.subr.bf16.mxu0 %v1558
    %2010 = vmatpush2.bf16.msra.mxu0 %v1557
    %2011 = vmatprep.subr.bf16.mxu0 %v1554
    %2012 = vmatpush2.bf16.msra.mxu0 %v1553
    %2013 = vmatprep.subr.bf16.mxu0 %v1550
    %2014 = vmatpush2.bf16.msra.mxu0 %v1549
    %2015 = vmatprep.subr.bf16.mxu0 %v1546
    %2016 = vmatpush2.bf16.msra.mxu0 %v1545
    %2017 = vmatprep.subr.bf16.mxu0 %v1542
    %2018 = vmatpush2.bf16.msra.mxu0 %v1541
    %2019 = vmatprep.subr.bf16.mxu0 %v1538
    %2020 = vmatpush2.bf16.msra.mxu0 %v1537
    %2021 = vmatprep.subr.bf16.mxu0 %v1534
    %2022 = vmatpush2.bf16.msra.mxu0 %v1533
    %2023 = vmatprep.mubr.bf16.mxu0 %v642
    %2024 = vmatmul.mubr.bf16.gmra.mxu0 %v641
    %v2025 = vpop.f32.mrf.mxu0
    %v2026 = vadd.f32 %v1983, %v2025
    %v2027 = vpop.f32.mrf.mxu0
    %v2028 = vadd.f32 %v1985, %v2027
    %v2029 = vpop.f32.mrf.mxu0
    %v2030 = vadd.f32 %v1987, %v2029
    %v2031 = vpop.f32.mrf.mxu0
    %v2032 = vadd.f32 %v1989, %v2031
    %2033 = vdwg.mxu0
    %2034 = vmatprep.subr.bf16.mxu0 %v1594
    %2035 = vmatpush1.bf16.msra.mxu0 %v1593
    %2036 = vmatprep.subr.bf16.mxu0 %v1590
    %2037 = vmatpush1.bf16.msra.mxu0 %v1589
    %2038 = vmatprep.subr.bf16.mxu0 %v1586
    %2039 = vmatpush1.bf16.msra.mxu0 %v1585
    %2040 = vmatprep.subr.bf16.mxu0 %v1582
    %2041 = vmatpush1.bf16.msra.mxu0 %v1581
    %2042 = vmatprep.subr.bf16.mxu0 %v1578
    %2043 = vmatpush1.bf16.msra.mxu0 %v1577
    %2044 = vmatprep.subr.bf16.mxu0 %v1574
    %2045 = vmatpush1.bf16.msra.mxu0 %v1573
    %2046 = vmatprep.subr.bf16.mxu0 %v1570
    %2047 = vmatpush1.bf16.msra.mxu0 %v1569
    %2048 = vmatprep.subr.bf16.mxu0 %v1566
    %2049 = vmatpush1.bf16.msra.mxu0 %v1565
    %2050 = vmatprep.subr.bf16.mxu0 %v1626
    %2051 = vmatpush2.bf16.msra.mxu0 %v1625
    %2052 = vmatprep.subr.bf16.mxu0 %v1622
    %2053 = vmatpush2.bf16.msra.mxu0 %v1621
    %2054 = vmatprep.subr.bf16.mxu0 %v1618
    %2055 = vmatpush2.bf16.msra.mxu0 %v1617
    %2056 = vmatprep.subr.bf16.mxu0 %v1614
    %2057 = vmatpush2.bf16.msra.mxu0 %v1613
    %2058 = vmatprep.subr.bf16.mxu0 %v1610
    %2059 = vmatpush2.bf16.msra.mxu0 %v1609
    %2060 = vmatprep.subr.bf16.mxu0 %v1606
    %2061 = vmatpush2.bf16.msra.mxu0 %v1605
    %2062 = vmatprep.subr.bf16.mxu0 %v1602
    %2063 = vmatpush2.bf16.msra.mxu0 %v1601
    %2064 = vmatprep.subr.bf16.mxu0 %v1598
    %2065 = vmatpush2.bf16.msra.mxu0 %v1597
    %2066 = vmatprep.mubr.bf16.mxu0 %v644
    %2067 = vmatmul.mubr.bf16.gmra.mxu0 %v643
    %v2068 = vpop.f32.mrf.mxu0
    %v2069 = vadd.f32 %v2026, %v2068
    %v2070 = vpop.f32.mrf.mxu0
    %v2071 = vadd.f32 %v2028, %v2070
    %v2072 = vpop.f32.mrf.mxu0
    %v2073 = vadd.f32 %v2030, %v2072
    %v2074 = vpop.f32.mrf.mxu0
    %v2075 = vadd.f32 %v2032, %v2074
    %2076 = vdwg.mxu0
    %v2077 = vmax.f32 %v1940, 0.0
    %v2078 = vmax.f32 %v1942, 0.0
    %v2079 = vmax.f32 %v2069, 0.0
    %v2080 = vmax.f32 %v2071, 0.0
    %v2081 = vmax.f32 %v1944, 0.0
    %v2082 = vmax.f32 %v1946, 0.0
    %v2083 = vmax.f32 %v2073, 0.0
    %v2084 = vmax.f32 %v2075, 0.0
    %v2085 = vpack.c.bf16 %v2081, %v2077
    %v2086 = vpack.c.bf16 %v2082, %v2078
    %v2087 = vpack.c.bf16 %v2083, %v2079
    %v2088 = vpack.c.bf16 %v2084, %v2080
    %s2089 = scalar_lea.vmem %s0, 32
    %v2090 = vld [vmem:[%s2089] sm:$0xf]
    %v2091 = vld [vmem:[%s2089 + $0x4] sm:$0xf]
    %v2092 = vld [vmem:[%s2089 + $0x8] sm:$0xf]
    %v2093 = vld [vmem:[%s2089 + $0xc] sm:$0xf]
    %v2098 = vunpack.c.l.b16 %v2090
    %v2099 = vunpack.c.l.b16 %v2091
    %v2100 = vunpack.c.l.b16 %v2092
    %v2101 = vunpack.c.l.b16 %v2093
    %v2102 = vpack.c.b16 %v2099, %v2098
    %v2103 = vpack.c.b16 %v2101, %v2100
    %v2105 = vsel %vm117, %v2102, 0
    %v2108 = vsel %vm117, %v2103, 0
    %2110 = vmatprep.subr.bf16.mxu0 0
    %2111 = vmatpush1.bf16.msra.mxu0 0
    %2112 = vmatprep.subr.bf16.mxu0 0
    %2113 = vmatpush1.bf16.msra.mxu0 0
    %2114 = vmatprep.subr.bf16.mxu0 0
    %2115 = vmatpush1.bf16.msra.mxu0 0
    %2116 = vmatprep.subr.bf16.mxu0 0
    %2117 = vmatpush1.bf16.msra.mxu0 0
    %2118 = vmatprep.subr.bf16.mxu0 0
    %2119 = vmatpush1.bf16.msra.mxu0 0
    %2120 = vmatprep.subr.bf16.mxu0 0
    %2121 = vmatpush1.bf16.msra.mxu0 0
    %2122 = vmatprep.subr.bf16.mxu0 0
    %2123 = vmatpush1.bf16.msra.mxu0 0
    %2124 = vmatprep.subr.bf16.mxu0 %v2086
    %2125 = vmatpush1.bf16.msra.mxu0 %v2085
    %2126 = vmatprep.subr.bf16.mxu0 0
    %2127 = vmatpush2.bf16.msra.mxu0 0
    %2128 = vmatprep.subr.bf16.mxu0 0
    %2129 = vmatpush2.bf16.msra.mxu0 0
    %2130 = vmatprep.subr.bf16.mxu0 0
    %2131 = vmatpush2.bf16.msra.mxu0 0
    %2132 = vmatprep.subr.bf16.mxu0 0
    %2133 = vmatpush2.bf16.msra.mxu0 0
    %2134 = vmatprep.subr.bf16.mxu0 0
    %2135 = vmatpush2.bf16.msra.mxu0 0
    %2136 = vmatprep.subr.bf16.mxu0 0
    %2137 = vmatpush2.bf16.msra.mxu0 0
    %2138 = vmatprep.subr.bf16.mxu0 0
    %2139 = vmatpush2.bf16.msra.mxu0 0
    %2140 = vmatprep.subr.bf16.mxu0 0
    %2141 = vmatpush2.bf16.msra.mxu0 0
    %2142 = vmatprep.mubr.bf16.mxu0 0
    %2143 = vmatmul.mubr.bf16.gmra.mxu0 %v2105
    %v2144 = vpop.f32.mrf.mxu0
    %v2145 = vadd.f32 0.0, %v2144
    %v2146 = vpop.f32.mrf.mxu0
    %v2147 = vadd.f32 0.0, %v2146
    %v2148 = vpop.f32.mrf.mxu0
    %v2149 = vadd.f32 0.0, %v2148
    %v2150 = vpop.f32.mrf.mxu0
    %v2151 = vadd.f32 0.0, %v2150
    %2152 = vmatprep.mubr.bf16.mxu0 0
    %2153 = vmatmul.mubr.bf16.gmra.mxu0 %v2108
    %v2154 = vpop.f32.mrf.mxu0
    %v2155 = vadd.f32 0.0, %v2154
    %v2156 = vpop.f32.mrf.mxu0
    %v2157 = vadd.f32 0.0, %v2156
    %v2158 = vpop.f32.mrf.mxu0
    %v2159 = vadd.f32 0.0, %v2158
    %v2160 = vpop.f32.mrf.mxu0
    %v2161 = vadd.f32 0.0, %v2160
    %2162 = vdwg.mxu0
    %2163 = vmatprep.subr.bf16.mxu0 0
    %2164 = vmatpush1.bf16.msra.mxu0 0
    %2165 = vmatprep.subr.bf16.mxu0 0
    %2166 = vmatpush1.bf16.msra.mxu0 0
    %2167 = vmatprep.subr.bf16.mxu0 0
    %2168 = vmatpush1.bf16.msra.mxu0 0
    %2169 = vmatprep.subr.bf16.mxu0 0
    %2170 = vmatpush1.bf16.msra.mxu0 0
    %2171 = vmatprep.subr.bf16.mxu0 0
    %2172 = vmatpush1.bf16.msra.mxu0 0
    %2173 = vmatprep.subr.bf16.mxu0 0
    %2174 = vmatpush1.bf16.msra.mxu0 0
    %2175 = vmatprep.subr.bf16.mxu0 0
    %2176 = vmatpush1.bf16.msra.mxu0 0
    %2177 = vmatprep.subr.bf16.mxu0 %v2088
    %2178 = vmatpush1.bf16.msra.mxu0 %v2087
    %2179 = vmatprep.subr.bf16.mxu0 0
    %2180 = vmatpush2.bf16.msra.mxu0 0
    %2181 = vmatprep.subr.bf16.mxu0 0
    %2182 = vmatpush2.bf16.msra.mxu0 0
    %2183 = vmatprep.subr.bf16.mxu0 0
    %2184 = vmatpush2.bf16.msra.mxu0 0
    %2185 = vmatprep.subr.bf16.mxu0 0
    %2186 = vmatpush2.bf16.msra.mxu0 0
    %2187 = vmatprep.subr.bf16.mxu0 0
    %2188 = vmatpush2.bf16.msra.mxu0 0
    %2189 = vmatprep.subr.bf16.mxu0 0
    %2190 = vmatpush2.bf16.msra.mxu0 0
    %2191 = vmatprep.subr.bf16.mxu0 0
    %2192 = vmatpush2.bf16.msra.mxu0 0
    %2193 = vmatprep.subr.bf16.mxu0 0
    %2194 = vmatpush2.bf16.msra.mxu0 0
    %2195 = vmatprep.mubr.bf16.mxu0 0
    %2196 = vmatmul.mubr.bf16.gmra.mxu0 %v2105
    %v2197 = vpop.f32.mrf.mxu0
    %v2198 = vadd.f32 0.0, %v2197
    %v2199 = vpop.f32.mrf.mxu0
    %v2200 = vadd.f32 0.0, %v2199
    %v2201 = vpop.f32.mrf.mxu0
    %v2202 = vadd.f32 0.0, %v2201
    %v2203 = vpop.f32.mrf.mxu0
    %v2204 = vadd.f32 0.0, %v2203
    %2205 = vmatprep.mubr.bf16.mxu0 0
    %2206 = vmatmul.mubr.bf16.gmra.mxu0 %v2108
    %v2207 = vpop.f32.mrf.mxu0
    %v2208 = vadd.f32 0.0, %v2207
    %v2209 = vpop.f32.mrf.mxu0
    %v2210 = vadd.f32 0.0, %v2209
    %v2211 = vpop.f32.mrf.mxu0
    %v2212 = vadd.f32 0.0, %v2211
    %v2213 = vpop.f32.mrf.mxu0
    %v2214 = vadd.f32 0.0, %v2213
    %2215 = vdwg.mxu0
    %v2216 = vpack.c.bf16 %v2149, %v2145
    %v2217 = vpack.c.bf16 %v2151, %v2147
    %v2218 = vpack.c.bf16 %v2202, %v2198
    %v2219 = vpack.c.bf16 %v2204, %v2200
    %v2220 = vpack.c.bf16 %v2159, %v2155
    %v2221 = vpack.c.bf16 %v2161, %v2157
    %v2222 = vpack.c.bf16 %v2212, %v2208
    %v2223 = vpack.c.bf16 %v2214, %v2210
    %v2224 = vld [vmem:[#allocation7] sm:$0xff]
    %v2225 = vld [vmem:[#allocation7 + $0x8] sm:$0xff]
    %v2226 = vld [vmem:[#allocation7 + $0x10] sm:$0xff]
    %v2227 = vld [vmem:[#allocation7 + $0x18] sm:$0xff]
    %v2228 = vld [vmem:[#allocation7 + $0x20] sm:$0xff]
    %v2229 = vld [vmem:[#allocation7 + $0x28] sm:$0xff]
    %v2230 = vld [vmem:[#allocation7 + $0x30] sm:$0xff]
    %v2231 = vld [vmem:[#allocation7 + $0x38] sm:$0xff]
    %v2232 = vld [vmem:[#allocation7 + $0x40] sm:$0xff]
    %v2233 = vld [vmem:[#allocation7 + $0x48] sm:$0xff]
    %v2234 = vld [vmem:[#allocation7 + $0x50] sm:$0xff]
    %v2235 = vld [vmem:[#allocation7 + $0x58] sm:$0xff]
    %v2236 = vld [vmem:[#allocation7 + $0x60] sm:$0xff]
    %v2237 = vld [vmem:[#allocation7 + $0x68] sm:$0xff]
    %v2238 = vld [vmem:[#allocation7 + $0x70] sm:$0xff]
    %v2239 = vld [vmem:[#allocation7 + $0x78] sm:$0xff]
    %v2240 = vld [vmem:[#allocation7 + $0x80] sm:$0xff]
    %v2241 = vld [vmem:[#allocation7 + $0x88] sm:$0xff]
    %v2242 = vld [vmem:[#allocation7 + $0x90] sm:$0xff]
    %v2243 = vld [vmem:[#allocation7 + $0x98] sm:$0xff]
    %v2244 = vld [vmem:[#allocation7 + $0xa0] sm:$0xff]
    %v2245 = vld [vmem:[#allocation7 + $0xa8] sm:$0xff]
    %v2246 = vld [vmem:[#allocation7 + $0xb0] sm:$0xff]
    %v2247 = vld [vmem:[#allocation7 + $0xb8] sm:$0xff]
    %v2248 = vld [vmem:[#allocation7 + $0xc0] sm:$0xff]
    %v2249 = vld [vmem:[#allocation7 + $0xc8] sm:$0xff]
    %v2250 = vld [vmem:[#allocation7 + $0xd0] sm:$0xff]
    %v2251 = vld [vmem:[#allocation7 + $0xd8] sm:$0xff]
    %v2252 = vld [vmem:[#allocation7 + $0xe0] sm:$0xff]
    %v2253 = vld [vmem:[#allocation7 + $0xe8] sm:$0xff]
    %v2254 = vld [vmem:[#allocation7 + $0xf0] sm:$0xff]
    %v2255 = vld [vmem:[#allocation7 + $0xf8] sm:$0xff]
    %v2256 = vld [vmem:[#allocation7 + $0x100] sm:$0xff]
    %v2257 = vld [vmem:[#allocation7 + $0x108] sm:$0xff]
    %v2258 = vld [vmem:[#allocation7 + $0x110] sm:$0xff]
    %v2259 = vld [vmem:[#allocation7 + $0x118] sm:$0xff]
    %v2260 = vld [vmem:[#allocation7 + $0x120] sm:$0xff]
    %v2261 = vld [vmem:[#allocation7 + $0x128] sm:$0xff]
    %v2262 = vld [vmem:[#allocation7 + $0x130] sm:$0xff]
    %v2263 = vld [vmem:[#allocation7 + $0x138] sm:$0xff]
    %v2264 = vld [vmem:[#allocation7 + $0x140] sm:$0xff]
    %v2265 = vld [vmem:[#allocation7 + $0x148] sm:$0xff]
    %v2266 = vld [vmem:[#allocation7 + $0x150] sm:$0xff]
    %v2267 = vld [vmem:[#allocation7 + $0x158] sm:$0xff]
    %v2268 = vld [vmem:[#allocation7 + $0x160] sm:$0xff]
    %v2269 = vld [vmem:[#allocation7 + $0x168] sm:$0xff]
    %v2270 = vld [vmem:[#allocation7 + $0x170] sm:$0xff]
    %v2271 = vld [vmem:[#allocation7 + $0x178] sm:$0xff]
    %v2272 = vld [vmem:[#allocation7 + $0x180] sm:$0xff]
    %v2273 = vld [vmem:[#allocation7 + $0x188] sm:$0xff]
    %v2274 = vld [vmem:[#allocation7 + $0x190] sm:$0xff]
    %v2275 = vld [vmem:[#allocation7 + $0x198] sm:$0xff]
    %v2276 = vld [vmem:[#allocation7 + $0x1a0] sm:$0xff]
    %v2277 = vld [vmem:[#allocation7 + $0x1a8] sm:$0xff]
    %v2278 = vld [vmem:[#allocation7 + $0x1b0] sm:$0xff]
    %v2279 = vld [vmem:[#allocation7 + $0x1b8] sm:$0xff]
    %v2280 = vld [vmem:[#allocation7 + $0x1c0] sm:$0xff]
    %v2281 = vld [vmem:[#allocation7 + $0x1c8] sm:$0xff]
    %v2282 = vld [vmem:[#allocation7 + $0x1d0] sm:$0xff]
    %v2283 = vld [vmem:[#allocation7 + $0x1d8] sm:$0xff]
    %v2284 = vld [vmem:[#allocation7 + $0x1e0] sm:$0xff]
    %v2285 = vld [vmem:[#allocation7 + $0x1e8] sm:$0xff]
    %v2286 = vld [vmem:[#allocation7 + $0x1f0] sm:$0xff]
    %v2287 = vld [vmem:[#allocation7 + $0x1f8] sm:$0xff]
    %v2288 = vld [vmem:[#allocation7 + $0x200] sm:$0xff]
    %v2289 = vld [vmem:[#allocation7 + $0x208] sm:$0xff]
    %v2290 = vld [vmem:[#allocation7 + $0x210] sm:$0xff]
    %v2291 = vld [vmem:[#allocation7 + $0x218] sm:$0xff]
    %v2292 = vld [vmem:[#allocation7 + $0x220] sm:$0xff]
    %v2293 = vld [vmem:[#allocation7 + $0x228] sm:$0xff]
    %v2294 = vld [vmem:[#allocation7 + $0x230] sm:$0xff]
    %v2295 = vld [vmem:[#allocation7 + $0x238] sm:$0xff]
    %v2296 = vld [vmem:[#allocation7 + $0x240] sm:$0xff]
    %v2297 = vld [vmem:[#allocation7 + $0x248] sm:$0xff]
    %v2298 = vld [vmem:[#allocation7 + $0x250] sm:$0xff]
    %v2299 = vld [vmem:[#allocation7 + $0x258] sm:$0xff]
    %v2300 = vld [vmem:[#allocation7 + $0x260] sm:$0xff]
    %v2301 = vld [vmem:[#allocation7 + $0x268] sm:$0xff]
    %v2302 = vld [vmem:[#allocation7 + $0x270] sm:$0xff]
    %v2303 = vld [vmem:[#allocation7 + $0x278] sm:$0xff]
    %v2304 = vld [vmem:[#allocation7 + $0x280] sm:$0xff]
    %v2305 = vld [vmem:[#allocation7 + $0x288] sm:$0xff]
    %v2306 = vld [vmem:[#allocation7 + $0x290] sm:$0xff]
    %v2307 = vld [vmem:[#allocation7 + $0x298] sm:$0xff]
    %v2308 = vld [vmem:[#allocation7 + $0x2a0] sm:$0xff]
    %v2309 = vld [vmem:[#allocation7 + $0x2a8] sm:$0xff]
    %v2310 = vld [vmem:[#allocation7 + $0x2b0] sm:$0xff]
    %v2311 = vld [vmem:[#allocation7 + $0x2b8] sm:$0xff]
    %v2312 = vld [vmem:[#allocation7 + $0x2c0] sm:$0xff]
    %v2313 = vld [vmem:[#allocation7 + $0x2c8] sm:$0xff]
    %v2314 = vld [vmem:[#allocation7 + $0x2d0] sm:$0xff]
    %v2315 = vld [vmem:[#allocation7 + $0x2d8] sm:$0xff]
    %v2316 = vld [vmem:[#allocation7 + $0x2e0] sm:$0xff]
    %v2317 = vld [vmem:[#allocation7 + $0x2e8] sm:$0xff]
    %v2318 = vld [vmem:[#allocation7 + $0x2f0] sm:$0xff]
    %v2319 = vld [vmem:[#allocation7 + $0x2f8] sm:$0xff]
    %v2320 = vld [vmem:[#allocation7 + $0x300] sm:$0xff]
    %v2321 = vld [vmem:[#allocation7 + $0x308] sm:$0xff]
    %v2322 = vld [vmem:[#allocation7 + $0x310] sm:$0xff]
    %v2323 = vld [vmem:[#allocation7 + $0x318] sm:$0xff]
    %v2324 = vld [vmem:[#allocation7 + $0x320] sm:$0xff]
    %v2325 = vld [vmem:[#allocation7 + $0x328] sm:$0xff]
    %v2326 = vld [vmem:[#allocation7 + $0x330] sm:$0xff]
    %v2327 = vld [vmem:[#allocation7 + $0x338] sm:$0xff]
    %v2328 = vld [vmem:[#allocation7 + $0x340] sm:$0xff]
    %v2329 = vld [vmem:[#allocation7 + $0x348] sm:$0xff]
    %v2330 = vld [vmem:[#allocation7 + $0x350] sm:$0xff]
    %v2331 = vld [vmem:[#allocation7 + $0x358] sm:$0xff]
    %v2332 = vld [vmem:[#allocation7 + $0x360] sm:$0xff]
    %v2333 = vld [vmem:[#allocation7 + $0x368] sm:$0xff]
    %v2334 = vld [vmem:[#allocation7 + $0x370] sm:$0xff]
    %v2335 = vld [vmem:[#allocation7 + $0x378] sm:$0xff]
    %v2336 = vld [vmem:[#allocation7 + $0x380] sm:$0xff]
    %v2337 = vld [vmem:[#allocation7 + $0x388] sm:$0xff]
    %v2338 = vld [vmem:[#allocation7 + $0x390] sm:$0xff]
    %v2339 = vld [vmem:[#allocation7 + $0x398] sm:$0xff]
    %v2340 = vld [vmem:[#allocation7 + $0x3a0] sm:$0xff]
    %v2341 = vld [vmem:[#allocation7 + $0x3a8] sm:$0xff]
    %v2342 = vld [vmem:[#allocation7 + $0x3b0] sm:$0xff]
    %v2343 = vld [vmem:[#allocation7 + $0x3b8] sm:$0xff]
    %v2344 = vld [vmem:[#allocation7 + $0x3c0] sm:$0xff]
    %v2345 = vld [vmem:[#allocation7 + $0x3c8] sm:$0xff]
    %v2346 = vld [vmem:[#allocation7 + $0x3d0] sm:$0xff]
    %v2347 = vld [vmem:[#allocation7 + $0x3d8] sm:$0xff]
    %v2348 = vld [vmem:[#allocation7 + $0x3e0] sm:$0xff]
    %v2349 = vld [vmem:[#allocation7 + $0x3e8] sm:$0xff]
    %v2350 = vld [vmem:[#allocation7 + $0x3f0] sm:$0xff]
    %v2351 = vld [vmem:[#allocation7 + $0x3f8] sm:$0xff]
    %v2352 = vld [vmem:[#allocation7 + $0x400] sm:$0xff]
    %v2353 = vld [vmem:[#allocation7 + $0x408] sm:$0xff]
    %v2354 = vld [vmem:[#allocation7 + $0x410] sm:$0xff]
    %v2355 = vld [vmem:[#allocation7 + $0x418] sm:$0xff]
    %v2356 = vld [vmem:[#allocation7 + $0x420] sm:$0xff]
    %v2357 = vld [vmem:[#allocation7 + $0x428] sm:$0xff]
    %v2358 = vld [vmem:[#allocation7 + $0x430] sm:$0xff]
    %v2359 = vld [vmem:[#allocation7 + $0x438] sm:$0xff]
    %v2360 = vld [vmem:[#allocation7 + $0x440] sm:$0xff]
    %v2361 = vld [vmem:[#allocation7 + $0x448] sm:$0xff]
    %v2362 = vld [vmem:[#allocation7 + $0x450] sm:$0xff]
    %v2363 = vld [vmem:[#allocation7 + $0x458] sm:$0xff]
    %v2364 = vld [vmem:[#allocation7 + $0x460] sm:$0xff]
    %v2365 = vld [vmem:[#allocation7 + $0x468] sm:$0xff]
    %v2366 = vld [vmem:[#allocation7 + $0x470] sm:$0xff]
    %v2367 = vld [vmem:[#allocation7 + $0x478] sm:$0xff]
    %v2368 = vld [vmem:[#allocation7 + $0x480] sm:$0xff]
    %v2369 = vld [vmem:[#allocation7 + $0x488] sm:$0xff]
    %v2370 = vld [vmem:[#allocation7 + $0x490] sm:$0xff]
    %v2371 = vld [vmem:[#allocation7 + $0x498] sm:$0xff]
    %v2372 = vld [vmem:[#allocation7 + $0x4a0] sm:$0xff]
    %v2373 = vld [vmem:[#allocation7 + $0x4a8] sm:$0xff]
    %v2374 = vld [vmem:[#allocation7 + $0x4b0] sm:$0xff]
    %v2375 = vld [vmem:[#allocation7 + $0x4b8] sm:$0xff]
    %v2376 = vld [vmem:[#allocation7 + $0x4c0] sm:$0xff]
    %v2377 = vld [vmem:[#allocation7 + $0x4c8] sm:$0xff]
    %v2378 = vld [vmem:[#allocation7 + $0x4d0] sm:$0xff]
    %v2379 = vld [vmem:[#allocation7 + $0x4d8] sm:$0xff]
    %v2380 = vld [vmem:[#allocation7 + $0x4e0] sm:$0xff]
    %v2381 = vld [vmem:[#allocation7 + $0x4e8] sm:$0xff]
    %v2382 = vld [vmem:[#allocation7 + $0x4f0] sm:$0xff]
    %v2383 = vld [vmem:[#allocation7 + $0x4f8] sm:$0xff]
    %v2384 = vld [vmem:[#allocation7 + $0x500] sm:$0xff]
    %v2385 = vld [vmem:[#allocation7 + $0x508] sm:$0xff]
    %v2386 = vld [vmem:[#allocation7 + $0x510] sm:$0xff]
    %v2387 = vld [vmem:[#allocation7 + $0x518] sm:$0xff]
    %v2388 = vld [vmem:[#allocation7 + $0x520] sm:$0xff]
    %v2389 = vld [vmem:[#allocation7 + $0x528] sm:$0xff]
    %v2390 = vld [vmem:[#allocation7 + $0x530] sm:$0xff]
    %v2391 = vld [vmem:[#allocation7 + $0x538] sm:$0xff]
    %v2392 = vld [vmem:[#allocation7 + $0x540] sm:$0xff]
    %v2393 = vld [vmem:[#allocation7 + $0x548] sm:$0xff]
    %v2394 = vld [vmem:[#allocation7 + $0x550] sm:$0xff]
    %v2395 = vld [vmem:[#allocation7 + $0x558] sm:$0xff]
    %v2396 = vld [vmem:[#allocation7 + $0x560] sm:$0xff]
    %v2397 = vld [vmem:[#allocation7 + $0x568] sm:$0xff]
    %v2398 = vld [vmem:[#allocation7 + $0x570] sm:$0xff]
    %v2399 = vld [vmem:[#allocation7 + $0x578] sm:$0xff]
    %v2400 = vld [vmem:[#allocation7 + $0x580] sm:$0xff]
    %v2401 = vld [vmem:[#allocation7 + $0x588] sm:$0xff]
    %v2402 = vld [vmem:[#allocation7 + $0x590] sm:$0xff]
    %v2403 = vld [vmem:[#allocation7 + $0x598] sm:$0xff]
    %v2404 = vld [vmem:[#allocation7 + $0x5a0] sm:$0xff]
    %v2405 = vld [vmem:[#allocation7 + $0x5a8] sm:$0xff]
    %v2406 = vld [vmem:[#allocation7 + $0x5b0] sm:$0xff]
    %v2407 = vld [vmem:[#allocation7 + $0x5b8] sm:$0xff]
    %v2408 = vld [vmem:[#allocation7 + $0x5c0] sm:$0xff]
    %v2409 = vld [vmem:[#allocation7 + $0x5c8] sm:$0xff]
    %v2410 = vld [vmem:[#allocation7 + $0x5d0] sm:$0xff]
    %v2411 = vld [vmem:[#allocation7 + $0x5d8] sm:$0xff]
    %v2412 = vld [vmem:[#allocation7 + $0x5e0] sm:$0xff]
    %v2413 = vld [vmem:[#allocation7 + $0x5e8] sm:$0xff]
    %v2414 = vld [vmem:[#allocation7 + $0x5f0] sm:$0xff]
    %v2415 = vld [vmem:[#allocation7 + $0x5f8] sm:$0xff]
    %v2416 = vld [vmem:[%s8] sm:$0x3]
    %v2418 = vlaneseq
    %v2419 = vshrl.u32 %v2418, 7
    %v2420 = vsub.s32 0, %v2419
    %v2421 = vrot.slane %v2416, %v2420
    %v2422 = vlaneseq
    %v2423 = vshrl.u32 %v2422, 7
    %v2424 = vsub.s32 1, %v2423
    %v2425 = vrot.slane %v2416, %v2424
    %v2620 = vunpack.c.l.b16 %v2224
    %v2621 = vunpack.c.h.b16 %v2224
    %v2622 = vunpack.c.l.b16 %v2225
    %v2623 = vunpack.c.h.b16 %v2225
    %v2624 = vunpack.c.l.b16 %v2226
    %v2625 = vunpack.c.h.b16 %v2226
    %v2626 = vunpack.c.l.b16 %v2227
    %v2627 = vunpack.c.h.b16 %v2227
    %v2628 = vunpack.c.l.b16 %v2228
    %v2629 = vunpack.c.h.b16 %v2228
    %v2630 = vunpack.c.l.b16 %v2229
    %v2631 = vunpack.c.h.b16 %v2229
    %v2632 = vunpack.c.l.b16 %v2230
    %v2633 = vunpack.c.h.b16 %v2230
    %v2634 = vunpack.c.l.b16 %v2231
    %v2635 = vunpack.c.h.b16 %v2231
    %v2636 = vunpack.c.l.b16 %v2232
    %v2637 = vunpack.c.h.b16 %v2232
    %v2638 = vunpack.c.l.b16 %v2233
    %v2639 = vunpack.c.h.b16 %v2233
    %v2640 = vunpack.c.l.b16 %v2234
    %v2641 = vunpack.c.h.b16 %v2234
    %v2642 = vunpack.c.l.b16 %v2235
    %v2643 = vunpack.c.h.b16 %v2235
    %v2644 = vunpack.c.l.b16 %v2236
    %v2645 = vunpack.c.h.b16 %v2236
    %v2646 = vunpack.c.l.b16 %v2237
    %v2647 = vunpack.c.h.b16 %v2237
    %v2648 = vunpack.c.l.b16 %v2238
    %v2649 = vunpack.c.h.b16 %v2238
    %v2650 = vunpack.c.l.b16 %v2239
    %v2651 = vunpack.c.h.b16 %v2239
    %v2652 = vunpack.c.l.b16 %v2240
    %v2653 = vunpack.c.h.b16 %v2240
    %v2654 = vunpack.c.l.b16 %v2241
    %v2655 = vunpack.c.h.b16 %v2241
    %v2656 = vunpack.c.l.b16 %v2242
    %v2657 = vunpack.c.h.b16 %v2242
    %v2658 = vunpack.c.l.b16 %v2243
    %v2659 = vunpack.c.h.b16 %v2243
    %v2660 = vunpack.c.l.b16 %v2244
    %v2661 = vunpack.c.h.b16 %v2244
    %v2662 = vunpack.c.l.b16 %v2245
    %v2663 = vunpack.c.h.b16 %v2245
    %v2664 = vunpack.c.l.b16 %v2246
    %v2665 = vunpack.c.h.b16 %v2246
    %v2666 = vunpack.c.l.b16 %v2247
    %v2667 = vunpack.c.h.b16 %v2247
    %v2668 = vunpack.c.l.b16 %v2248
    %v2669 = vunpack.c.h.b16 %v2248
    %v2670 = vunpack.c.l.b16 %v2249
    %v2671 = vunpack.c.h.b16 %v2249
    %v2672 = vunpack.c.l.b16 %v2250
    %v2673 = vunpack.c.h.b16 %v2250
    %v2674 = vunpack.c.l.b16 %v2251
    %v2675 = vunpack.c.h.b16 %v2251
    %v2676 = vunpack.c.l.b16 %v2252
    %v2677 = vunpack.c.h.b16 %v2252
    %v2678 = vunpack.c.l.b16 %v2253
    %v2679 = vunpack.c.h.b16 %v2253
    %v2680 = vunpack.c.l.b16 %v2254
    %v2681 = vunpack.c.h.b16 %v2254
    %v2682 = vunpack.c.l.b16 %v2255
    %v2683 = vunpack.c.h.b16 %v2255
    %v2684 = vunpack.c.l.b16 %v2256
    %v2685 = vunpack.c.h.b16 %v2256
    %v2686 = vunpack.c.l.b16 %v2257
    %v2687 = vunpack.c.h.b16 %v2257
    %v2688 = vunpack.c.l.b16 %v2258
    %v2689 = vunpack.c.h.b16 %v2258
    %v2690 = vunpack.c.l.b16 %v2259
    %v2691 = vunpack.c.h.b16 %v2259
    %v2692 = vunpack.c.l.b16 %v2260
    %v2693 = vunpack.c.h.b16 %v2260
    %v2694 = vunpack.c.l.b16 %v2261
    %v2695 = vunpack.c.h.b16 %v2261
    %v2696 = vunpack.c.l.b16 %v2262
    %v2697 = vunpack.c.h.b16 %v2262
    %v2698 = vunpack.c.l.b16 %v2263
    %v2699 = vunpack.c.h.b16 %v2263
    %v2700 = vunpack.c.l.b16 %v2264
    %v2701 = vunpack.c.h.b16 %v2264
    %v2702 = vunpack.c.l.b16 %v2265
    %v2703 = vunpack.c.h.b16 %v2265
    %v2704 = vunpack.c.l.b16 %v2266
    %v2705 = vunpack.c.h.b16 %v2266
    %v2706 = vunpack.c.l.b16 %v2267
    %v2707 = vunpack.c.h.b16 %v2267
    %v2708 = vunpack.c.l.b16 %v2268
    %v2709 = vunpack.c.h.b16 %v2268
    %v2710 = vunpack.c.l.b16 %v2269
    %v2711 = vunpack.c.h.b16 %v2269
    %v2712 = vunpack.c.l.b16 %v2270
    %v2713 = vunpack.c.h.b16 %v2270
    %v2714 = vunpack.c.l.b16 %v2271
    %v2715 = vunpack.c.h.b16 %v2271
    %v2716 = vunpack.c.l.b16 %v2272
    %v2717 = vunpack.c.h.b16 %v2272
    %v2718 = vunpack.c.l.b16 %v2273
    %v2719 = vunpack.c.h.b16 %v2273
    %v2720 = vunpack.c.l.b16 %v2274
    %v2721 = vunpack.c.h.b16 %v2274
    %v2722 = vunpack.c.l.b16 %v2275
    %v2723 = vunpack.c.h.b16 %v2275
    %v2724 = vunpack.c.l.b16 %v2276
    %v2725 = vunpack.c.h.b16 %v2276
    %v2726 = vunpack.c.l.b16 %v2277
    %v2727 = vunpack.c.h.b16 %v2277
    %v2728 = vunpack.c.l.b16 %v2278
    %v2729 = vunpack.c.h.b16 %v2278
    %v2730 = vunpack.c.l.b16 %v2279
    %v2731 = vunpack.c.h.b16 %v2279
    %v2732 = vunpack.c.l.b16 %v2280
    %v2733 = vunpack.c.h.b16 %v2280
    %v2734 = vunpack.c.l.b16 %v2281
    %v2735 = vunpack.c.h.b16 %v2281
    %v2736 = vunpack.c.l.b16 %v2282
    %v2737 = vunpack.c.h.b16 %v2282
    %v2738 = vunpack.c.l.b16 %v2283
    %v2739 = vunpack.c.h.b16 %v2283
    %v2740 = vunpack.c.l.b16 %v2284
    %v2741 = vunpack.c.h.b16 %v2284
    %v2742 = vunpack.c.l.b16 %v2285
    %v2743 = vunpack.c.h.b16 %v2285
    %v2744 = vunpack.c.l.b16 %v2286
    %v2745 = vunpack.c.h.b16 %v2286
    %v2746 = vunpack.c.l.b16 %v2287
    %v2747 = vunpack.c.h.b16 %v2287
    %v2748 = vunpack.c.l.b16 %v2288
    %v2749 = vunpack.c.h.b16 %v2288
    %v2750 = vunpack.c.l.b16 %v2289
    %v2751 = vunpack.c.h.b16 %v2289
    %v2752 = vunpack.c.l.b16 %v2290
    %v2753 = vunpack.c.h.b16 %v2290
    %v2754 = vunpack.c.l.b16 %v2291
    %v2755 = vunpack.c.h.b16 %v2291
    %v2756 = vunpack.c.l.b16 %v2292
    %v2757 = vunpack.c.h.b16 %v2292
    %v2758 = vunpack.c.l.b16 %v2293
    %v2759 = vunpack.c.h.b16 %v2293
    %v2760 = vunpack.c.l.b16 %v2294
    %v2761 = vunpack.c.h.b16 %v2294
    %v2762 = vunpack.c.l.b16 %v2295
    %v2763 = vunpack.c.h.b16 %v2295
    %v2764 = vunpack.c.l.b16 %v2296
    %v2765 = vunpack.c.h.b16 %v2296
    %v2766 = vunpack.c.l.b16 %v2297
    %v2767 = vunpack.c.h.b16 %v2297
    %v2768 = vunpack.c.l.b16 %v2298
    %v2769 = vunpack.c.h.b16 %v2298
    %v2770 = vunpack.c.l.b16 %v2299
    %v2771 = vunpack.c.h.b16 %v2299
    %v2772 = vunpack.c.l.b16 %v2300
    %v2773 = vunpack.c.h.b16 %v2300
    %v2774 = vunpack.c.l.b16 %v2301
    %v2775 = vunpack.c.h.b16 %v2301
    %v2776 = vunpack.c.l.b16 %v2302
    %v2777 = vunpack.c.h.b16 %v2302
    %v2778 = vunpack.c.l.b16 %v2303
    %v2779 = vunpack.c.h.b16 %v2303
    %v2780 = vunpack.c.l.b16 %v2304
    %v2781 = vunpack.c.h.b16 %v2304
    %v2782 = vunpack.c.l.b16 %v2305
    %v2783 = vunpack.c.h.b16 %v2305
    %v2784 = vunpack.c.l.b16 %v2306
    %v2785 = vunpack.c.h.b16 %v2306
    %v2786 = vunpack.c.l.b16 %v2307
    %v2787 = vunpack.c.h.b16 %v2307
    %v2788 = vunpack.c.l.b16 %v2308
    %v2789 = vunpack.c.h.b16 %v2308
    %v2790 = vunpack.c.l.b16 %v2309
    %v2791 = vunpack.c.h.b16 %v2309
    %v2792 = vunpack.c.l.b16 %v2310
    %v2793 = vunpack.c.h.b16 %v2310
    %v2794 = vunpack.c.l.b16 %v2311
    %v2795 = vunpack.c.h.b16 %v2311
    %v2796 = vunpack.c.l.b16 %v2312
    %v2797 = vunpack.c.h.b16 %v2312
    %v2798 = vunpack.c.l.b16 %v2313
    %v2799 = vunpack.c.h.b16 %v2313
    %v2800 = vunpack.c.l.b16 %v2314
    %v2801 = vunpack.c.h.b16 %v2314
    %v2802 = vunpack.c.l.b16 %v2315
    %v2803 = vunpack.c.h.b16 %v2315
    %v2804 = vunpack.c.l.b16 %v2316
    %v2805 = vunpack.c.h.b16 %v2316
    %v2806 = vunpack.c.l.b16 %v2317
    %v2807 = vunpack.c.h.b16 %v2317
    %v2808 = vunpack.c.l.b16 %v2318
    %v2809 = vunpack.c.h.b16 %v2318
    %v2810 = vunpack.c.l.b16 %v2319
    %v2811 = vunpack.c.h.b16 %v2319
    %v2812 = vunpack.c.l.b16 %v2320
    %v2813 = vunpack.c.h.b16 %v2320
    %v2814 = vunpack.c.l.b16 %v2321
    %v2815 = vunpack.c.h.b16 %v2321
    %v2816 = vunpack.c.l.b16 %v2322
    %v2817 = vunpack.c.h.b16 %v2322
    %v2818 = vunpack.c.l.b16 %v2323
    %v2819 = vunpack.c.h.b16 %v2323
    %v2820 = vunpack.c.l.b16 %v2324
    %v2821 = vunpack.c.h.b16 %v2324
    %v2822 = vunpack.c.l.b16 %v2325
    %v2823 = vunpack.c.h.b16 %v2325
    %v2824 = vunpack.c.l.b16 %v2326
    %v2825 = vunpack.c.h.b16 %v2326
    %v2826 = vunpack.c.l.b16 %v2327
    %v2827 = vunpack.c.h.b16 %v2327
    %v2828 = vunpack.c.l.b16 %v2328
    %v2829 = vunpack.c.h.b16 %v2328
    %v2830 = vunpack.c.l.b16 %v2329
    %v2831 = vunpack.c.h.b16 %v2329
    %v2832 = vunpack.c.l.b16 %v2330
    %v2833 = vunpack.c.h.b16 %v2330
    %v2834 = vunpack.c.l.b16 %v2331
    %v2835 = vunpack.c.h.b16 %v2331
    %v2836 = vunpack.c.l.b16 %v2332
    %v2837 = vunpack.c.h.b16 %v2332
    %v2838 = vunpack.c.l.b16 %v2333
    %v2839 = vunpack.c.h.b16 %v2333
    %v2840 = vunpack.c.l.b16 %v2334
    %v2841 = vunpack.c.h.b16 %v2334
    %v2842 = vunpack.c.l.b16 %v2335
    %v2843 = vunpack.c.h.b16 %v2335
    %v2844 = vunpack.c.l.b16 %v2336
    %v2845 = vunpack.c.h.b16 %v2336
    %v2846 = vunpack.c.l.b16 %v2337
    %v2847 = vunpack.c.h.b16 %v2337
    %v2848 = vunpack.c.l.b16 %v2338
    %v2849 = vunpack.c.h.b16 %v2338
    %v2850 = vunpack.c.l.b16 %v2339
    %v2851 = vunpack.c.h.b16 %v2339
    %v2852 = vunpack.c.l.b16 %v2340
    %v2853 = vunpack.c.h.b16 %v2340
    %v2854 = vunpack.c.l.b16 %v2341
    %v2855 = vunpack.c.h.b16 %v2341
    %v2856 = vunpack.c.l.b16 %v2342
    %v2857 = vunpack.c.h.b16 %v2342
    %v2858 = vunpack.c.l.b16 %v2343
    %v2859 = vunpack.c.h.b16 %v2343
    %v2860 = vunpack.c.l.b16 %v2344
    %v2861 = vunpack.c.h.b16 %v2344
    %v2862 = vunpack.c.l.b16 %v2345
    %v2863 = vunpack.c.h.b16 %v2345
    %v2864 = vunpack.c.l.b16 %v2346
    %v2865 = vunpack.c.h.b16 %v2346
    %v2866 = vunpack.c.l.b16 %v2347
    %v2867 = vunpack.c.h.b16 %v2347
    %v2868 = vunpack.c.l.b16 %v2348
    %v2869 = vunpack.c.h.b16 %v2348
    %v2870 = vunpack.c.l.b16 %v2349
    %v2871 = vunpack.c.h.b16 %v2349
    %v2872 = vunpack.c.l.b16 %v2350
    %v2873 = vunpack.c.h.b16 %v2350
    %v2874 = vunpack.c.l.b16 %v2351
    %v2875 = vunpack.c.h.b16 %v2351
    %v2876 = vunpack.c.l.b16 %v2352
    %v2877 = vunpack.c.h.b16 %v2352
    %v2878 = vunpack.c.l.b16 %v2353
    %v2879 = vunpack.c.h.b16 %v2353
    %v2880 = vunpack.c.l.b16 %v2354
    %v2881 = vunpack.c.h.b16 %v2354
    %v2882 = vunpack.c.l.b16 %v2355
    %v2883 = vunpack.c.h.b16 %v2355
    %v2884 = vunpack.c.l.b16 %v2356
    %v2885 = vunpack.c.h.b16 %v2356
    %v2886 = vunpack.c.l.b16 %v2357
    %v2887 = vunpack.c.h.b16 %v2357
    %v2888 = vunpack.c.l.b16 %v2358
    %v2889 = vunpack.c.h.b16 %v2358
    %v2890 = vunpack.c.l.b16 %v2359
    %v2891 = vunpack.c.h.b16 %v2359
    %v2892 = vunpack.c.l.b16 %v2360
    %v2893 = vunpack.c.h.b16 %v2360
    %v2894 = vunpack.c.l.b16 %v2361
    %v2895 = vunpack.c.h.b16 %v2361
    %v2896 = vunpack.c.l.b16 %v2362
    %v2897 = vunpack.c.h.b16 %v2362
    %v2898 = vunpack.c.l.b16 %v2363
    %v2899 = vunpack.c.h.b16 %v2363
    %v2900 = vunpack.c.l.b16 %v2364
    %v2901 = vunpack.c.h.b16 %v2364
    %v2902 = vunpack.c.l.b16 %v2365
    %v2903 = vunpack.c.h.b16 %v2365
    %v2904 = vunpack.c.l.b16 %v2366
    %v2905 = vunpack.c.h.b16 %v2366
    %v2906 = vunpack.c.l.b16 %v2367
    %v2907 = vunpack.c.h.b16 %v2367
    %v2908 = vunpack.c.l.b16 %v2368
    %v2909 = vunpack.c.h.b16 %v2368
    %v2910 = vunpack.c.l.b16 %v2369
    %v2911 = vunpack.c.h.b16 %v2369
    %v2912 = vunpack.c.l.b16 %v2370
    %v2913 = vunpack.c.h.b16 %v2370
    %v2914 = vunpack.c.l.b16 %v2371
    %v2915 = vunpack.c.h.b16 %v2371
    %v2916 = vunpack.c.l.b16 %v2372
    %v2917 = vunpack.c.h.b16 %v2372
    %v2918 = vunpack.c.l.b16 %v2373
    %v2919 = vunpack.c.h.b16 %v2373
    %v2920 = vunpack.c.l.b16 %v2374
    %v2921 = vunpack.c.h.b16 %v2374
    %v2922 = vunpack.c.l.b16 %v2375
    %v2923 = vunpack.c.h.b16 %v2375
    %v2924 = vunpack.c.l.b16 %v2376
    %v2925 = vunpack.c.h.b16 %v2376
    %v2926 = vunpack.c.l.b16 %v2377
    %v2927 = vunpack.c.h.b16 %v2377
    %v2928 = vunpack.c.l.b16 %v2378
    %v2929 = vunpack.c.h.b16 %v2378
    %v2930 = vunpack.c.l.b16 %v2379
    %v2931 = vunpack.c.h.b16 %v2379
    %v2932 = vunpack.c.l.b16 %v2380
    %v2933 = vunpack.c.h.b16 %v2380
    %v2934 = vunpack.c.l.b16 %v2381
    %v2935 = vunpack.c.h.b16 %v2381
    %v2936 = vunpack.c.l.b16 %v2382
    %v2937 = vunpack.c.h.b16 %v2382
    %v2938 = vunpack.c.l.b16 %v2383
    %v2939 = vunpack.c.h.b16 %v2383
    %v2940 = vunpack.c.l.b16 %v2384
    %v2941 = vunpack.c.h.b16 %v2384
    %v2942 = vunpack.c.l.b16 %v2385
    %v2943 = vunpack.c.h.b16 %v2385
    %v2944 = vunpack.c.l.b16 %v2386
    %v2945 = vunpack.c.h.b16 %v2386
    %v2946 = vunpack.c.l.b16 %v2387
    %v2947 = vunpack.c.h.b16 %v2387
    %v2948 = vunpack.c.l.b16 %v2388
    %v2949 = vunpack.c.h.b16 %v2388
    %v2950 = vunpack.c.l.b16 %v2389
    %v2951 = vunpack.c.h.b16 %v2389
    %v2952 = vunpack.c.l.b16 %v2390
    %v2953 = vunpack.c.h.b16 %v2390
    %v2954 = vunpack.c.l.b16 %v2391
    %v2955 = vunpack.c.h.b16 %v2391
    %v2956 = vunpack.c.l.b16 %v2392
    %v2957 = vunpack.c.h.b16 %v2392
    %v2958 = vunpack.c.l.b16 %v2393
    %v2959 = vunpack.c.h.b16 %v2393
    %v2960 = vunpack.c.l.b16 %v2394
    %v2961 = vunpack.c.h.b16 %v2394
    %v2962 = vunpack.c.l.b16 %v2395
    %v2963 = vunpack.c.h.b16 %v2395
    %v2964 = vunpack.c.l.b16 %v2396
    %v2965 = vunpack.c.h.b16 %v2396
    %v2966 = vunpack.c.l.b16 %v2397
    %v2967 = vunpack.c.h.b16 %v2397
    %v2968 = vunpack.c.l.b16 %v2398
    %v2969 = vunpack.c.h.b16 %v2398
    %v2970 = vunpack.c.l.b16 %v2399
    %v2971 = vunpack.c.h.b16 %v2399
    %v2972 = vunpack.c.l.b16 %v2400
    %v2973 = vunpack.c.h.b16 %v2400
    %v2974 = vunpack.c.l.b16 %v2401
    %v2975 = vunpack.c.h.b16 %v2401
    %v2976 = vunpack.c.l.b16 %v2402
    %v2977 = vunpack.c.h.b16 %v2402
    %v2978 = vunpack.c.l.b16 %v2403
    %v2979 = vunpack.c.h.b16 %v2403
    %v2980 = vunpack.c.l.b16 %v2404
    %v2981 = vunpack.c.h.b16 %v2404
    %v2982 = vunpack.c.l.b16 %v2405
    %v2983 = vunpack.c.h.b16 %v2405
    %v2984 = vunpack.c.l.b16 %v2406
    %v2985 = vunpack.c.h.b16 %v2406
    %v2986 = vunpack.c.l.b16 %v2407
    %v2987 = vunpack.c.h.b16 %v2407
    %v2988 = vunpack.c.l.b16 %v2408
    %v2989 = vunpack.c.h.b16 %v2408
    %v2990 = vunpack.c.l.b16 %v2409
    %v2991 = vunpack.c.h.b16 %v2409
    %v2992 = vunpack.c.l.b16 %v2410
    %v2993 = vunpack.c.h.b16 %v2410
    %v2994 = vunpack.c.l.b16 %v2411
    %v2995 = vunpack.c.h.b16 %v2411
    %v2996 = vunpack.c.l.b16 %v2412
    %v2997 = vunpack.c.h.b16 %v2412
    %v2998 = vunpack.c.l.b16 %v2413
    %v2999 = vunpack.c.h.b16 %v2413
    %v3000 = vunpack.c.l.b16 %v2414
    %v3001 = vunpack.c.h.b16 %v2414
    %v3002 = vunpack.c.l.b16 %v2415
    %v3003 = vunpack.c.h.b16 %v2415
    %v3004 = vpack.c.b16 %v2622, %v2620
    %v3005 = vpack.c.b16 %v2623, %v2621
    %v3006 = vpack.c.b16 %v2626, %v2624
    %v3007 = vpack.c.b16 %v2627, %v2625
    %v3008 = vpack.c.b16 %v2630, %v2628
    %v3009 = vpack.c.b16 %v2631, %v2629
    %v3010 = vpack.c.b16 %v2634, %v2632
    %v3011 = vpack.c.b16 %v2635, %v2633
    %v3012 = vpack.c.b16 %v2638, %v2636
    %v3013 = vpack.c.b16 %v2639, %v2637
    %v3014 = vpack.c.b16 %v2642, %v2640
    %v3015 = vpack.c.b16 %v2643, %v2641
    %v3016 = vpack.c.b16 %v2646, %v2644
    %v3017 = vpack.c.b16 %v2647, %v2645
    %v3018 = vpack.c.b16 %v2650, %v2648
    %v3019 = vpack.c.b16 %v2651, %v2649
    %v3020 = vpack.c.b16 %v2654, %v2652
    %v3021 = vpack.c.b16 %v2655, %v2653
    %v3022 = vpack.c.b16 %v2658, %v2656
    %v3023 = vpack.c.b16 %v2659, %v2657
    %v3024 = vpack.c.b16 %v2662, %v2660
    %v3025 = vpack.c.b16 %v2663, %v2661
    %v3026 = vpack.c.b16 %v2666, %v2664
    %v3027 = vpack.c.b16 %v2667, %v2665
    %v3028 = vpack.c.b16 %v2670, %v2668
    %v3029 = vpack.c.b16 %v2671, %v2669
    %v3030 = vpack.c.b16 %v2674, %v2672
    %v3031 = vpack.c.b16 %v2675, %v2673
    %v3032 = vpack.c.b16 %v2678, %v2676
    %v3033 = vpack.c.b16 %v2679, %v2677
    %v3034 = vpack.c.b16 %v2682, %v2680
    %v3035 = vpack.c.b16 %v2683, %v2681
    %v3036 = vpack.c.b16 %v2686, %v2684
    %v3037 = vpack.c.b16 %v2687, %v2685
    %v3038 = vpack.c.b16 %v2690, %v2688
    %v3039 = vpack.c.b16 %v2691, %v2689
    %v3040 = vpack.c.b16 %v2694, %v2692
    %v3041 = vpack.c.b16 %v2695, %v2693
    %v3042 = vpack.c.b16 %v2698, %v2696
    %v3043 = vpack.c.b16 %v2699, %v2697
    %v3044 = vpack.c.b16 %v2702, %v2700
    %v3045 = vpack.c.b16 %v2703, %v2701
    %v3046 = vpack.c.b16 %v2706, %v2704
    %v3047 = vpack.c.b16 %v2707, %v2705
    %v3048 = vpack.c.b16 %v2710, %v2708
    %v3049 = vpack.c.b16 %v2711, %v2709
    %v3050 = vpack.c.b16 %v2714, %v2712
    %v3051 = vpack.c.b16 %v2715, %v2713
    %v3052 = vpack.c.b16 %v2718, %v2716
    %v3053 = vpack.c.b16 %v2719, %v2717
    %v3054 = vpack.c.b16 %v2722, %v2720
    %v3055 = vpack.c.b16 %v2723, %v2721
    %v3056 = vpack.c.b16 %v2726, %v2724
    %v3057 = vpack.c.b16 %v2727, %v2725
    %v3058 = vpack.c.b16 %v2730, %v2728
    %v3059 = vpack.c.b16 %v2731, %v2729
    %v3060 = vpack.c.b16 %v2734, %v2732
    %v3061 = vpack.c.b16 %v2735, %v2733
    %v3062 = vpack.c.b16 %v2738, %v2736
    %v3063 = vpack.c.b16 %v2739, %v2737
    %v3064 = vpack.c.b16 %v2742, %v2740
    %v3065 = vpack.c.b16 %v2743, %v2741
    %v3066 = vpack.c.b16 %v2746, %v2744
    %v3067 = vpack.c.b16 %v2747, %v2745
    %v3068 = vpack.c.b16 %v2750, %v2748
    %v3069 = vpack.c.b16 %v2751, %v2749
    %v3070 = vpack.c.b16 %v2754, %v2752
    %v3071 = vpack.c.b16 %v2755, %v2753
    %v3072 = vpack.c.b16 %v2758, %v2756
    %v3073 = vpack.c.b16 %v2759, %v2757
    %v3074 = vpack.c.b16 %v2762, %v2760
    %v3075 = vpack.c.b16 %v2763, %v2761
    %v3076 = vpack.c.b16 %v2766, %v2764
    %v3077 = vpack.c.b16 %v2767, %v2765
    %v3078 = vpack.c.b16 %v2770, %v2768
    %v3079 = vpack.c.b16 %v2771, %v2769
    %v3080 = vpack.c.b16 %v2774, %v2772
    %v3081 = vpack.c.b16 %v2775, %v2773
    %v3082 = vpack.c.b16 %v2778, %v2776
    %v3083 = vpack.c.b16 %v2779, %v2777
    %v3084 = vpack.c.b16 %v2782, %v2780
    %v3085 = vpack.c.b16 %v2783, %v2781
    %v3086 = vpack.c.b16 %v2786, %v2784
    %v3087 = vpack.c.b16 %v2787, %v2785
    %v3088 = vpack.c.b16 %v2790, %v2788
    %v3089 = vpack.c.b16 %v2791, %v2789
    %v3090 = vpack.c.b16 %v2794, %v2792
    %v3091 = vpack.c.b16 %v2795, %v2793
    %v3092 = vpack.c.b16 %v2798, %v2796
    %v3093 = vpack.c.b16 %v2799, %v2797
    %v3094 = vpack.c.b16 %v2802, %v2800
    %v3095 = vpack.c.b16 %v2803, %v2801
    %v3096 = vpack.c.b16 %v2806, %v2804
    %v3097 = vpack.c.b16 %v2807, %v2805
    %v3098 = vpack.c.b16 %v2810, %v2808
    %v3099 = vpack.c.b16 %v2811, %v2809
    %v3100 = vpack.c.b16 %v2814, %v2812
    %v3101 = vpack.c.b16 %v2815, %v2813
    %v3102 = vpack.c.b16 %v2818, %v2816
    %v3103 = vpack.c.b16 %v2819, %v2817
    %v3104 = vpack.c.b16 %v2822, %v2820
    %v3105 = vpack.c.b16 %v2823, %v2821
    %v3106 = vpack.c.b16 %v2826, %v2824
    %v3107 = vpack.c.b16 %v2827, %v2825
    %v3108 = vpack.c.b16 %v2830, %v2828
    %v3109 = vpack.c.b16 %v2831, %v2829
    %v3110 = vpack.c.b16 %v2834, %v2832
    %v3111 = vpack.c.b16 %v2835, %v2833
    %v3112 = vpack.c.b16 %v2838, %v2836
    %v3113 = vpack.c.b16 %v2839, %v2837
    %v3114 = vpack.c.b16 %v2842, %v2840
    %v3115 = vpack.c.b16 %v2843, %v2841
    %v3116 = vpack.c.b16 %v2846, %v2844
    %v3117 = vpack.c.b16 %v2847, %v2845
    %v3118 = vpack.c.b16 %v2850, %v2848
    %v3119 = vpack.c.b16 %v2851, %v2849
    %v3120 = vpack.c.b16 %v2854, %v2852
    %v3121 = vpack.c.b16 %v2855, %v2853
    %v3122 = vpack.c.b16 %v2858, %v2856
    %v3123 = vpack.c.b16 %v2859, %v2857
    %v3124 = vpack.c.b16 %v2862, %v2860
    %v3125 = vpack.c.b16 %v2863, %v2861
    %v3126 = vpack.c.b16 %v2866, %v2864
    %v3127 = vpack.c.b16 %v2867, %v2865
    %v3128 = vpack.c.b16 %v2870, %v2868
    %v3129 = vpack.c.b16 %v2871, %v2869
    %v3130 = vpack.c.b16 %v2874, %v2872
    %v3131 = vpack.c.b16 %v2875, %v2873
    %v3132 = vpack.c.b16 %v2878, %v2876
    %v3133 = vpack.c.b16 %v2879, %v2877
    %v3134 = vpack.c.b16 %v2882, %v2880
    %v3135 = vpack.c.b16 %v2883, %v2881
    %v3136 = vpack.c.b16 %v2886, %v2884
    %v3137 = vpack.c.b16 %v2887, %v2885
    %v3138 = vpack.c.b16 %v2890, %v2888
    %v3139 = vpack.c.b16 %v2891, %v2889
    %v3140 = vpack.c.b16 %v2894, %v2892
    %v3141 = vpack.c.b16 %v2895, %v2893
    %v3142 = vpack.c.b16 %v2898, %v2896
    %v3143 = vpack.c.b16 %v2899, %v2897
    %v3144 = vpack.c.b16 %v2902, %v2900
    %v3145 = vpack.c.b16 %v2903, %v2901
    %v3146 = vpack.c.b16 %v2906, %v2904
    %v3147 = vpack.c.b16 %v2907, %v2905
    %v3148 = vpack.c.b16 %v2910, %v2908
    %v3149 = vpack.c.b16 %v2911, %v2909
    %v3150 = vpack.c.b16 %v2914, %v2912
    %v3151 = vpack.c.b16 %v2915, %v2913
    %v3152 = vpack.c.b16 %v2918, %v2916
    %v3153 = vpack.c.b16 %v2919, %v2917
    %v3154 = vpack.c.b16 %v2922, %v2920
    %v3155 = vpack.c.b16 %v2923, %v2921
    %v3156 = vpack.c.b16 %v2926, %v2924
    %v3157 = vpack.c.b16 %v2927, %v2925
    %v3158 = vpack.c.b16 %v2930, %v2928
    %v3159 = vpack.c.b16 %v2931, %v2929
    %v3160 = vpack.c.b16 %v2934, %v2932
    %v3161 = vpack.c.b16 %v2935, %v2933
    %v3162 = vpack.c.b16 %v2938, %v2936
    %v3163 = vpack.c.b16 %v2939, %v2937
    %v3164 = vpack.c.b16 %v2942, %v2940
    %v3165 = vpack.c.b16 %v2943, %v2941
    %v3166 = vpack.c.b16 %v2946, %v2944
    %v3167 = vpack.c.b16 %v2947, %v2945
    %v3168 = vpack.c.b16 %v2950, %v2948
    %v3169 = vpack.c.b16 %v2951, %v2949
    %v3170 = vpack.c.b16 %v2954, %v2952
    %v3171 = vpack.c.b16 %v2955, %v2953
    %v3172 = vpack.c.b16 %v2958, %v2956
    %v3173 = vpack.c.b16 %v2959, %v2957
    %v3174 = vpack.c.b16 %v2962, %v2960
    %v3175 = vpack.c.b16 %v2963, %v2961
    %v3176 = vpack.c.b16 %v2966, %v2964
    %v3177 = vpack.c.b16 %v2967, %v2965
    %v3178 = vpack.c.b16 %v2970, %v2968
    %v3179 = vpack.c.b16 %v2971, %v2969
    %v3180 = vpack.c.b16 %v2974, %v2972
    %v3181 = vpack.c.b16 %v2975, %v2973
    %v3182 = vpack.c.b16 %v2978, %v2976
    %v3183 = vpack.c.b16 %v2979, %v2977
    %v3184 = vpack.c.b16 %v2982, %v2980
    %v3185 = vpack.c.b16 %v2983, %v2981
    %v3186 = vpack.c.b16 %v2986, %v2984
    %v3187 = vpack.c.b16 %v2987, %v2985
    %v3188 = vpack.c.b16 %v2990, %v2988
    %v3189 = vpack.c.b16 %v2991, %v2989
    %v3190 = vpack.c.b16 %v2994, %v2992
    %v3191 = vpack.c.b16 %v2995, %v2993
    %v3192 = vpack.c.b16 %v2998, %v2996
    %v3193 = vpack.c.b16 %v2999, %v2997
    %v3194 = vpack.c.b16 %v3002, %v3000
    %v3195 = vpack.c.b16 %v3003, %v3001
    %3388 = vmatprep.subr.bf16.mxu0 %v3019
    %3389 = vmatpush1.bf16.msra.mxu0 %v3018
    %3390 = vmatprep.subr.bf16.mxu0 %v3017
    %3391 = vmatpush1.bf16.msra.mxu0 %v3016
    %3392 = vmatprep.subr.bf16.mxu0 %v3015
    %3393 = vmatpush1.bf16.msra.mxu0 %v3014
    %3394 = vmatprep.subr.bf16.mxu0 %v3013
    %3395 = vmatpush1.bf16.msra.mxu0 %v3012
    %3396 = vmatprep.subr.bf16.mxu0 %v3011
    %3397 = vmatpush1.bf16.msra.mxu0 %v3010
    %3398 = vmatprep.subr.bf16.mxu0 %v3009
    %3399 = vmatpush1.bf16.msra.mxu0 %v3008
    %3400 = vmatprep.subr.bf16.mxu0 %v3007
    %3401 = vmatpush1.bf16.msra.mxu0 %v3006
    %3402 = vmatprep.subr.bf16.mxu0 %v3005
    %3403 = vmatpush1.bf16.msra.mxu0 %v3004
    %3404 = vmatprep.subr.bf16.mxu0 %v3035
    %3405 = vmatpush2.bf16.msra.mxu0 %v3034
    %3406 = vmatprep.subr.bf16.mxu0 %v3033
    %3407 = vmatpush2.bf16.msra.mxu0 %v3032
    %3408 = vmatprep.subr.bf16.mxu0 %v3031
    %3409 = vmatpush2.bf16.msra.mxu0 %v3030
    %3410 = vmatprep.subr.bf16.mxu0 %v3029
    %3411 = vmatpush2.bf16.msra.mxu0 %v3028
    %3412 = vmatprep.subr.bf16.mxu0 %v3027
    %3413 = vmatpush2.bf16.msra.mxu0 %v3026
    %3414 = vmatprep.subr.bf16.mxu0 %v3025
    %3415 = vmatpush2.bf16.msra.mxu0 %v3024
    %3416 = vmatprep.subr.bf16.mxu0 %v3023
    %3417 = vmatpush2.bf16.msra.mxu0 %v3022
    %3418 = vmatprep.subr.bf16.mxu0 %v3021
    %3419 = vmatpush2.bf16.msra.mxu0 %v3020
    %3420 = vmatprep.mubr.bf16.mxu0 %v2086
    %3421 = vmatmul.mubr.bf16.gmra.mxu0 %v2085
    %v3422 = vpop.f32.mrf.mxu0
    %v3423 = vadd.f32 %v2421, %v3422
    %v3424 = vpop.f32.mrf.mxu0
    %v3425 = vadd.f32 %v2425, %v3424
    %v3426 = vpop.f32.mrf.mxu0
    %v3427 = vadd.f32 %v2421, %v3426
    %v3428 = vpop.f32.mrf.mxu0
    %v3429 = vadd.f32 %v2425, %v3428
    %3430 = vdwg.mxu0
    %3431 = vmatprep.subr.bf16.mxu0 %v3051
    %3432 = vmatpush1.bf16.msra.mxu0 %v3050
    %3433 = vmatprep.subr.bf16.mxu0 %v3049
    %3434 = vmatpush1.bf16.msra.mxu0 %v3048
    %3435 = vmatprep.subr.bf16.mxu0 %v3047
    %3436 = vmatpush1.bf16.msra.mxu0 %v3046
    %3437 = vmatprep.subr.bf16.mxu0 %v3045
    %3438 = vmatpush1.bf16.msra.mxu0 %v3044
    %3439 = vmatprep.subr.bf16.mxu0 %v3043
    %3440 = vmatpush1.bf16.msra.mxu0 %v3042
    %3441 = vmatprep.subr.bf16.mxu0 %v3041
    %3442 = vmatpush1.bf16.msra.mxu0 %v3040
    %3443 = vmatprep.subr.bf16.mxu0 %v3039
    %3444 = vmatpush1.bf16.msra.mxu0 %v3038
    %3445 = vmatprep.subr.bf16.mxu0 %v3037
    %3446 = vmatpush1.bf16.msra.mxu0 %v3036
    %3447 = vmatprep.subr.bf16.mxu0 %v3067
    %3448 = vmatpush2.bf16.msra.mxu0 %v3066
    %3449 = vmatprep.subr.bf16.mxu0 %v3065
    %3450 = vmatpush2.bf16.msra.mxu0 %v3064
    %3451 = vmatprep.subr.bf16.mxu0 %v3063
    %3452 = vmatpush2.bf16.msra.mxu0 %v3062
    %3453 = vmatprep.subr.bf16.mxu0 %v3061
    %3454 = vmatpush2.bf16.msra.mxu0 %v3060
    %3455 = vmatprep.subr.bf16.mxu0 %v3059
    %3456 = vmatpush2.bf16.msra.mxu0 %v3058
    %3457 = vmatprep.subr.bf16.mxu0 %v3057
    %3458 = vmatpush2.bf16.msra.mxu0 %v3056
    %3459 = vmatprep.subr.bf16.mxu0 %v3055
    %3460 = vmatpush2.bf16.msra.mxu0 %v3054
    %3461 = vmatprep.subr.bf16.mxu0 %v3053
    %3462 = vmatpush2.bf16.msra.mxu0 %v3052
    %3463 = vmatprep.mubr.bf16.mxu0 %v2088
    %3464 = vmatmul.mubr.bf16.gmra.mxu0 %v2087
    %v3465 = vpop.f32.mrf.mxu0
    %v3466 = vadd.f32 %v3423, %v3465
    %v3467 = vpop.f32.mrf.mxu0
    %v3468 = vadd.f32 %v3425, %v3467
    %v3469 = vpop.f32.mrf.mxu0
    %v3470 = vadd.f32 %v3427, %v3469
    %v3471 = vpop.f32.mrf.mxu0
    %v3472 = vadd.f32 %v3429, %v3471
    %3473 = vdwg.mxu0
    %3474 = vmatprep.subr.bf16.mxu0 %v3083
    %3475 = vmatpush1.bf16.msra.mxu0 %v3082
    %3476 = vmatprep.subr.bf16.mxu0 %v3081
    %3477 = vmatpush1.bf16.msra.mxu0 %v3080
    %3478 = vmatprep.subr.bf16.mxu0 %v3079
    %3479 = vmatpush1.bf16.msra.mxu0 %v3078
    %3480 = vmatprep.subr.bf16.mxu0 %v3077
    %3481 = vmatpush1.bf16.msra.mxu0 %v3076
    %3482 = vmatprep.subr.bf16.mxu0 %v3075
    %3483 = vmatpush1.bf16.msra.mxu0 %v3074
    %3484 = vmatprep.subr.bf16.mxu0 %v3073
    %3485 = vmatpush1.bf16.msra.mxu0 %v3072
    %3486 = vmatprep.subr.bf16.mxu0 %v3071
    %3487 = vmatpush1.bf16.msra.mxu0 %v3070
    %3488 = vmatprep.subr.bf16.mxu0 %v3069
    %3489 = vmatpush1.bf16.msra.mxu0 %v3068
    %3490 = vmatprep.subr.bf16.mxu0 %v3099
    %3491 = vmatpush2.bf16.msra.mxu0 %v3098
    %3492 = vmatprep.subr.bf16.mxu0 %v3097
    %3493 = vmatpush2.bf16.msra.mxu0 %v3096
    %3494 = vmatprep.subr.bf16.mxu0 %v3095
    %3495 = vmatpush2.bf16.msra.mxu0 %v3094
    %3496 = vmatprep.subr.bf16.mxu0 %v3093
    %3497 = vmatpush2.bf16.msra.mxu0 %v3092
    %3498 = vmatprep.subr.bf16.mxu0 %v3091
    %3499 = vmatpush2.bf16.msra.mxu0 %v3090
    %3500 = vmatprep.subr.bf16.mxu0 %v3089
    %3501 = vmatpush2.bf16.msra.mxu0 %v3088
    %3502 = vmatprep.subr.bf16.mxu0 %v3087
    %3503 = vmatpush2.bf16.msra.mxu0 %v3086
    %3504 = vmatprep.subr.bf16.mxu0 %v3085
    %3505 = vmatpush2.bf16.msra.mxu0 %v3084
    %3506 = vmatprep.mubr.bf16.mxu0 %v2217
    %3507 = vmatmul.mubr.bf16.gmra.mxu0 %v2216
    %v3508 = vpop.f32.mrf.mxu0
    %v3509 = vadd.f32 %v3466, %v3508
    %v3510 = vpop.f32.mrf.mxu0
    %v3511 = vadd.f32 %v3468, %v3510
    %v3512 = vpop.f32.mrf.mxu0
    %v3513 = vadd.f32 %v3470, %v3512
    %v3514 = vpop.f32.mrf.mxu0
    %v3515 = vadd.f32 %v3472, %v3514
    %3516 = vdwg.mxu0
    %3517 = vmatprep.subr.bf16.mxu0 %v3115
    %3518 = vmatpush1.bf16.msra.mxu0 %v3114
    %3519 = vmatprep.subr.bf16.mxu0 %v3113
    %3520 = vmatpush1.bf16.msra.mxu0 %v3112
    %3521 = vmatprep.subr.bf16.mxu0 %v3111
    %3522 = vmatpush1.bf16.msra.mxu0 %v3110
    %3523 = vmatprep.subr.bf16.mxu0 %v3109
    %3524 = vmatpush1.bf16.msra.mxu0 %v3108
    %3525 = vmatprep.subr.bf16.mxu0 %v3107
    %3526 = vmatpush1.bf16.msra.mxu0 %v3106
    %3527 = vmatprep.subr.bf16.mxu0 %v3105
    %3528 = vmatpush1.bf16.msra.mxu0 %v3104
    %3529 = vmatprep.subr.bf16.mxu0 %v3103
    %3530 = vmatpush1.bf16.msra.mxu0 %v3102
    %3531 = vmatprep.subr.bf16.mxu0 %v3101
    %3532 = vmatpush1.bf16.msra.mxu0 %v3100
    %3533 = vmatprep.subr.bf16.mxu0 %v3131
    %3534 = vmatpush2.bf16.msra.mxu0 %v3130
    %3535 = vmatprep.subr.bf16.mxu0 %v3129
    %3536 = vmatpush2.bf16.msra.mxu0 %v3128
    %3537 = vmatprep.subr.bf16.mxu0 %v3127
    %3538 = vmatpush2.bf16.msra.mxu0 %v3126
    %3539 = vmatprep.subr.bf16.mxu0 %v3125
    %3540 = vmatpush2.bf16.msra.mxu0 %v3124
    %3541 = vmatprep.subr.bf16.mxu0 %v3123
    %3542 = vmatpush2.bf16.msra.mxu0 %v3122
    %3543 = vmatprep.subr.bf16.mxu0 %v3121
    %3544 = vmatpush2.bf16.msra.mxu0 %v3120
    %3545 = vmatprep.subr.bf16.mxu0 %v3119
    %3546 = vmatpush2.bf16.msra.mxu0 %v3118
    %3547 = vmatprep.subr.bf16.mxu0 %v3117
    %3548 = vmatpush2.bf16.msra.mxu0 %v3116
    %3549 = vmatprep.mubr.bf16.mxu0 %v2219
    %3550 = vmatmul.mubr.bf16.gmra.mxu0 %v2218
    %v3551 = vpop.f32.mrf.mxu0
    %v3552 = vadd.f32 %v3509, %v3551
    %v3553 = vpop.f32.mrf.mxu0
    %v3554 = vadd.f32 %v3511, %v3553
    %v3555 = vpop.f32.mrf.mxu0
    %v3556 = vadd.f32 %v3513, %v3555
    %v3557 = vpop.f32.mrf.mxu0
    %v3558 = vadd.f32 %v3515, %v3557
    %3559 = vdwg.mxu0
    %3560 = vmatprep.subr.bf16.mxu0 %v3147
    %3561 = vmatpush1.bf16.msra.mxu0 %v3146
    %3562 = vmatprep.subr.bf16.mxu0 %v3145
    %3563 = vmatpush1.bf16.msra.mxu0 %v3144
    %3564 = vmatprep.subr.bf16.mxu0 %v3143
    %3565 = vmatpush1.bf16.msra.mxu0 %v3142
    %3566 = vmatprep.subr.bf16.mxu0 %v3141
    %3567 = vmatpush1.bf16.msra.mxu0 %v3140
    %3568 = vmatprep.subr.bf16.mxu0 %v3139
    %3569 = vmatpush1.bf16.msra.mxu0 %v3138
    %3570 = vmatprep.subr.bf16.mxu0 %v3137
    %3571 = vmatpush1.bf16.msra.mxu0 %v3136
    %3572 = vmatprep.subr.bf16.mxu0 %v3135
    %3573 = vmatpush1.bf16.msra.mxu0 %v3134
    %3574 = vmatprep.subr.bf16.mxu0 %v3133
    %3575 = vmatpush1.bf16.msra.mxu0 %v3132
    %3576 = vmatprep.subr.bf16.mxu0 %v3163
    %3577 = vmatpush2.bf16.msra.mxu0 %v3162
    %3578 = vmatprep.subr.bf16.mxu0 %v3161
    %3579 = vmatpush2.bf16.msra.mxu0 %v3160
    %3580 = vmatprep.subr.bf16.mxu0 %v3159
    %3581 = vmatpush2.bf16.msra.mxu0 %v3158
    %3582 = vmatprep.subr.bf16.mxu0 %v3157
    %3583 = vmatpush2.bf16.msra.mxu0 %v3156
    %3584 = vmatprep.subr.bf16.mxu0 %v3155
    %3585 = vmatpush2.bf16.msra.mxu0 %v3154
    %3586 = vmatprep.subr.bf16.mxu0 %v3153
    %3587 = vmatpush2.bf16.msra.mxu0 %v3152
    %3588 = vmatprep.subr.bf16.mxu0 %v3151
    %3589 = vmatpush2.bf16.msra.mxu0 %v3150
    %3590 = vmatprep.subr.bf16.mxu0 %v3149
    %3591 = vmatpush2.bf16.msra.mxu0 %v3148
    %3592 = vmatprep.mubr.bf16.mxu0 %v2221
    %3593 = vmatmul.mubr.bf16.gmra.mxu0 %v2220
    %v3594 = vpop.f32.mrf.mxu0
    %v3595 = vadd.f32 %v3552, %v3594
    %v3596 = vpop.f32.mrf.mxu0
    %v3597 = vadd.f32 %v3554, %v3596
    %v3598 = vpop.f32.mrf.mxu0
    %v3599 = vadd.f32 %v3556, %v3598
    %v3600 = vpop.f32.mrf.mxu0
    %v3601 = vadd.f32 %v3558, %v3600
    %3602 = vdwg.mxu0
    %3603 = vmatprep.subr.bf16.mxu0 %v3179
    %3604 = vmatpush1.bf16.msra.mxu0 %v3178
    %3605 = vmatprep.subr.bf16.mxu0 %v3177
    %3606 = vmatpush1.bf16.msra.mxu0 %v3176
    %3607 = vmatprep.subr.bf16.mxu0 %v3175
    %3608 = vmatpush1.bf16.msra.mxu0 %v3174
    %3609 = vmatprep.subr.bf16.mxu0 %v3173
    %3610 = vmatpush1.bf16.msra.mxu0 %v3172
    %3611 = vmatprep.subr.bf16.mxu0 %v3171
    %3612 = vmatpush1.bf16.msra.mxu0 %v3170
    %3613 = vmatprep.subr.bf16.mxu0 %v3169
    %3614 = vmatpush1.bf16.msra.mxu0 %v3168
    %3615 = vmatprep.subr.bf16.mxu0 %v3167
    %3616 = vmatpush1.bf16.msra.mxu0 %v3166
    %3617 = vmatprep.subr.bf16.mxu0 %v3165
    %3618 = vmatpush1.bf16.msra.mxu0 %v3164
    %3619 = vmatprep.subr.bf16.mxu0 %v3195
    %3620 = vmatpush2.bf16.msra.mxu0 %v3194
    %3621 = vmatprep.subr.bf16.mxu0 %v3193
    %3622 = vmatpush2.bf16.msra.mxu0 %v3192
    %3623 = vmatprep.subr.bf16.mxu0 %v3191
    %3624 = vmatpush2.bf16.msra.mxu0 %v3190
    %3625 = vmatprep.subr.bf16.mxu0 %v3189
    %3626 = vmatpush2.bf16.msra.mxu0 %v3188
    %3627 = vmatprep.subr.bf16.mxu0 %v3187
    %3628 = vmatpush2.bf16.msra.mxu0 %v3186
    %3629 = vmatprep.subr.bf16.mxu0 %v3185
    %3630 = vmatpush2.bf16.msra.mxu0 %v3184
    %3631 = vmatprep.subr.bf16.mxu0 %v3183
    %3632 = vmatpush2.bf16.msra.mxu0 %v3182
    %3633 = vmatprep.subr.bf16.mxu0 %v3181
    %3634 = vmatpush2.bf16.msra.mxu0 %v3180
    %3635 = vmatprep.mubr.bf16.mxu0 %v2223
    %3636 = vmatmul.mubr.bf16.gmra.mxu0 %v2222
    %v3637 = vpop.f32.mrf.mxu0
    %v3638 = vadd.f32 %v3595, %v3637
    %v3639 = vpop.f32.mrf.mxu0
    %v3640 = vadd.f32 %v3597, %v3639
    %v3641 = vpop.f32.mrf.mxu0
    %v3642 = vadd.f32 %v3599, %v3641
    %v3643 = vpop.f32.mrf.mxu0
    %v3644 = vadd.f32 %v3601, %v3643
    %3645 = vdwg.mxu0
    %v3646 = vmax.f32 %v3638, 0.0
    %v3647 = vmax.f32 %v3640, 0.0
    %v3648 = vmax.f32 %v3642, 0.0
    %v3649 = vmax.f32 %v3644, 0.0
    %v3650 = vld [vmem:[%s2] sm:$0xff]
    %v3652 = vsel %vm117, %v3650, 0
    %3654 = vmatprep.subr.mxu0 0.0
    %3655 = vmatpush1.msra.mxu0 0.0
    %3656 = vmatprep.subr.mxu0 0.0
    %3657 = vmatpush1.msra.mxu0 0.0
    %3658 = vmatprep.subr.mxu0 0.0
    %3659 = vmatpush1.msra.mxu0 0.0
    %3660 = vmatprep.subr.mxu0 0.0
    %3661 = vmatpush1.msra.mxu0 0.0
    %3662 = vmatprep.subr.mxu0 0.0
    %3663 = vmatpush1.msra.mxu0 0.0
    %3664 = vmatprep.subr.mxu0 0.0
    %3665 = vmatpush1.msra.mxu0 0.0
    %3666 = vmatprep.subr.mxu0 0.0
    %3667 = vmatpush1.msra.mxu0 0.0
    %3668 = vmatprep.subr.mxu0 0.0
    %3669 = vmatpush1.msra.mxu0 0.0
    %3670 = vmatprep.subr.mxu0 0.0
    %3671 = vmatpush1.msra.mxu0 0.0
    %3672 = vmatprep.subr.mxu0 0.0
    %3673 = vmatpush1.msra.mxu0 0.0
    %3674 = vmatprep.subr.mxu0 0.0
    %3675 = vmatpush1.msra.mxu0 0.0
    %3676 = vmatprep.subr.mxu0 0.0
    %3677 = vmatpush1.msra.mxu0 0.0
    %3678 = vmatprep.subr.mxu0 0.0
    %3679 = vmatpush1.msra.mxu0 0.0
    %3680 = vmatprep.subr.mxu0 0.0
    %3681 = vmatpush1.msra.mxu0 0.0
    %3682 = vmatprep.subr.mxu0 %v3649
    %3683 = vmatpush1.msra.mxu0 %v3648
    %3684 = vmatprep.subr.mxu0 %v3647
    %3685 = vmatpush1.msra.mxu0 %v3646
    %3686 = vmatprep.subr.mxu0 0.0
    %3687 = vmatpush2.msra.mxu0 0.0
    %3688 = vmatprep.subr.mxu0 0.0
    %3689 = vmatpush2.msra.mxu0 0.0
    %3690 = vmatprep.subr.mxu0 0.0
    %3691 = vmatpush2.msra.mxu0 0.0
    %3692 = vmatprep.subr.mxu0 0.0
    %3693 = vmatpush2.msra.mxu0 0.0
    %3694 = vmatprep.subr.mxu0 0.0
    %3695 = vmatpush2.msra.mxu0 0.0
    %3696 = vmatprep.subr.mxu0 0.0
    %3697 = vmatpush2.msra.mxu0 0.0
    %3698 = vmatprep.subr.mxu0 0.0
    %3699 = vmatpush2.msra.mxu0 0.0
    %3700 = vmatprep.subr.mxu0 0.0
    %3701 = vmatpush2.msra.mxu0 0.0
    %3702 = vmatprep.subr.mxu0 0.0
    %3703 = vmatpush2.msra.mxu0 0.0
    %3704 = vmatprep.subr.mxu0 0.0
    %3705 = vmatpush2.msra.mxu0 0.0
    %3706 = vmatprep.subr.mxu0 0.0
    %3707 = vmatpush2.msra.mxu0 0.0
    %3708 = vmatprep.subr.mxu0 0.0
    %3709 = vmatpush2.msra.mxu0 0.0
    %3710 = vmatprep.subr.mxu0 0.0
    %3711 = vmatpush2.msra.mxu0 0.0
    %3712 = vmatprep.subr.mxu0 0.0
    %3713 = vmatpush2.msra.mxu0 0.0
    %3714 = vmatprep.subr.mxu0 0.0
    %3715 = vmatpush2.msra.mxu0 0.0
    %3716 = vmatprep.subr.mxu0 0.0
    %3717 = vmatpush2.msra.mxu0 0.0
    %3718 = vmatprep.mubr.f32.mxu0 0.0
    %3719 = vmatmul.mubr.f32.gmra.mxu0 %v3652
    %v3720 = vpop.f32.mrf.mxu0
    %v3721 = vadd.f32 0.0, %v3720
    %v3722 = vpop.f32.mrf.mxu0
    %v3723 = vadd.f32 0.0, %v3722
    %3724 = vdwg.mxu0
    %v3725 = vpack.c.bf16 %v3721, %v3721
    %v3726 = vpack.c.bf16 %v3723, %v3723
    %v3727 = vld [vmem:[#allocation8] sm:$0xff]
    %v3728 = vld [vmem:[#allocation8 + $0x8] sm:$0xff]
    %v3729 = vld [vmem:[#allocation8 + $0x10] sm:$0xff]
    %v3730 = vld [vmem:[#allocation8 + $0x18] sm:$0xff]
    %v3731 = vld [vmem:[#allocation8 + $0x20] sm:$0xff]
    %v3732 = vld [vmem:[#allocation8 + $0x28] sm:$0xff]
    %v3733 = vld [vmem:[#allocation8 + $0x30] sm:$0xff]
    %v3734 = vld [vmem:[#allocation8 + $0x38] sm:$0xff]
    %v3735 = vld [vmem:[#allocation8 + $0x40] sm:$0xff]
    %v3736 = vld [vmem:[#allocation8 + $0x48] sm:$0xff]
    %v3737 = vld [vmem:[#allocation8 + $0x50] sm:$0xff]
    %v3738 = vld [vmem:[#allocation8 + $0x58] sm:$0xff]
    %v3739 = vld [vmem:[#allocation8 + $0x60] sm:$0xff]
    %v3740 = vld [vmem:[#allocation8 + $0x68] sm:$0xff]
    %v3741 = vld [vmem:[#allocation8 + $0x70] sm:$0xff]
    %v3742 = vld [vmem:[#allocation8 + $0x78] sm:$0xff]
    %v3743 = vld [vmem:[#allocation8 + $0x80] sm:$0xff]
    %v3744 = vld [vmem:[#allocation8 + $0x88] sm:$0xff]
    %v3745 = vld [vmem:[#allocation8 + $0x90] sm:$0xff]
    %v3746 = vld [vmem:[#allocation8 + $0x98] sm:$0xff]
    %v3747 = vld [vmem:[#allocation8 + $0xa0] sm:$0xff]
    %v3748 = vld [vmem:[#allocation8 + $0xa8] sm:$0xff]
    %v3749 = vld [vmem:[#allocation8 + $0xb0] sm:$0xff]
    %v3750 = vld [vmem:[#allocation8 + $0xb8] sm:$0xff]
    %v3751 = vld [vmem:[#allocation8 + $0xc0] sm:$0xff]
    %v3752 = vld [vmem:[#allocation8 + $0xc8] sm:$0xff]
    %v3753 = vld [vmem:[#allocation8 + $0xd0] sm:$0xff]
    %v3754 = vld [vmem:[#allocation8 + $0xd8] sm:$0xff]
    %v3755 = vld [vmem:[#allocation8 + $0xe0] sm:$0xff]
    %v3756 = vld [vmem:[#allocation8 + $0xe8] sm:$0xff]
    %v3757 = vld [vmem:[#allocation8 + $0xf0] sm:$0xff]
    %v3758 = vld [vmem:[#allocation8 + $0xf8] sm:$0xff]
    %v3759 = vld [vmem:[%s10] sm:$0x3]
    %v3761 = vlaneseq
    %v3762 = vshrl.u32 %v3761, 7
    %v3763 = vsub.s32 0, %v3762
    %v3764 = vrot.slane %v3759, %v3763
    %v3765 = vlaneseq
    %v3766 = vshrl.u32 %v3765, 7
    %v3767 = vsub.s32 1, %v3766
    %v3768 = vrot.slane %v3759, %v3767
    %v3803 = vunpack.c.l.b16 %v3727
    %v3804 = vunpack.c.h.b16 %v3727
    %v3805 = vunpack.c.l.b16 %v3728
    %v3806 = vunpack.c.h.b16 %v3728
    %v3807 = vunpack.c.l.b16 %v3729
    %v3808 = vunpack.c.h.b16 %v3729
    %v3809 = vunpack.c.l.b16 %v3730
    %v3810 = vunpack.c.h.b16 %v3730
    %v3811 = vunpack.c.l.b16 %v3731
    %v3812 = vunpack.c.h.b16 %v3731
    %v3813 = vunpack.c.l.b16 %v3732
    %v3814 = vunpack.c.h.b16 %v3732
    %v3815 = vunpack.c.l.b16 %v3733
    %v3816 = vunpack.c.h.b16 %v3733
    %v3817 = vunpack.c.l.b16 %v3734
    %v3818 = vunpack.c.h.b16 %v3734
    %v3819 = vunpack.c.l.b16 %v3735
    %v3820 = vunpack.c.h.b16 %v3735
    %v3821 = vunpack.c.l.b16 %v3736
    %v3822 = vunpack.c.h.b16 %v3736
    %v3823 = vunpack.c.l.b16 %v3737
    %v3824 = vunpack.c.h.b16 %v3737
    %v3825 = vunpack.c.l.b16 %v3738
    %v3826 = vunpack.c.h.b16 %v3738
    %v3827 = vunpack.c.l.b16 %v3739
    %v3828 = vunpack.c.h.b16 %v3739
    %v3829 = vunpack.c.l.b16 %v3740
    %v3830 = vunpack.c.h.b16 %v3740
    %v3831 = vunpack.c.l.b16 %v3741
    %v3832 = vunpack.c.h.b16 %v3741
    %v3833 = vunpack.c.l.b16 %v3742
    %v3834 = vunpack.c.h.b16 %v3742
    %v3835 = vunpack.c.l.b16 %v3743
    %v3836 = vunpack.c.h.b16 %v3743
    %v3837 = vunpack.c.l.b16 %v3744
    %v3838 = vunpack.c.h.b16 %v3744
    %v3839 = vunpack.c.l.b16 %v3745
    %v3840 = vunpack.c.h.b16 %v3745
    %v3841 = vunpack.c.l.b16 %v3746
    %v3842 = vunpack.c.h.b16 %v3746
    %v3843 = vunpack.c.l.b16 %v3747
    %v3844 = vunpack.c.h.b16 %v3747
    %v3845 = vunpack.c.l.b16 %v3748
    %v3846 = vunpack.c.h.b16 %v3748
    %v3847 = vunpack.c.l.b16 %v3749
    %v3848 = vunpack.c.h.b16 %v3749
    %v3849 = vunpack.c.l.b16 %v3750
    %v3850 = vunpack.c.h.b16 %v3750
    %v3851 = vunpack.c.l.b16 %v3751
    %v3852 = vunpack.c.h.b16 %v3751
    %v3853 = vunpack.c.l.b16 %v3752
    %v3854 = vunpack.c.h.b16 %v3752
    %v3855 = vunpack.c.l.b16 %v3753
    %v3856 = vunpack.c.h.b16 %v3753
    %v3857 = vunpack.c.l.b16 %v3754
    %v3858 = vunpack.c.h.b16 %v3754
    %v3859 = vunpack.c.l.b16 %v3755
    %v3860 = vunpack.c.h.b16 %v3755
    %v3861 = vunpack.c.l.b16 %v3756
    %v3862 = vunpack.c.h.b16 %v3756
    %v3863 = vunpack.c.l.b16 %v3757
    %v3864 = vunpack.c.h.b16 %v3757
    %v3865 = vunpack.c.l.b16 %v3758
    %v3866 = vunpack.c.h.b16 %v3758
    %v3867 = vpack.c.b16 %v3805, %v3803
    %v3868 = vpack.c.b16 %v3806, %v3804
    %v3869 = vpack.c.b16 %v3809, %v3807
    %v3870 = vpack.c.b16 %v3810, %v3808
    %v3871 = vpack.c.b16 %v3813, %v3811
    %v3872 = vpack.c.b16 %v3814, %v3812
    %v3873 = vpack.c.b16 %v3817, %v3815
    %v3874 = vpack.c.b16 %v3818, %v3816
    %v3875 = vpack.c.b16 %v3821, %v3819
    %v3876 = vpack.c.b16 %v3822, %v3820
    %v3877 = vpack.c.b16 %v3825, %v3823
    %v3878 = vpack.c.b16 %v3826, %v3824
    %v3879 = vpack.c.b16 %v3829, %v3827
    %v3880 = vpack.c.b16 %v3830, %v3828
    %v3881 = vpack.c.b16 %v3833, %v3831
    %v3882 = vpack.c.b16 %v3834, %v3832
    %v3883 = vpack.c.b16 %v3837, %v3835
    %v3884 = vpack.c.b16 %v3838, %v3836
    %v3885 = vpack.c.b16 %v3841, %v3839
    %v3886 = vpack.c.b16 %v3842, %v3840
    %v3887 = vpack.c.b16 %v3845, %v3843
    %v3888 = vpack.c.b16 %v3846, %v3844
    %v3889 = vpack.c.b16 %v3849, %v3847
    %v3890 = vpack.c.b16 %v3850, %v3848
    %v3891 = vpack.c.b16 %v3853, %v3851
    %v3892 = vpack.c.b16 %v3854, %v3852
    %v3893 = vpack.c.b16 %v3857, %v3855
    %v3894 = vpack.c.b16 %v3858, %v3856
    %v3895 = vpack.c.b16 %v3861, %v3859
    %v3896 = vpack.c.b16 %v3862, %v3860
    %v3897 = vpack.c.b16 %v3865, %v3863
    %v3898 = vpack.c.b16 %v3866, %v3864
    %3931 = vmatprep.subr.bf16.mxu0 %v3882
    %3932 = vmatpush1.bf16.msra.mxu0 %v3881
    %3933 = vmatprep.subr.bf16.mxu0 %v3880
    %3934 = vmatpush1.bf16.msra.mxu0 %v3879
    %3935 = vmatprep.subr.bf16.mxu0 %v3878
    %3936 = vmatpush1.bf16.msra.mxu0 %v3877
    %3937 = vmatprep.subr.bf16.mxu0 %v3876
    %3938 = vmatpush1.bf16.msra.mxu0 %v3875
    %3939 = vmatprep.subr.bf16.mxu0 %v3874
    %3940 = vmatpush1.bf16.msra.mxu0 %v3873
    %3941 = vmatprep.subr.bf16.mxu0 %v3872
    %3942 = vmatpush1.bf16.msra.mxu0 %v3871
    %3943 = vmatprep.subr.bf16.mxu0 %v3870
    %3944 = vmatpush1.bf16.msra.mxu0 %v3869
    %3945 = vmatprep.subr.bf16.mxu0 %v3868
    %3946 = vmatpush1.bf16.msra.mxu0 %v3867
    %3947 = vmatprep.subr.bf16.mxu0 %v3898
    %3948 = vmatpush2.bf16.msra.mxu0 %v3897
    %3949 = vmatprep.subr.bf16.mxu0 %v3896
    %3950 = vmatpush2.bf16.msra.mxu0 %v3895
    %3951 = vmatprep.subr.bf16.mxu0 %v3894
    %3952 = vmatpush2.bf16.msra.mxu0 %v3893
    %3953 = vmatprep.subr.bf16.mxu0 %v3892
    %3954 = vmatpush2.bf16.msra.mxu0 %v3891
    %3955 = vmatprep.subr.bf16.mxu0 %v3890
    %3956 = vmatpush2.bf16.msra.mxu0 %v3889
    %3957 = vmatprep.subr.bf16.mxu0 %v3888
    %3958 = vmatpush2.bf16.msra.mxu0 %v3887
    %3959 = vmatprep.subr.bf16.mxu0 %v3886
    %3960 = vmatpush2.bf16.msra.mxu0 %v3885
    %3961 = vmatprep.subr.bf16.mxu0 %v3884
    %3962 = vmatpush2.bf16.msra.mxu0 %v3883
    %3963 = vmatprep.mubr.bf16.mxu0 %v3726
    %3964 = vmatmul.mubr.bf16.gmra.mxu0 %v3725
    %v3965 = vpop.f32.mrf.mxu0
    %v3966 = vadd.f32 %v3764, %v3965
    %v3967 = vpop.f32.mrf.mxu0
    %v3968 = vadd.f32 %v3768, %v3967
    %v3969 = vpop.f32.mrf.mxu0
    %v3970 = vpop.f32.mrf.mxu0
    %3971 = vdwg.mxu0
    %3972 = vst [vmem:[#allocation10] sm:$0xff] %v3966
    %3973 = vst [vmem:[#allocation10 + $0x8] sm:$0xff] %v3968
    // Predicated region
    $region62: #{tpu_custom_call.1} parent=1 // pred_check
      _
    $region63: #{tpu_custom_call.1} parent=1 // pred_check_branch
      %3975 = sbr.rel (0) target = $region65
    $region64: #{tpu_custom_call.1} parent=1 // pred_region
      %s3977 = ssub.s32 256, 256
      %3978 = vsyncadd [#allocation4], %s3977
      %s3980 = sshll.u32 [#allocation10], 4
      %s3981 = int_to_ptr.vmem [resolvable:$true] %s3980
      %3983 = dma.vmem_to_hbm [thread:$0]  %s3981, 256, %s11, [#allocation4]
    $region65: #{tpu_custom_call.1} parent=1 // pred_fallthru
      _
    // Predicated region
    $region66: #{tpu_custom_call.1} parent=1 // pred_check
      _
    $region67: #{tpu_custom_call.1} parent=1 // pred_check_branch
      %3985 = sbr.rel (0) target = $region69
    $region68: #{tpu_custom_call.1} parent=1 // pred_region
      %3986 = dma.done [#allocation4], 256
    $region69: #{tpu_custom_call.1} parent=1 // pred_fallthru
      _
    %3987 = vsyncpa [#allocation3], 1
    %3988 = vsyncpa [#allocation6], 1
    %3989 = vsyncpa [#allocation9], 1
    %3990 = vsyncpa [#allocation4], 1

</llo_original>
